<compile_context>
chip_gen: v5e
topology: v5e:2x2
jax: 0.10.0
libtpu: 0.0.40
codegen_flags: <defaults>
</compile_context>

<pallas_src>
import functools

import jax
import jax.numpy as jnp
from jax import lax
from jax.experimental import pallas as pl
from jax.experimental.pallas import tpu as pltpu


_Q_BLOCK = 256            # query rows per attention grid step
_NEG_INF = -1e10          # matches reference masked_fill value


@functools.lru_cache(maxsize=None)
def _vmem_limit_bytes():
    """Per-generation scoped-VMEM budget (~3/4 of physical per-core VMEM)."""
    cap = None
    try:
        cap = getattr(pltpu.get_tpu_info(), "vmem_capacity_bytes", None)
    except Exception:
        cap = None
    if not cap:
        cap = 64 * 1024 * 1024        # conservative (v7x-sized) fallback
    return int(cap * 3 // 4)          # ~48 MiB on v7x, ~96 MiB on v5e / v6e


@functools.lru_cache(maxsize=None)
def _row_block():
    # Bigger row blocks when the budget allows (v5e/v6e have 128 MiB physical VMEM).
    return 512 if _vmem_limit_bytes() >= 80 * 1024 * 1024 else 256


def _compiler_params(*semantics):
    return pltpu.CompilerParams(dimension_semantics=semantics,
                                vmem_limit_bytes=_vmem_limit_bytes())


# ----------------------------------------------------------------------------
# Kernels
# ----------------------------------------------------------------------------
def _matmul_bias_kernel(x_ref, w_ref, b_ref, o_ref, *, compute_dtype):
    acc = jnp.dot(x_ref[...].astype(compute_dtype), w_ref[...].astype(compute_dtype),
                  preferred_element_type=jnp.float32)
    o_ref[...] = (acc + b_ref[...]).astype(o_ref.dtype)


def _self_attn_kernel(x_ref, wq_ref, bq_ref, kv_ref, mask_ref, o_ref, *,
                      n_heads, head_dim, inv_scale, compute_dtype):
    # One (batch, q-tile) per grid step: Q projection fused, heads sliced from lanes.
    H = n_heads * head_dim
    q = (jnp.dot(x_ref[...].astype(compute_dtype), wq_ref[...].astype(compute_dtype),
                 preferred_element_type=jnp.float32) + bq_ref[...]) * inv_scale
    kv = kv_ref[...]                               # [L, 2H] (compute_dtype)
    keep = mask_ref[...] != 0                      # [tq, L] bool
    for h in range(n_heads):
        lo, hi = h * head_dim, (h + 1) * head_dim
        qh = q[:, lo:hi].astype(compute_dtype)
        kh = kv[:, lo:hi].astype(compute_dtype)
        vh = kv[:, H + lo:H + hi].astype(compute_dtype)
        e = lax.dot_general(qh, kh, (((1,), (1,)), ((), ())),
                            preferred_element_type=jnp.float32)
        e = jnp.where(keep, e, _NEG_INF)
        e = e - jnp.max(e, axis=-1, keepdims=True)
        p = jnp.exp(e)
        p = p * pl.reciprocal(jnp.sum(p, axis=-1, keepdims=True), approx=True)
        ctx = jnp.dot(p.astype(compute_dtype), vh, preferred_element_type=jnp.float32)
        o_ref[:, lo:hi] = ctx.astype(o_ref.dtype)  # lane-slice store, no concat


def _cross_attn_kernel(x_ref, wq_ref, bq_ref, kv_ref, mask_ref, o_ref, a_ref, *,
                       n_heads, head_dim, inv_scale, compute_dtype):
    H = n_heads * head_dim
    q = (jnp.dot(x_ref[...].astype(compute_dtype), wq_ref[...].astype(compute_dtype),
                 preferred_element_type=jnp.float32) + bq_ref[...]) * inv_scale
    kv = kv_ref[...]                               # [S, 2H]
    keep = mask_ref[...] != 0                      # [1, S] bool (broadcast over queries)
    for h in range(n_heads):
        lo, hi = h * head_dim, (h + 1) * head_dim
        qh = q[:, lo:hi].astype(compute_dtype)
        kh = kv[:, lo:hi].astype(compute_dtype)
        vh = kv[:, H + lo:H + hi].astype(compute_dtype)
        e = lax.dot_general(qh, kh, (((1,), (1,)), ((), ())),
                            preferred_element_type=jnp.float32)
        e = jnp.where(keep, e, _NEG_INF)
        e = e - jnp.max(e, axis=-1, keepdims=True)
        p = jnp.exp(e)
        # exact reciprocal: these probabilities are returned to the caller
        p = p * pl.reciprocal(jnp.sum(p, axis=-1, keepdims=True))
        a_ref[h] = p.astype(a_ref.dtype)
        ctx = jnp.dot(p.astype(compute_dtype), vh, preferred_element_type=jnp.float32)
        o_ref[:, lo:hi] = ctx.astype(o_ref.dtype)


def _proj_add_ln_kernel(ctx_ref, res_ref, w_ref, b_ref, g_ref, beta_ref, o_ref, *,
                        compute_dtype):
    # out = LayerNorm(residual + ctx @ Wo + bo), eps = 1e-5 (PyTorch default)
    proj = jnp.dot(ctx_ref[...].astype(compute_dtype), w_ref[...].astype(compute_dtype),
                   preferred_element_type=jnp.float32) + b_ref[...]
    y = res_ref[...].astype(jnp.float32) + proj
    mu = jnp.mean(y, axis=-1, keepdims=True)
    var = jnp.mean(jnp.square(y - mu), axis=-1, keepdims=True)
    yn = (y - mu) * lax.rsqrt(var + 1e-5)
    o_ref[...] = (yn * g_ref[...] + beta_ref[...]).astype(o_ref.dtype)


def _ffn_add_ln_resident_kernel(x_ref, w1_ref, b1_ref, w2_ref, b2_ref, g_ref, beta_ref,
                                o_ref, *, compute_dtype):
    # Full pf_dim in one shot; w1/w2 resident (constant index_map, DMA'd once).
    x = x_ref[...]
    h = jnp.dot(x.astype(compute_dtype), w1_ref[...].astype(compute_dtype),
                preferred_element_type=jnp.float32) + b1_ref[...]
    h = jnp.maximum(h, 0.0)
    y = jnp.dot(h.astype(compute_dtype), w2_ref[...].astype(compute_dtype),
                preferred_element_type=jnp.float32) + b2_ref[...]
    y = x.astype(jnp.float32) + y
    mu = jnp.mean(y, axis=-1, keepdims=True)
    var = jnp.mean(jnp.square(y - mu), axis=-1, keepdims=True)
    yn = (y - mu) * lax.rsqrt(var + 1e-5)
    o_ref[...] = (yn * g_ref[...] + beta_ref[...]).astype(o_ref.dtype)


def _ffn_add_ln_tiled_kernel(x_ref, w1_ref, b1_ref, w2_ref, b2_ref, g_ref, beta_ref,
                             o_ref, acc_ref, *, compute_dtype):
    # Fallback for large pf_dim: contraction tiled over pf_dim with a VMEM accumulator.
    p_idx = pl.program_id(1)

    @pl.when(p_idx == 0)
    def _():
        acc_ref[...] = jnp.zeros_like(acc_ref)

    x = x_ref[...].astype(compute_dtype)
    h = jnp.dot(x, w1_ref[...].astype(compute_dtype),
                preferred_element_type=jnp.float32) + b1_ref[...]
    h = jnp.maximum(h, 0.0)
    acc_ref[...] += jnp.dot(h.astype(compute_dtype), w2_ref[...].astype(compute_dtype),
                            preferred_element_type=jnp.float32)

    @pl.when(p_idx == pl.num_programs(1) - 1)
    def _():
        y = x_ref[...].astype(jnp.float32) + acc_ref[...] + b2_ref[...]
        mu = jnp.mean(y, axis=-1, keepdims=True)
        var = jnp.mean(jnp.square(y - mu), axis=-1, keepdims=True)
        yn = (y - mu) * lax.rsqrt(var + 1e-5)
        o_ref[...] = (yn * g_ref[...] + beta_ref[...]).astype(o_ref.dtype)


# ----------------------------------------------------------------------------
# Pallas wrappers
# ----------------------------------------------------------------------------
def linear(x, w, b, compute_dtype=jnp.float32, out_dtype=None, row_block=256):
    """x: [N, Hi] @ w: [Hi, Ho] + b  ->  [N, Ho]   (row-tiled, pipelined)."""
    N, Hi = x.shape
    Ho = w.shape[1]
    out_dtype = x.dtype if out_dtype is None else out_dtype
    rb = min(N, row_block)
    kern = functools.partial(_matmul_bias_kernel, compute_dtype=compute_dtype)
    return pl.pallas_call(
        kern,
        grid=(pl.cdiv(N, rb),),
        in_specs=[
            pl.BlockSpec((rb, Hi), lambda i: (i, 0)),
            pl.BlockSpec((Hi, Ho), lambda i: (0, 0)),
            pl.BlockSpec((1, Ho), lambda i: (0, 0)),
        ],
        out_specs=pl.BlockSpec((rb, Ho), lambda i: (i, 0)),
        out_shape=jax.ShapeDtypeStruct((N, Ho), out_dtype),
        compiler_params=_compiler_params("parallel"),
    )(x, w, b.reshape(1, Ho))


def self_attention(x, kv, wq, bq, mask, n_heads, head_dim, inv_scale, compute_dtype,
                   q_block=_Q_BLOCK):
    """x: [B, T, H] (Q source), kv: [B, T, 2H], mask: [B, T, T] int -> ctx [B, T, H]."""
    B, T, H = x.shape
    tq = min(T, q_block)
    kern = functools.partial(_self_attn_kernel, n_heads=n_heads, head_dim=head_dim,
                             inv_scale=inv_scale, compute_dtype=compute_dtype)
    return pl.pallas_call(
        kern,
        grid=(B, pl.cdiv(T, tq)),
        in_specs=[
            pl.BlockSpec((None, tq, H), lambda b, q: (b, q, 0)),       # q-tile of target
            pl.BlockSpec((H, H), lambda b, q: (0, 0)),                 # wq (resident)
            pl.BlockSpec((1, H), lambda b, q: (0, 0)),                 # bq
            pl.BlockSpec((None, T, 2 * H), lambda b, q: (b, 0, 0)),    # full KV per batch
            pl.BlockSpec((None, tq, T), lambda b, q: (b, q, 0)),       # mask tile (int)
        ],
        out_specs=pl.BlockSpec((None, tq, H), lambda b, q: (b, q, 0)),
        out_shape=jax.ShapeDtypeStruct((B, T, H), x.dtype),
        compiler_params=_compiler_params("parallel", "parallel"),
    )(x, wq, bq.reshape(1, H), kv, mask)


def cross_attention(x, kv, wq, bq, mask, n_heads, head_dim, inv_scale, compute_dtype,
                    q_block=_Q_BLOCK):
    """x: [B, T, H], kv: [B, S, 2H], mask: [B, 1, S] -> (ctx [B,T,H], probs [B,nh,T,S])."""
    B, T, H = x.shape
    S = kv.shape[1]
    tq = min(T, q_block)
    kern = functools.partial(_cross_attn_kernel, n_heads=n_heads, head_dim=head_dim,
                             inv_scale=inv_scale, compute_dtype=compute_dtype)
    return pl.pallas_call(
        kern,
        grid=(B, pl.cdiv(T, tq)),
        in_specs=[
            pl.BlockSpec((None, tq, H), lambda b, q: (b, q, 0)),
            pl.BlockSpec((H, H), lambda b, q: (0, 0)),
            pl.BlockSpec((1, H), lambda b, q: (0, 0)),
            pl.BlockSpec((None, S, 2 * H), lambda b, q: (b, 0, 0)),
            pl.BlockSpec((None, 1, S), lambda b, q: (b, 0, 0)),
        ],
        out_specs=(
            pl.BlockSpec((None, tq, H), lambda b, q: (b, q, 0)),
            pl.BlockSpec((None, n_heads, tq, S), lambda b, q: (b, 0, q, 0)),
        ),
        out_shape=(
            jax.ShapeDtypeStruct((B, T, H), x.dtype),
            jax.ShapeDtypeStruct((B, n_heads, T, S), jnp.float32),
        ),
        compiler_params=_compiler_params("parallel", "parallel"),
    )(x, wq, bq.reshape(1, H), kv, mask)


def proj_add_ln(ctx, residual, w, b, gamma, beta, compute_dtype=jnp.float32,
                row_block=256):
    """LayerNorm(residual + ctx @ w + b). ctx/residual: [N, H]."""
    N, H = ctx.shape
    rb = min(N, row_block)
    kern = functools.partial(_proj_add_ln_kernel, compute_dtype=compute_dtype)
    return pl.pallas_call(
        kern,
        grid=(pl.cdiv(N, rb),),
        in_specs=[
            pl.BlockSpec((rb, H), lambda i: (i, 0)),
            pl.BlockSpec((rb, H), lambda i: (i, 0)),
            pl.BlockSpec((w.shape[0], H), lambda i: (0, 0)),
            pl.BlockSpec((1, H), lambda i: (0, 0)),
            pl.BlockSpec((1, H), lambda i: (0, 0)),
            pl.BlockSpec((1, H), lambda i: (0, 0)),
        ],
        out_specs=pl.BlockSpec((rb, H), lambda i: (i, 0)),
        out_shape=jax.ShapeDtypeStruct((N, H), residual.dtype),
        compiler_params=_compiler_params("parallel"),
    )(ctx, residual, w, b.reshape(1, H), gamma.reshape(1, H), beta.reshape(1, H))


def ffn_add_ln(x, w1, b1, w2, b2, gamma, beta, compute_dtype=jnp.float32,
               row_block=256):
    """LayerNorm(x + fc2(relu(fc1(x)))). x: [N, H]."""
    N, H = x.shape
    P = w1.shape[1]
    rb = min(N, row_block)
    wbytes = jnp.dtype(w1.dtype).itemsize
    budget = _vmem_limit_bytes()
    # rough per-step VMEM need for the resident path (double-buffered x/out/weights +
    # the [rb, P] hidden activation)
    need = 2 * (2 * rb * H * 4) + 2 * (2 * H * P * wbytes) + rb * P * 4

    if need <= int(budget * 0.8):
        kern = functools.partial(_ffn_add_ln_resident_kernel, compute_dtype=compute_dtype)
        return pl.pallas_call(
            kern,
            grid=(pl.cdiv(N, rb),),
            in_specs=[
                pl.BlockSpec((rb, H), lambda i: (i, 0)),
                pl.BlockSpec((H, P), lambda i: (0, 0)),    # w1 resident
                pl.BlockSpec((1, P), lambda i: (0, 0)),
                pl.BlockSpec((P, H), lambda i: (0, 0)),    # w2 resident
                pl.BlockSpec((1, H), lambda i: (0, 0)),
                pl.BlockSpec((1, H), lambda i: (0, 0)),
                pl.BlockSpec((1, H), lambda i: (0, 0)),
            ],
            out_specs=pl.BlockSpec((rb, H), lambda i: (i, 0)),
            out_shape=jax.ShapeDtypeStruct((N, H), x.dtype),
            compiler_params=_compiler_params("parallel"),
        )(x, w1, b1.reshape(1, P), w2, b2.reshape(1, H),
          gamma.reshape(1, H), beta.reshape(1, H))

    # Fallback: tile the pf_dim contraction (reduction axis last in the grid).
    if P % 512 == 0:
        pt = 512
    elif P % 256 == 0:
        pt = 256
    elif P % 128 == 0:
        pt = 128
    else:
        pt = P  # TODO(synk): ragged pf_dim tiles (non multiple of 128) fall back to full P
    kern = functools.partial(_ffn_add_ln_tiled_kernel, compute_dtype=compute_dtype)
    return pl.pallas_call(
        kern,
        grid=(pl.cdiv(N, rb), P // pt),
        in_specs=[
            pl.BlockSpec((rb, H), lambda i, p: (i, 0)),
            pl.BlockSpec((H, pt), lambda i, p: (0, p)),
            pl.BlockSpec((1, pt), lambda i, p: (0, p)),
            pl.BlockSpec((pt, H), lambda i, p: (p, 0)),
            pl.BlockSpec((1, H), lambda i, p: (0, 0)),
            pl.BlockSpec((1, H), lambda i, p: (0, 0)),
            pl.BlockSpec((1, H), lambda i, p: (0, 0)),
        ],
        out_specs=pl.BlockSpec((rb, H), lambda i, p: (i, 0)),
        out_shape=jax.ShapeDtypeStruct((N, H), x.dtype),
        scratch_shapes=[pltpu.VMEM((rb, H), jnp.float32)],
        compiler_params=_compiler_params("parallel", "arbitrary"),
    )(x, w1, b1.reshape(1, P), w2, b2.reshape(1, H),
      gamma.reshape(1, H), beta.reshape(1, H))


# ----------------------------------------------------------------------------
# Module-level composition (glue in plain JAX, hot path in Pallas)
# ----------------------------------------------------------------------------
def _cast_weights(params, compute_dtype):
    """Pre-cast all 2-D weight matrices to compute_dtype in HBM (biases/LN stay f32)."""
    if compute_dtype == jnp.float32:
        return params
    return jax.tree_util.tree_map(
        lambda w: w.astype(compute_dtype) if w.ndim == 2 else w, params)


def decoder_layer(target, enc_src, trg_mask, src_mask, params, n_heads,
                  compute_dtype=jnp.float32):
    """Forward pass of DecoderLayer (inference mode: dropout = identity).

    compute_dtype=jnp.bfloat16 uses bf16 MXU operands and bf16 weights/KV in HBM;
    softmax and LayerNorm statistics stay f32.
    """
    B, T, H = target.shape
    S = enc_src.shape[1]
    Dh = H // n_heads
    inv_scale = 1.0 / (float(Dh) ** 0.5)  # 1/sqrt(head_dim), as in the reference MHA
    rb = _row_block()

    params = _cast_weights(params, compute_dtype)

    # raw int masks, tiled per q-block inside the attention kernels (no [B,T,T] f32 bias)
    trg_mask3 = trg_mask.reshape(B, T, T)
    src_mask3 = src_mask.reshape(B, 1, S)

    tgt2d = target.reshape(B * T, H)

    # --- self attention: fused KV proj (HBM, compute_dtype) + in-kernel Q proj
    #     -> q-tiled attention -> fused out-proj + residual + LN
    sa = params["self_attn"]
    kv_s = linear(tgt2d, sa["wkv"], sa["bkv"], compute_dtype, out_dtype=compute_dtype,
                  row_block=rb).reshape(B, T, 2 * H)
    ctx = self_attention(target, kv_s, sa["wq"], sa["bq"], trg_mask3,
                         n_heads, Dh, inv_scale, compute_dtype)
    tgt2d = proj_add_ln(ctx.reshape(B * T, H), tgt2d, sa["wo"], sa["bo"],
                        params["ln1_g"], params["ln1_b"], compute_dtype, rb)

    # --- encoder (cross) attention: fused KV proj of enc_src + in-kernel Q proj
    #     -> q-tiled attention (probs returned) -> fused out-proj + residual + LN
    ea = params["enc_attn"]
    kv_e = linear(enc_src.reshape(B * S, H), ea["wkv"], ea["bkv"], compute_dtype,
                  out_dtype=compute_dtype, row_block=rb).reshape(B, S, 2 * H)
    ctx, attention = cross_attention(tgt2d.reshape(B, T, H), kv_e, ea["wq"], ea["bq"],
                                     src_mask3, n_heads, Dh, inv_scale, compute_dtype)
    tgt2d = proj_add_ln(ctx.reshape(B * T, H), tgt2d, ea["wo"], ea["bo"],
                        params["ln2_g"], params["ln2_b"], compute_dtype, rb)

    # --- position-wise feed-forward fused with residual + LN
    ff = params["ff"]
    tgt2d = ffn_add_ln(tgt2d, ff["w1"], ff["b1"], ff["w2"], ff["b2"],
                       params["ln3_g"], params["ln3_b"], compute_dtype, rb)

    return tgt2d.reshape(B, T, H), attention


# ----------------------------------------------------------------------------
# Deterministic parameter init (separate Q / fused KV layout) + pure-JAX reference
# ----------------------------------------------------------------------------
def init_params(key, hid_dim, pf_dim):
    def dense(k, i, o):
        kw, kb = jax.random.split(k)
        return (0.05 * jax.random.normal(kw, (i, o), jnp.float32),
                0.05 * jax.random.normal(kb, (o,), jnp.float32))

    keys = jax.random.split(key, 8)
    wq_s, bq_s = dense(keys[0], hid_dim, hid_dim)
    wkv_s, bkv_s = dense(keys[1], hid_dim, 2 * hid_dim)
    wo_s, bo_s = dense(keys[2], hid_dim, hid_dim)
    wq_e, bq_e = dense(keys[3], hid_dim, hid_dim)
    wkv_e, bkv_e = dense(keys[4], hid_dim, 2 * hid_dim)
    wo_e, bo_e = dense(keys[5], hid_dim, hid_dim)
    w1, b1 = dense(keys[6], hid_dim, pf_dim)
    w2, b2 = dense(keys[7], pf_dim, hid_dim)
    ones = jnp.ones((hid_dim,), jnp.float32)
    zeros = jnp.zeros((hid_dim,), jnp.float32)
    return dict(
        self_attn=dict(wq=wq_s, bq=bq_s, wkv=wkv_s, bkv=bkv_s, wo=wo_s, bo=bo_s),
        enc_attn=dict(wq=wq_e, bq=bq_e, wkv=wkv_e, bkv=bkv_e, wo=wo_e, bo=bo_e),
        ff=dict(w1=w1, b1=b1, w2=w2, b2=b2),
        ln1_g=ones, ln1_b=zeros, ln2_g=ones, ln2_b=zeros, ln3_g=ones, ln3_b=zeros,
    )


def _ref_mha(q_in, k_in, v_in, mask4d, wq, bq, wk, bk, wv, bv, wo, bo, n_heads):
    B, Lq, H = q_in.shape
    Lk = k_in.shape[1]
    Dh = H // n_heads
    q = (q_in @ wq + bq).reshape(B, Lq, n_heads, Dh).transpose(0, 2, 1, 3)
    k = (k_in @ wk + bk).reshape(B, Lk, n_heads, Dh).transpose(0, 2, 1, 3)
    v = (v_in @ wv + bv).reshape(B, Lk, n_heads, Dh).transpose(0, 2, 1, 3)
    e = jnp.einsum("bhqd,bhkd->bhqk", q, k) / (float(Dh) ** 0.5)
    e = jnp.where(mask4d == 0, -1e10, e)
    a = jax.nn.softmax(e, axis=-1)
    x = jnp.einsum("bhqk,bhkd->bhqd", a, v).transpose(0, 2, 1, 3).reshape(B, Lq, H)
    return x @ wo + bo, a


def _ref_ln(x, g, b):
    mu = jnp.mean(x, axis=-1, keepdims=True)
    var = jnp.mean(jnp.square(x - mu), axis=-1, keepdims=True)
    return (x - mu) * lax.rsqrt(var + 1e-5) * g + b


def _ref_decoder_layer(target, enc_src, trg_mask, src_mask, params, n_heads):
    B, T, H = target.shape
    S = enc_src.shape[1]
    sa, ea, ff = params["self_attn"], params["enc_attn"], params["ff"]

    t, _ = _ref_mha(target, target, target, trg_mask.reshape(B, 1, T, T),
                    sa["wq"], sa["bq"],
                    sa["wkv"][:, :H], sa["bkv"][:H],
                    sa["wkv"][:, H:], sa["bkv"][H:],
                    sa["wo"], sa["bo"], n_heads)
    target = _ref_ln(target + t, params["ln1_g"], params["ln1_b"])

    t, attn = _ref_mha(target, enc_src, enc_src, src_mask.reshape(B, 1, 1, S),
                       ea["wq"], ea["bq"],
                       ea["wkv"][:, :H], ea["bkv"][:H],
                       ea["wkv"][:, H:], ea["bkv"][H:],
                       ea["wo"], ea["bo"], n_heads)
    target = _ref_ln(target + t, params["ln2_g"], params["ln2_b"])

    t = jnp.maximum(target @ ff["w1"] + ff["b1"], 0.0) @ ff["w2"] + ff["b2"]
    target = _ref_ln(target + t, params["ln3_g"], params["ln3_b"])
    return target, attn


# ----------------------------------------------------------------------------
if __name__ == "__main__":
    B, T, S = 2, 8, 16
    hid_dim, n_heads, pf_dim = 32, 4, 64
    dropout = 0.1  # identity at inference; kept for signature fidelity

    root = jax.random.PRNGKey(0)
    k_p, k_t, k_e = jax.random.split(root, 3)

    params = init_params(k_p, hid_dim, pf_dim)
    target = jax.random.normal(k_t, (B, T, hid_dim), jnp.float32)
    enc_src = jax.random.normal(k_e, (B, S, hid_dim), jnp.float32)

    # causal target mask [B, 1, T, T]; padding source mask [B, 1, 1, S]
    trg_mask = jnp.tril(jnp.ones((T, T), jnp.int32))[None, None].repeat(B, axis=0)
    src_mask = jnp.ones((B, 1, 1, S), jnp.int32).at[1, 0, 0, S - 4:].set(0)

    # f32 MXU operands (exact comparison vs. reference)
    out, attention = jax.jit(
        functools.partial(decoder_layer, n_heads=n_heads, compute_dtype=jnp.float32)
    )(target, enc_src, trg_mask, src_mask, params)
    jax.block_until_ready((out, attention))

    ref_out, ref_attn = _ref_decoder_layer(target, enc_src, trg_mask, src_mask,
                                           params, n_heads)
    assert out.shape == (B, T, hid_dim)
    assert attention.shape == (B, n_heads, T, S)
    assert jnp.allclose(out, ref_out, atol=5e-3, rtol=5e-3)
    assert jnp.allclose(attention, ref_attn, atol=5e-3, rtol=5e-3)

    # bf16 MXU operands + bf16 weights/KV in HBM (v5e/v6e/v7x fast path) -- smoke check
    out_bf16, attn_bf16 = jax.jit(
        functools.partial(decoder_layer, n_heads=n_heads, compute_dtype=jnp.bfloat16)
    )(target, enc_src, trg_mask, src_mask, params)
    jax.block_until_ready((out_bf16, attn_bf16))
    assert bool(jnp.isfinite(out_bf16).all()) and bool(jnp.isfinite(attn_bf16).all())
    assert float(jnp.max(jnp.abs(out_bf16 - out))) < 0.25

    print("KERNEL_OK")
</pallas_src>

<mosaic_0001>
module attributes {stable_mosaic.version = 11 : i64} {
  func.func @_matmul_bias_kernel(%arg0: i32, %arg1: memref<32x32xf32, #tpu.memory_space<vmem>>, %arg2: memref<32x64xf32, #tpu.memory_space<vmem>>, %arg3: memref<1x64xf32, #tpu.memory_space<vmem>>, %arg4: memref<32x64xf32, #tpu.memory_space<vmem>>) attributes {dimension_semantics = [#tpu.dimension_semantics<parallel>], iteration_bounds = array<i64: 1>, scalar_prefetch = 0 : i64, scratch_operands = 0 : i64, tpu.core_type = #tpu.core_type<tc>, window_params = [{transform_indices = @transform_0, window_bounds = array<i64: 32, 32>}, {pipeline_mode = #tpu.pipeline_mode<synchronous>, transform_indices = @transform_1, window_bounds = array<i64: 32, 64>}, {pipeline_mode = #tpu.pipeline_mode<synchronous>, transform_indices = @transform_2, window_bounds = array<i64: 1, 64>}, {transform_indices = @transform_3, window_bounds = array<i64: 32, 64>}]} {
    %c0 = arith.constant 0 : index
    %c0_0 = arith.constant 0 : index
    %0 = vector.load %arg1[%c0, %c0_0] : memref<32x32xf32, #tpu.memory_space<vmem>>, vector<32x32xf32>
    %c0_1 = arith.constant 0 : index
    %c0_2 = arith.constant 0 : index
    %1 = vector.load %arg2[%c0_1, %c0_2] : memref<32x64xf32, #tpu.memory_space<vmem>>, vector<32x64xf32>
    %cst = arith.constant dense<0.000000e+00> : vector<32x64xf32>
    %2 = tpu.matmul %0, %1, %cst {dimension_numbers = #tpu.dot_dimension_numbers<[1], [0], [0], [1], [0, 0, 1, 1], [], []>} : vector<32x32xf32>, vector<32x64xf32>, vector<32x64xf32> -> vector<32x64xf32>
    %c0_3 = arith.constant 0 : index
    %c0_4 = arith.constant 0 : index
    %3 = vector.load %arg3[%c0_3, %c0_4] : memref<1x64xf32, #tpu.memory_space<vmem>>, vector<1x64xf32>
    %4 = vector.broadcast %3 : vector<1x64xf32> to vector<32x64xf32>
    %5 = arith.addf %2, %4 : vector<32x64xf32>
    %c0_5 = arith.constant 0 : index
    %c0_6 = arith.constant 0 : index
    %6 = vector.load %arg4[%c0_5, %c0_6] : memref<32x64xf32, #tpu.memory_space<vmem>>, vector<32x64xf32>
    tpu.vector_store %arg4[%c0_5, %c0_6], %5 {strides = array<i32>} : memref<32x64xf32, #tpu.memory_space<vmem>>, vector<32x64xf32>,
    return
  }
  func.func @transform_0(%arg0: i32) -> (i32, i32) {
    %c0_i32 = arith.constant 0 : i32
    %c0_i32_0 = arith.constant 0 : i32
    return %arg0, %c0_i32 : i32, i32
  }
  func.func @transform_1(%arg0: i32) -> (i32, i32) {
    %c0_i32 = arith.constant 0 : i32
    %c0_i32_0 = arith.constant 0 : i32
    %c0_i32_1 = arith.constant 0 : i32
    return %c0_i32, %c0_i32_0 : i32, i32
  }
  func.func @transform_2(%arg0: i32) -> (i32, i32) {
    %c0_i32 = arith.constant 0 : i32
    %c0_i32_0 = arith.constant 0 : i32
    %c0_i32_1 = arith.constant 0 : i32
    return %c0_i32, %c0_i32_0 : i32, i32
  }
  func.func @transform_3(%arg0: i32) -> (i32, i32) {
    %c0_i32 = arith.constant 0 : i32
    %c0_i32_0 = arith.constant 0 : i32
    return %arg0, %c0_i32 : i32, i32
  }
}

module attributes {stable_mosaic.version = 11 : i64} {
  func.func @_proj_add_ln_kernel(%arg0: i32, %arg1: memref<16x32xf32, #tpu.memory_space<vmem>>, %arg2: memref<16x32xf32, #tpu.memory_space<vmem>>, %arg3: memref<32x32xf32, #tpu.memory_space<vmem>>, %arg4: memref<1x32xf32, #tpu.memory_space<vmem>>, %arg5: memref<1x32xf32, #tpu.memory_space<vmem>>, %arg6: memref<1x32xf32, #tpu.memory_space<vmem>>, %arg7: memref<16x32xf32, #tpu.memory_space<vmem>>) attributes {dimension_semantics = [#tpu.dimension_semantics<parallel>], iteration_bounds = array<i64: 1>, scalar_prefetch = 0 : i64, scratch_operands = 0 : i64, tpu.core_type = #tpu.core_type<tc>, window_params = [{transform_indices = @transform_0, window_bounds = array<i64: 16, 32>}, {transform_indices = @transform_1, window_bounds = array<i64: 16, 32>}, {pipeline_mode = #tpu.pipeline_mode<synchronous>, transform_indices = @transform_2, window_bounds = array<i64: 32, 32>}, {pipeline_mode = #tpu.pipeline_mode<synchronous>, transform_indices = @transform_3, window_bounds = array<i64: 1, 32>}, {pipeline_mode = #tpu.pipeline_mode<synchronous>, transform_indices = @transform_4, window_bounds = array<i64: 1, 32>}, {pipeline_mode = #tpu.pipeline_mode<synchronous>, transform_indices = @transform_5, window_bounds = array<i64: 1, 32>}, {transform_indices = @transform_6, window_bounds = array<i64: 16, 32>}]} {
    %c0 = arith.constant 0 : index
    %c0_0 = arith.constant 0 : index
    %0 = vector.load %arg1[%c0, %c0_0] : memref<16x32xf32, #tpu.memory_space<vmem>>, vector<16x32xf32>
    %c0_1 = arith.constant 0 : index
    %c0_2 = arith.constant 0 : index
    %1 = vector.load %arg3[%c0_1, %c0_2] : memref<32x32xf32, #tpu.memory_space<vmem>>, vector<32x32xf32>
    %cst = arith.constant dense<0.000000e+00> : vector<16x32xf32>
    %2 = tpu.matmul %0, %1, %cst {dimension_numbers = #tpu.dot_dimension_numbers<[1], [0], [0], [1], [0, 0, 1, 1], [], []>} : vector<16x32xf32>, vector<32x32xf32>, vector<16x32xf32> -> vector<16x32xf32>
    %c0_3 = arith.constant 0 : index
    %c0_4 = arith.constant 0 : index
    %3 = vector.load %arg4[%c0_3, %c0_4] : memref<1x32xf32, #tpu.memory_space<vmem>>, vector<1x32xf32>
    %4 = vector.broadcast %3 : vector<1x32xf32> to vector<16x32xf32>
    %5 = arith.addf %2, %4 : vector<16x32xf32>
    %c0_5 = arith.constant 0 : index
    %c0_6 = arith.constant 0 : index
    %6 = vector.load %arg2[%c0_5, %c0_6] : memref<16x32xf32, #tpu.memory_space<vmem>>, vector<16x32xf32>
    %7 = arith.addf %6, %5 : vector<16x32xf32>
    %cst_7 = arith.constant dense<0.000000e+00> : vector<16xf32>
    %8 = vector.multi_reduction <add>, %7, %cst_7 [1] : vector<16x32xf32> to vector<16xf32>
    %9 = vector.shape_cast %8 : vector<16xf32> to vector<16x1xf32>
    %cst_8 = arith.constant 3.200000e+01 : f32
    %10 = vector.broadcast %cst_8 : f32 to vector<16x1xf32>
    %11 = arith.divf %9, %10 : vector<16x1xf32>
    %12 = vector.broadcast %11 : vector<16x1xf32> to vector<16x32xf32>
    %13 = arith.subf %7, %12 : vector<16x32xf32>
    %14 = arith.mulf %13, %13 : vector<16x32xf32>
    %cst_9 = arith.constant dense<0.000000e+00> : vector<16xf32>
    %15 = vector.multi_reduction <add>, %14, %cst_9 [1] : vector<16x32xf32> to vector<16xf32>
    %16 = vector.shape_cast %15 : vector<16xf32> to vector<16x1xf32>
    %cst_10 = arith.constant 3.200000e+01 : f32
    %17 = vector.broadcast %cst_10 : f32 to vector<16x1xf32>
    %18 = arith.divf %16, %17 : vector<16x1xf32>
    %19 = vector.broadcast %11 : vector<16x1xf32> to vector<16x32xf32>
    %20 = arith.subf %7, %19 : vector<16x32xf32>
    %cst_11 = arith.constant 9.99999974E-6 : f32
    %21 = vector.broadcast %cst_11 : f32 to vector<16x1xf32>
    %22 = arith.addf %18, %21 : vector<16x1xf32>
    %23 = math.rsqrt %22 : vector<16x1xf32>
    %24 = vector.broadcast %23 : vector<16x1xf32> to vector<16x32xf32>
    %25 = arith.mulf %20, %24 : vector<16x32xf32>
    %c0_12 = arith.constant 0 : index
    %c0_13 = arith.constant 0 : index
    %26 = vector.load %arg5[%c0_12, %c0_13] : memref<1x32xf32, #tpu.memory_space<vmem>>, vector<1x32xf32>
    %27 = vector.broadcast %26 : vector<1x32xf32> to vector<16x32xf32>
    %28 = arith.mulf %25, %27 : vector<16x32xf32>
    %c0_14 = arith.constant 0 : index
    %c0_15 = arith.constant 0 : index
    %29 = vector.load %arg6[%c0_14, %c0_15] : memref<1x32xf32, #tpu.memory_space<vmem>>, vector<1x32xf32>
    %30 = vector.broadcast %29 : vector<1x32xf32> to vector<16x32xf32>
    %31 = arith.addf %28, %30 : vector<16x32xf32>
    %c0_16 = arith.constant 0 : index
    %c0_17 = arith.constant 0 : index
    %32 = vector.load %arg7[%c0_16, %c0_17] : memref<16x32xf32, #tpu.memory_space<vmem>>, vector<16x32xf32>
    tpu.vector_store %arg7[%c0_16, %c0_17], %31 {strides = array<i32>} : memref<16x32xf32, #tpu.memory_space<vmem>>, vector<16x32xf32>,
    return
  }
  func.func @transform_0(%arg0: i32) -> (i32, i32) {
    %c0_i32 = arith.constant 0 : i32
    %c0_i32_0 = arith.constant 0 : i32
    return %arg0, %c0_i32 : i32, i32
  }
  func.func @transform_1(%arg0: i32) -> (i32, i32) {
    %c0_i32 = arith.constant 0 : i32
    %c0_i32_0 = arith.constant 0 : i32
    return %arg0, %c0_i32 : i32, i32
  }
  func.func @transform_2(%arg0: i32) -> (i32, i32) {
    %c0_i32 = arith.constant 0 : i32
    %c0_i32_0 = arith.constant 0 : i32
    %c0_i32_1 = arith.constant 0 : i32
    return %c0_i32, %c0_i32_0 : i32, i32
  }
  func.func @transform_3(%arg0: i32) -> (i32, i32) {
    %c0_i32 = arith.constant 0 : i32
    %c0_i32_0 = arith.constant 0 : i32
    %c0_i32_1 = arith.constant 0 : i32
    return %c0_i32, %c0_i32_0 : i32, i32
  }
  func.func @transform_4(%arg0: i32) -> (i32, i32) {
    %c0_i32 = arith.constant 0 : i32
    %c0_i32_0 = arith.constant 0 : i32
    %c0_i32_1 = arith.constant 0 : i32
    return %c0_i32, %c0_i32_0 : i32, i32
  }
  func.func @transform_5(%arg0: i32) -> (i32, i32) {
    %c0_i32 = arith.constant 0 : i32
    %c0_i32_0 = arith.constant 0 : i32
    %c0_i32_1 = arith.constant 0 : i32
    return %c0_i32, %c0_i32_0 : i32, i32
  }
  func.func @transform_6(%arg0: i32) -> (i32, i32) {
    %c0_i32 = arith.constant 0 : i32
    %c0_i32_0 = arith.constant 0 : i32
    return %arg0, %c0_i32 : i32, i32
  }
}

module attributes {stable_mosaic.version = 11 : i64} {
  func.func @_matmul_bias_kernel(%arg0: i32, %arg1: memref<16x32xf32, #tpu.memory_space<vmem>>, %arg2: memref<32x64xf32, #tpu.memory_space<vmem>>, %arg3: memref<1x64xf32, #tpu.memory_space<vmem>>, %arg4: memref<16x64xf32, #tpu.memory_space<vmem>>) attributes {dimension_semantics = [#tpu.dimension_semantics<parallel>], iteration_bounds = array<i64: 1>, scalar_prefetch = 0 : i64, scratch_operands = 0 : i64, tpu.core_type = #tpu.core_type<tc>, window_params = [{transform_indices = @transform_0, window_bounds = array<i64: 16, 32>}, {pipeline_mode = #tpu.pipeline_mode<synchronous>, transform_indices = @transform_1, window_bounds = array<i64: 32, 64>}, {pipeline_mode = #tpu.pipeline_mode<synchronous>, transform_indices = @transform_2, window_bounds = array<i64: 1, 64>}, {transform_indices = @transform_3, window_bounds = array<i64: 16, 64>}]} {
    %c0 = arith.constant 0 : index
    %c0_0 = arith.constant 0 : index
    %0 = vector.load %arg1[%c0, %c0_0] : memref<16x32xf32, #tpu.memory_space<vmem>>, vector<16x32xf32>
    %c0_1 = arith.constant 0 : index
    %c0_2 = arith.constant 0 : index
    %1 = vector.load %arg2[%c0_1, %c0_2] : memref<32x64xf32, #tpu.memory_space<vmem>>, vector<32x64xf32>
    %cst = arith.constant dense<0.000000e+00> : vector<16x64xf32>
    %2 = tpu.matmul %0, %1, %cst {dimension_numbers = #tpu.dot_dimension_numbers<[1], [0], [0], [1], [0, 0, 1, 1], [], []>} : vector<16x32xf32>, vector<32x64xf32>, vector<16x64xf32> -> vector<16x64xf32>
    %c0_3 = arith.constant 0 : index
    %c0_4 = arith.constant 0 : index
    %3 = vector.load %arg3[%c0_3, %c0_4] : memref<1x64xf32, #tpu.memory_space<vmem>>, vector<1x64xf32>
    %4 = vector.broadcast %3 : vector<1x64xf32> to vector<16x64xf32>
    %5 = arith.addf %2, %4 : vector<16x64xf32>
    %c0_5 = arith.constant 0 : index
    %c0_6 = arith.constant 0 : index
    %6 = vector.load %arg4[%c0_5, %c0_6] : memref<16x64xf32, #tpu.memory_space<vmem>>, vector<16x64xf32>
    tpu.vector_store %arg4[%c0_5, %c0_6], %5 {strides = array<i32>} : memref<16x64xf32, #tpu.memory_space<vmem>>, vector<16x64xf32>,
    return
  }
  func.func @transform_0(%arg0: i32) -> (i32, i32) {
    %c0_i32 = arith.constant 0 : i32
    %c0_i32_0 = arith.constant 0 : i32
    return %arg0, %c0_i32 : i32, i32
  }
  func.func @transform_1(%arg0: i32) -> (i32, i32) {
    %c0_i32 = arith.constant 0 : i32
    %c0_i32_0 = arith.constant 0 : i32
    %c0_i32_1 = arith.constant 0 : i32
    return %c0_i32, %c0_i32_0 : i32, i32
  }
  func.func @transform_2(%arg0: i32) -> (i32, i32) {
    %c0_i32 = arith.constant 0 : i32
    %c0_i32_0 = arith.constant 0 : i32
    %c0_i32_1 = arith.constant 0 : i32
    return %c0_i32, %c0_i32_0 : i32, i32
  }
  func.func @transform_3(%arg0: i32) -> (i32, i32) {
    %c0_i32 = arith.constant 0 : i32
    %c0_i32_0 = arith.constant 0 : i32
    return %arg0, %c0_i32 : i32, i32
  }
}

module attributes {stable_mosaic.version = 11 : i64} {
  func.func @_self_attn_kernel(%arg0: i32, %arg1: i32, %arg2: memref<1x8x32xf32, #tpu.memory_space<vmem>>, %arg3: memref<32x32xf32, #tpu.memory_space<vmem>>, %arg4: memref<1x32xf32, #tpu.memory_space<vmem>>, %arg5: memref<1x8x64xf32, #tpu.memory_space<vmem>>, %arg6: memref<1x8x8xi32, #tpu.memory_space<vmem>>, %arg7: memref<1x8x32xf32, #tpu.memory_space<vmem>>) attributes {dimension_semantics = [#tpu.dimension_semantics<parallel>, #tpu.dimension_semantics<parallel>], iteration_bounds = array<i64: 2, 1>, scalar_prefetch = 0 : i64, scratch_operands = 0 : i64, tpu.core_type = #tpu.core_type<tc>, window_params = [{transform_indices = @transform_0, window_bounds = array<i64: 1, 8, 32>}, {pipeline_mode = #tpu.pipeline_mode<synchronous>, transform_indices = @transform_1, window_bounds = array<i64: 32, 32>}, {pipeline_mode = #tpu.pipeline_mode<synchronous>, transform_indices = @transform_2, window_bounds = array<i64: 1, 32>}, {transform_indices = @transform_3, window_bounds = array<i64: 1, 8, 64>}, {transform_indices = @transform_4, window_bounds = array<i64: 1, 8, 8>}, {transform_indices = @transform_5, window_bounds = array<i64: 1, 8, 32>}]} {
    %c0 = arith.constant 0 : index
    %c0_0 = arith.constant 0 : index
    %c0_1 = arith.constant 0 : index
    %0 = vector.load %arg2[%c0, %c0_0, %c0_1] : memref<1x8x32xf32, #tpu.memory_space<vmem>>, vector<1x8x32xf32>
    %1 = vector.shape_cast %0 : vector<1x8x32xf32> to vector<8x32xf32>
    %c0_2 = arith.constant 0 : index
    %c0_3 = arith.constant 0 : index
    %2 = vector.load %arg3[%c0_2, %c0_3] : memref<32x32xf32, #tpu.memory_space<vmem>>, vector<32x32xf32>
    %cst = arith.constant dense<0.000000e+00> : vector<8x32xf32>
    %3 = tpu.matmul %1, %2, %cst {dimension_numbers = #tpu.dot_dimension_numbers<[1], [0], [0], [1], [0, 0, 1, 1], [], []>} : vector<8x32xf32>, vector<32x32xf32>, vector<8x32xf32> -> vector<8x32xf32>
    %c0_4 = arith.constant 0 : index
    %c0_5 = arith.constant 0 : index
    %4 = vector.load %arg4[%c0_4, %c0_5] : memref<1x32xf32, #tpu.memory_space<vmem>>, vector<1x32xf32>
    %5 = vector.broadcast %4 : vector<1x32xf32> to vector<8x32xf32>
    %6 = arith.addf %3, %5 : vector<8x32xf32>
    %cst_6 = arith.constant 0.353553385 : f32
    %7 = vector.broadcast %cst_6 : f32 to vector<8x32xf32>
    %8 = arith.mulf %6, %7 : vector<8x32xf32>
    %c0_7 = arith.constant 0 : index
    %c0_8 = arith.constant 0 : index
    %c0_9 = arith.constant 0 : index
    %9 = vector.load %arg5[%c0_7, %c0_8, %c0_9] : memref<1x8x64xf32, #tpu.memory_space<vmem>>, vector<1x8x64xf32>
    %10 = vector.shape_cast %9 : vector<1x8x64xf32> to vector<8x64xf32>
    %c0_10 = arith.constant 0 : index
    %c0_11 = arith.constant 0 : index
    %c0_12 = arith.constant 0 : index
    %11 = vector.load %arg6[%c0_10, %c0_11, %c0_12] : memref<1x8x8xi32, #tpu.memory_space<vmem>>, vector<1x8x8xi32>
    %12 = vector.shape_cast %11 : vector<1x8x8xi32> to vector<8x8xi32>
    %c0_i32 = arith.constant 0 : i32
    %13 = vector.broadcast %c0_i32 : i32 to vector<8x8xi32>
    %14 = arith.cmpi ne, %12, %13 : vector<8x8xi32>
    %15 = vector.extract_strided_slice %8 {offsets = [0, 0], sizes = [8, 8], strides = [1, 1]} : vector<8x32xf32> to vector<8x8xf32>
    %16 = vector.extract_strided_slice %10 {offsets = [0, 0], sizes = [8, 8], strides = [1, 1]} : vector<8x64xf32> to vector<8x8xf32>
    %17 = vector.extract_strided_slice %10 {offsets = [0, 32], sizes = [8, 8], strides = [1, 1]} : vector<8x64xf32> to vector<8x8xf32>
    %cst_13 = arith.constant dense<0.000000e+00> : vector<8x8xf32>
    %18 = tpu.matmul %15, %16, %cst_13 {dimension_numbers = #tpu.dot_dimension_numbers<[1], [1], [0], [0], [0, 0, 1, 0], [], []>} : vector<8x8xf32>, vector<8x8xf32>, vector<8x8xf32> -> vector<8x8xf32>
    %cst_14 = arith.constant -1.000000e+10 : f32
    %19 = vector.broadcast %cst_14 : f32 to vector<8x8xf32>
    %20 = arith.select %14, %18, %19 : vector<8x8xi1>, vector<8x8xf32>
    %cst_15 = arith.constant dense<0xFF800000> : vector<8xf32>
    %21 = vector.multi_reduction <maximumf>, %20, %cst_15 [1] : vector<8x8xf32> to vector<8xf32>
    %22 = vector.shape_cast %21 : vector<8xf32> to vector<8x1xf32>
    %23 = vector.broadcast %22 : vector<8x1xf32> to vector<8x8xf32>
    %24 = arith.subf %20, %23 : vector<8x8xf32>
    %25 = math.exp %24 : vector<8x8xf32>
    %cst_16 = arith.constant dense<0.000000e+00> : vector<8xf32>
    %26 = vector.multi_reduction <add>, %25, %cst_16 [1] : vector<8x8xf32> to vector<8xf32>
    %27 = vector.shape_cast %26 : vector<8xf32> to vector<8x1xf32>
    %28 = tpu.reciprocal %27 {approx = true} : vector<8x1xf32> -> vector<8x1xf32>
    %29 = vector.broadcast %28 : vector<8x1xf32> to vector<8x8xf32>
    %30 = arith.mulf %25, %29 : vector<8x8xf32>
    %cst_17 = arith.constant dense<0.000000e+00> : vector<8x8xf32>
    %31 = tpu.matmul %30, %17, %cst_17 {dimension_numbers = #tpu.dot_dimension_numbers<[1], [0], [0], [1], [0, 0, 1, 1], [], []>} : vector<8x8xf32>, vector<8x8xf32>, vector<8x8xf32> -> vector<8x8xf32>
    %c0_18 = arith.constant 0 : index
    %c0_19 = arith.constant 0 : index
    %c0_20 = arith.constant 0 : index
    %32 = vector.load %arg7[%c0_18, %c0_19, %c0_20] : memref<1x8x32xf32, #tpu.memory_space<vmem>>, vector<1x8x8xf32>
    %33 = vector.shape_cast %32 : vector<1x8x8xf32> to vector<8x8xf32>
    %34 = vector.shape_cast %31 : vector<8x8xf32> to vector<1x8x8xf32>
    tpu.vector_store %arg7[%c0_18, %c0_19, %c0_20], %34 {strides = array<i32>} : memref<1x8x32xf32, #tpu.memory_space<vmem>>, vector<1x8x8xf32>,
    %35 = vector.extract_strided_slice %8 {offsets = [0, 8], sizes = [8, 8], strides = [1, 1]} : vector<8x32xf32> to vector<8x8xf32>
    %36 = vector.extract_strided_slice %10 {offsets = [0, 8], sizes = [8, 8], strides = [1, 1]} : vector<8x64xf32> to vector<8x8xf32>
    %37 = vector.extract_strided_slice %10 {offsets = [0, 40], sizes = [8, 8], strides = [1, 1]} : vector<8x64xf32> to vector<8x8xf32>
    %cst_21 = arith.constant dense<0.000000e+00> : vector<8x8xf32>
    %38 = tpu.matmul %35, %36, %cst_21 {dimension_numbers = #tpu.dot_dimension_numbers<[1], [1], [0], [0], [0, 0, 1, 0], [], []>} : vector<8x8xf32>, vector<8x8xf32>, vector<8x8xf32> -> vector<8x8xf32>
    %cst_22 = arith.constant -1.000000e+10 : f32
    %39 = vector.broadcast %cst_22 : f32 to vector<8x8xf32>
    %40 = arith.select %14, %38, %39 : vector<8x8xi1>, vector<8x8xf32>
    %cst_23 = arith.constant dense<0xFF800000> : vector<8xf32>
    %41 = vector.multi_reduction <maximumf>, %40, %cst_23 [1] : vector<8x8xf32> to vector<8xf32>
    %42 = vector.shape_cast %41 : vector<8xf32> to vector<8x1xf32>
    %43 = vector.broadcast %42 : vector<8x1xf32> to vector<8x8xf32>
    %44 = arith.subf %40, %43 : vector<8x8xf32>
    %45 = math.exp %44 : vector<8x8xf32>
    %cst_24 = arith.constant dense<0.000000e+00> : vector<8xf32>
    %46 = vector.multi_reduction <add>, %45, %cst_24 [1] : vector<8x8xf32> to vector<8xf32>
    %47 = vector.shape_cast %46 : vector<8xf32> to vector<8x1xf32>
    %48 = tpu.reciprocal %47 {approx = true} : vector<8x1xf32> -> vector<8x1xf32>
    %49 = vector.broadcast %48 : vector<8x1xf32> to vector<8x8xf32>
    %50 = arith.mulf %45, %49 : vector<8x8xf32>
    %cst_25 = arith.constant dense<0.000000e+00> : vector<8x8xf32>
    %51 = tpu.matmul %50, %37, %cst_25 {dimension_numbers = #tpu.dot_dimension_numbers<[1], [0], [0], [1], [0, 0, 1, 1], [], []>} : vector<8x8xf32>, vector<8x8xf32>, vector<8x8xf32> -> vector<8x8xf32>
    %c0_26 = arith.constant 0 : index
    %c0_27 = arith.constant 0 : index
    %c8 = arith.constant 8 : index
    %52 = vector.load %arg7[%c0_26, %c0_27, %c8] : memref<1x8x32xf32, #tpu.memory_space<vmem>>, vector<1x8x8xf32>
    %53 = vector.shape_cast %52 : vector<1x8x8xf32> to vector<8x8xf32>
    %54 = vector.shape_cast %51 : vector<8x8xf32> to vector<1x8x8xf32>
    tpu.vector_store %arg7[%c0_26, %c0_27, %c8], %54 {strides = array<i32>} : memref<1x8x32xf32, #tpu.memory_space<vmem>>, vector<1x8x8xf32>,
    %55 = vector.extract_strided_slice %8 {offsets = [0, 16], sizes = [8, 8], strides = [1, 1]} : vector<8x32xf32> to vector<8x8xf32>
    %56 = vector.extract_strided_slice %10 {offsets = [0, 16], sizes = [8, 8], strides = [1, 1]} : vector<8x64xf32> to vector<8x8xf32>
    %57 = vector.extract_strided_slice %10 {offsets = [0, 48], sizes = [8, 8], strides = [1, 1]} : vector<8x64xf32> to vector<8x8xf32>
    %cst_28 = arith.constant dense<0.000000e+00> : vector<8x8xf32>
    %58 = tpu.matmul %55, %56, %cst_28 {dimension_numbers = #tpu.dot_dimension_numbers<[1], [1], [0], [0], [0, 0, 1, 0], [], []>} : vector<8x8xf32>, vector<8x8xf32>, vector<8x8xf32> -> vector<8x8xf32>
    %cst_29 = arith.constant -1.000000e+10 : f32
    %59 = vector.broadcast %cst_29 : f32 to vector<8x8xf32>
    %60 = arith.select %14, %58, %59 : vector<8x8xi1>, vector<8x8xf32>
    %cst_30 = arith.constant dense<0xFF800000> : vector<8xf32>
    %61 = vector.multi_reduction <maximumf>, %60, %cst_30 [1] : vector<8x8xf32> to vector<8xf32>
    %62 = vector.shape_cast %61 : vector<8xf32> to vector<8x1xf32>
    %63 = vector.broadcast %62 : vector<8x1xf32> to vector<8x8xf32>
    %64 = arith.subf %60, %63 : vector<8x8xf32>
    %65 = math.exp %64 : vector<8x8xf32>
    %cst_31 = arith.constant dense<0.000000e+00> : vector<8xf32>
    %66 = vector.multi_reduction <add>, %65, %cst_31 [1] : vector<8x8xf32> to vector<8xf32>
    %67 = vector.shape_cast %66 : vector<8xf32> to vector<8x1xf32>
    %68 = tpu.reciprocal %67 {approx = true} : vector<8x1xf32> -> vector<8x1xf32>
    %69 = vector.broadcast %68 : vector<8x1xf32> to vector<8x8xf32>
    %70 = arith.mulf %65, %69 : vector<8x8xf32>
    %cst_32 = arith.constant dense<0.000000e+00> : vector<8x8xf32>
    %71 = tpu.matmul %70, %57, %cst_32 {dimension_numbers = #tpu.dot_dimension_numbers<[1], [0], [0], [1], [0, 0, 1, 1], [], []>} : vector<8x8xf32>, vector<8x8xf32>, vector<8x8xf32> -> vector<8x8xf32>
    %c0_33 = arith.constant 0 : index
    %c0_34 = arith.constant 0 : index
    %c16 = arith.constant 16 : index
    %72 = vector.load %arg7[%c0_33, %c0_34, %c16] : memref<1x8x32xf32, #tpu.memory_space<vmem>>, vector<1x8x8xf32>
    %73 = vector.shape_cast %72 : vector<1x8x8xf32> to vector<8x8xf32>
    %74 = vector.shape_cast %71 : vector<8x8xf32> to vector<1x8x8xf32>
    tpu.vector_store %arg7[%c0_33, %c0_34, %c16], %74 {strides = array<i32>} : memref<1x8x32xf32, #tpu.memory_space<vmem>>, vector<1x8x8xf32>,
    %75 = vector.extract_strided_slice %8 {offsets = [0, 24], sizes = [8, 8], strides = [1, 1]} : vector<8x32xf32> to vector<8x8xf32>
    %76 = vector.extract_strided_slice %10 {offsets = [0, 24], sizes = [8, 8], strides = [1, 1]} : vector<8x64xf32> to vector<8x8xf32>
    %77 = vector.extract_strided_slice %10 {offsets = [0, 56], sizes = [8, 8], strides = [1, 1]} : vector<8x64xf32> to vector<8x8xf32>
    %cst_35 = arith.constant dense<0.000000e+00> : vector<8x8xf32>
    %78 = tpu.matmul %75, %76, %cst_35 {dimension_numbers = #tpu.dot_dimension_numbers<[1], [1], [0], [0], [0, 0, 1, 0], [], []>} : vector<8x8xf32>, vector<8x8xf32>, vector<8x8xf32> -> vector<8x8xf32>
    %cst_36 = arith.constant -1.000000e+10 : f32
    %79 = vector.broadcast %cst_36 : f32 to vector<8x8xf32>
    %80 = arith.select %14, %78, %79 : vector<8x8xi1>, vector<8x8xf32>
    %cst_37 = arith.constant dense<0xFF800000> : vector<8xf32>
    %81 = vector.multi_reduction <maximumf>, %80, %cst_37 [1] : vector<8x8xf32> to vector<8xf32>
    %82 = vector.shape_cast %81 : vector<8xf32> to vector<8x1xf32>
    %83 = vector.broadcast %82 : vector<8x1xf32> to vector<8x8xf32>
    %84 = arith.subf %80, %83 : vector<8x8xf32>
    %85 = math.exp %84 : vector<8x8xf32>
    %cst_38 = arith.constant dense<0.000000e+00> : vector<8xf32>
    %86 = vector.multi_reduction <add>, %85, %cst_38 [1] : vector<8x8xf32> to vector<8xf32>
    %87 = vector.shape_cast %86 : vector<8xf32> to vector<8x1xf32>
    %88 = tpu.reciprocal %87 {approx = true} : vector<8x1xf32> -> vector<8x1xf32>
    %89 = vector.broadcast %88 : vector<8x1xf32> to vector<8x8xf32>
    %90 = arith.mulf %85, %89 : vector<8x8xf32>
    %cst_39 = arith.constant dense<0.000000e+00> : vector<8x8xf32>
    %91 = tpu.matmul %90, %77, %cst_39 {dimension_numbers = #tpu.dot_dimension_numbers<[1], [0], [0], [1], [0, 0, 1, 1], [], []>} : vector<8x8xf32>, vector<8x8xf32>, vector<8x8xf32> -> vector<8x8xf32>
    %c0_40 = arith.constant 0 : index
    %c0_41 = arith.constant 0 : index
    %c24 = arith.constant 24 : index
    %92 = vector.load %arg7[%c0_40, %c0_41, %c24] : memref<1x8x32xf32, #tpu.memory_space<vmem>>, vector<1x8x8xf32>
    %93 = vector.shape_cast %92 : vector<1x8x8xf32> to vector<8x8xf32>
    %94 = vector.shape_cast %91 : vector<8x8xf32> to vector<1x8x8xf32>
    tpu.vector_store %arg7[%c0_40, %c0_41, %c24], %94 {strides = array<i32>} : memref<1x8x32xf32, #tpu.memory_space<vmem>>, vector<1x8x8xf32>,
    return
  }
  func.func @transform_0(%arg0: i32, %arg1: i32) -> (i32, i32, i32) {
    %c0_i32 = arith.constant 0 : i32
    %c0_i32_0 = arith.constant 0 : i32
    return %arg0, %arg1, %c0_i32 : i32, i32, i32
  }
  func.func @transform_1(%arg0: i32, %arg1: i32) -> (i32, i32) {
    %c0_i32 = arith.constant 0 : i32
    %c0_i32_0 = arith.constant 0 : i32
    %c0_i32_1 = arith.constant 0 : i32
    return %c0_i32, %c0_i32_0 : i32, i32
  }
  func.func @transform_2(%arg0: i32, %arg1: i32) -> (i32, i32) {
    %c0_i32 = arith.constant 0 : i32
    %c0_i32_0 = arith.constant 0 : i32
    %c0_i32_1 = arith.constant 0 : i32
    return %c0_i32, %c0_i32_0 : i32, i32
  }
  func.func @transform_3(%arg0: i32, %arg1: i32) -> (i32, i32, i32) {
    %c0_i32 = arith.constant 0 : i32
    %c0_i32_0 = arith.constant 0 : i32
    %c0_i32_1 = arith.constant 0 : i32
    return %arg0, %c0_i32, %c0_i32_0 : i32, i32, i32
  }
  func.func @transform_4(%arg0: i32, %arg1: i32) -> (i32, i32, i32) {
    %c0_i32 = arith.constant 0 : i32
    %c0_i32_0 = arith.constant 0 : i32
    return %arg0, %arg1, %c0_i32 : i32, i32, i32
  }
  func.func @transform_5(%arg0: i32, %arg1: i32) -> (i32, i32, i32) {
    %c0_i32 = arith.constant 0 : i32
    %c0_i32_0 = arith.constant 0 : i32
    return %arg0, %arg1, %c0_i32 : i32, i32, i32
  }
}

module attributes {stable_mosaic.version = 11 : i64} {
  func.func @_ffn_add_ln_resident_kernel(%arg0: i32, %arg1: memref<16x32xf32, #tpu.memory_space<vmem>>, %arg2: memref<32x64xf32, #tpu.memory_space<vmem>>, %arg3: memref<1x64xf32, #tpu.memory_space<vmem>>, %arg4: memref<64x32xf32, #tpu.memory_space<vmem>>, %arg5: memref<1x32xf32, #tpu.memory_space<vmem>>, %arg6: memref<1x32xf32, #tpu.memory_space<vmem>>, %arg7: memref<1x32xf32, #tpu.memory_space<vmem>>, %arg8: memref<16x32xf32, #tpu.memory_space<vmem>>) attributes {dimension_semantics = [#tpu.dimension_semantics<parallel>], iteration_bounds = array<i64: 1>, scalar_prefetch = 0 : i64, scratch_operands = 0 : i64, tpu.core_type = #tpu.core_type<tc>, window_params = [{transform_indices = @transform_0, window_bounds = array<i64: 16, 32>}, {pipeline_mode = #tpu.pipeline_mode<synchronous>, transform_indices = @transform_1, window_bounds = array<i64: 32, 64>}, {pipeline_mode = #tpu.pipeline_mode<synchronous>, transform_indices = @transform_2, window_bounds = array<i64: 1, 64>}, {pipeline_mode = #tpu.pipeline_mode<synchronous>, transform_indices = @transform_3, window_bounds = array<i64: 64, 32>}, {pipeline_mode = #tpu.pipeline_mode<synchronous>, transform_indices = @transform_4, window_bounds = array<i64: 1, 32>}, {pipeline_mode = #tpu.pipeline_mode<synchronous>, transform_indices = @transform_5, window_bounds = array<i64: 1, 32>}, {pipeline_mode = #tpu.pipeline_mode<synchronous>, transform_indices = @transform_6, window_bounds = array<i64: 1, 32>}, {transform_indices = @transform_7, window_bounds = array<i64: 16, 32>}]} {
    %c0 = arith.constant 0 : index
    %c0_0 = arith.constant 0 : index
    %0 = vector.load %arg1[%c0, %c0_0] : memref<16x32xf32, #tpu.memory_space<vmem>>, vector<16x32xf32>
    %c0_1 = arith.constant 0 : index
    %c0_2 = arith.constant 0 : index
    %1 = vector.load %arg2[%c0_1, %c0_2] : memref<32x64xf32, #tpu.memory_space<vmem>>, vector<32x64xf32>
    %cst = arith.constant dense<0.000000e+00> : vector<16x64xf32>
    %2 = tpu.matmul %0, %1, %cst {dimension_numbers = #tpu.dot_dimension_numbers<[1], [0], [0], [1], [0, 0, 1, 1], [], []>} : vector<16x32xf32>, vector<32x64xf32>, vector<16x64xf32> -> vector<16x64xf32>
    %c0_3 = arith.constant 0 : index
    %c0_4 = arith.constant 0 : index
    %3 = vector.load %arg3[%c0_3, %c0_4] : memref<1x64xf32, #tpu.memory_space<vmem>>, vector<1x64xf32>
    %4 = vector.broadcast %3 : vector<1x64xf32> to vector<16x64xf32>
    %5 = arith.addf %2, %4 : vector<16x64xf32>
    %cst_5 = arith.constant 0.000000e+00 : f32
    %6 = vector.broadcast %cst_5 : f32 to vector<16x64xf32>
    %7 = arith.maximumf %5, %6 : vector<16x64xf32>
    %c0_6 = arith.constant 0 : index
    %c0_7 = arith.constant 0 : index
    %8 = vector.load %arg4[%c0_6, %c0_7] : memref<64x32xf32, #tpu.memory_space<vmem>>, vector<64x32xf32>
    %cst_8 = arith.constant dense<0.000000e+00> : vector<16x32xf32>
    %9 = tpu.matmul %7, %8, %cst_8 {dimension_numbers = #tpu.dot_dimension_numbers<[1], [0], [0], [1], [0, 0, 1, 1], [], []>} : vector<16x64xf32>, vector<64x32xf32>, vector<16x32xf32> -> vector<16x32xf32>
    %c0_9 = arith.constant 0 : index
    %c0_10 = arith.constant 0 : index
    %10 = vector.load %arg5[%c0_9, %c0_10] : memref<1x32xf32, #tpu.memory_space<vmem>>, vector<1x32xf32>
    %11 = vector.broadcast %10 : vector<1x32xf32> to vector<16x32xf32>
    %12 = arith.addf %9, %11 : vector<16x32xf32>
    %13 = arith.addf %0, %12 : vector<16x32xf32>
    %cst_11 = arith.constant dense<0.000000e+00> : vector<16xf32>
    %14 = vector.multi_reduction <add>, %13, %cst_11 [1] : vector<16x32xf32> to vector<16xf32>
    %15 = vector.shape_cast %14 : vector<16xf32> to vector<16x1xf32>
    %cst_12 = arith.constant 3.200000e+01 : f32
    %16 = vector.broadcast %cst_12 : f32 to vector<16x1xf32>
    %17 = arith.divf %15, %16 : vector<16x1xf32>
    %18 = vector.broadcast %17 : vector<16x1xf32> to vector<16x32xf32>
    %19 = arith.subf %13, %18 : vector<16x32xf32>
    %20 = arith.mulf %19, %19 : vector<16x32xf32>
    %cst_13 = arith.constant dense<0.000000e+00> : vector<16xf32>
    %21 = vector.multi_reduction <add>, %20, %cst_13 [1] : vector<16x32xf32> to vector<16xf32>
    %22 = vector.shape_cast %21 : vector<16xf32> to vector<16x1xf32>
    %cst_14 = arith.constant 3.200000e+01 : f32
    %23 = vector.broadcast %cst_14 : f32 to vector<16x1xf32>
    %24 = arith.divf %22, %23 : vector<16x1xf32>
    %25 = vector.broadcast %17 : vector<16x1xf32> to vector<16x32xf32>
    %26 = arith.subf %13, %25 : vector<16x32xf32>
    %cst_15 = arith.constant 9.99999974E-6 : f32
    %27 = vector.broadcast %cst_15 : f32 to vector<16x1xf32>
    %28 = arith.addf %24, %27 : vector<16x1xf32>
    %29 = math.rsqrt %28 : vector<16x1xf32>
    %30 = vector.broadcast %29 : vector<16x1xf32> to vector<16x32xf32>
    %31 = arith.mulf %26, %30 : vector<16x32xf32>
    %c0_16 = arith.constant 0 : index
    %c0_17 = arith.constant 0 : index
    %32 = vector.load %arg6[%c0_16, %c0_17] : memref<1x32xf32, #tpu.memory_space<vmem>>, vector<1x32xf32>
    %33 = vector.broadcast %32 : vector<1x32xf32> to vector<16x32xf32>
    %34 = arith.mulf %31, %33 : vector<16x32xf32>
    %c0_18 = arith.constant 0 : index
    %c0_19 = arith.constant 0 : index
    %35 = vector.load %arg7[%c0_18, %c0_19] : memref<1x32xf32, #tpu.memory_space<vmem>>, vector<1x32xf32>
    %36 = vector.broadcast %35 : vector<1x32xf32> to vector<16x32xf32>
    %37 = arith.addf %34, %36 : vector<16x32xf32>
    %c0_20 = arith.constant 0 : index
    %c0_21 = arith.constant 0 : index
    %38 = vector.load %arg8[%c0_20, %c0_21] : memref<16x32xf32, #tpu.memory_space<vmem>>, vector<16x32xf32>
    tpu.vector_store %arg8[%c0_20, %c0_21], %37 {strides = array<i32>} : memref<16x32xf32, #tpu.memory_space<vmem>>, vector<16x32xf32>,
    return
  }
  func.func @transform_0(%arg0: i32) -> (i32, i32) {
    %c0_i32 = arith.constant 0 : i32
    %c0_i32_0 = arith.constant 0 : i32
    return %arg0, %c0_i32 : i32, i32
  }
  func.func @transform_1(%arg0: i32) -> (i32, i32) {
    %c0_i32 = arith.constant 0 : i32
    %c0_i32_0 = arith.constant 0 : i32
    %c0_i32_1 = arith.constant 0 : i32
    return %c0_i32, %c0_i32_0 : i32, i32
  }
  func.func @transform_2(%arg0: i32) -> (i32, i32) {
    %c0_i32 = arith.constant 0 : i32
    %c0_i32_0 = arith.constant 0 : i32
    %c0_i32_1 = arith.constant 0 : i32
    return %c0_i32, %c0_i32_0 : i32, i32
  }
  func.func @transform_3(%arg0: i32) -> (i32, i32) {
    %c0_i32 = arith.constant 0 : i32
    %c0_i32_0 = arith.constant 0 : i32
    %c0_i32_1 = arith.constant 0 : i32
    return %c0_i32, %c0_i32_0 : i32, i32
  }
  func.func @transform_4(%arg0: i32) -> (i32, i32) {
    %c0_i32 = arith.constant 0 : i32
    %c0_i32_0 = arith.constant 0 : i32
    %c0_i32_1 = arith.constant 0 : i32
    return %c0_i32, %c0_i32_0 : i32, i32
  }
  func.func @transform_5(%arg0: i32) -> (i32, i32) {
    %c0_i32 = arith.constant 0 : i32
    %c0_i32_0 = arith.constant 0 : i32
    %c0_i32_1 = arith.constant 0 : i32
    return %c0_i32, %c0_i32_0 : i32, i32
  }
  func.func @transform_6(%arg0: i32) -> (i32, i32) {
    %c0_i32 = arith.constant 0 : i32
    %c0_i32_0 = arith.constant 0 : i32
    %c0_i32_1 = arith.constant 0 : i32
    return %c0_i32, %c0_i32_0 : i32, i32
  }
  func.func @transform_7(%arg0: i32) -> (i32, i32) {
    %c0_i32 = arith.constant 0 : i32
    %c0_i32_0 = arith.constant 0 : i32
    return %arg0, %c0_i32 : i32, i32
  }
}

module attributes {stable_mosaic.version = 11 : i64} {
  func.func @_cross_attn_kernel(%arg0: i32, %arg1: i32, %arg2: memref<1x8x32xf32, #tpu.memory_space<vmem>>, %arg3: memref<32x32xf32, #tpu.memory_space<vmem>>, %arg4: memref<1x32xf32, #tpu.memory_space<vmem>>, %arg5: memref<1x16x64xf32, #tpu.memory_space<vmem>>, %arg6: memref<1x1x16xi32, #tpu.memory_space<vmem>>, %arg7: memref<1x8x32xf32, #tpu.memory_space<vmem>>, %arg8: memref<1x4x8x16xf32, #tpu.memory_space<vmem>>) attributes {dimension_semantics = [#tpu.dimension_semantics<parallel>, #tpu.dimension_semantics<parallel>], iteration_bounds = array<i64: 2, 1>, scalar_prefetch = 0 : i64, scratch_operands = 0 : i64, tpu.core_type = #tpu.core_type<tc>, window_params = [{transform_indices = @transform_0, window_bounds = array<i64: 1, 8, 32>}, {pipeline_mode = #tpu.pipeline_mode<synchronous>, transform_indices = @transform_1, window_bounds = array<i64: 32, 32>}, {pipeline_mode = #tpu.pipeline_mode<synchronous>, transform_indices = @transform_2, window_bounds = array<i64: 1, 32>}, {transform_indices = @transform_3, window_bounds = array<i64: 1, 16, 64>}, {transform_indices = @transform_4, window_bounds = array<i64: 1, 1, 16>}, {transform_indices = @transform_5, window_bounds = array<i64: 1, 8, 32>}, {transform_indices = @transform_6, window_bounds = array<i64: 1, 4, 8, 16>}]} {
    %c0 = arith.constant 0 : index
    %c0_0 = arith.constant 0 : index
    %c0_1 = arith.constant 0 : index
    %0 = vector.load %arg2[%c0, %c0_0, %c0_1] : memref<1x8x32xf32, #tpu.memory_space<vmem>>, vector<1x8x32xf32>
    %1 = vector.shape_cast %0 : vector<1x8x32xf32> to vector<8x32xf32>
    %c0_2 = arith.constant 0 : index
    %c0_3 = arith.constant 0 : index
    %2 = vector.load %arg3[%c0_2, %c0_3] : memref<32x32xf32, #tpu.memory_space<vmem>>, vector<32x32xf32>
    %cst = arith.constant dense<0.000000e+00> : vector<8x32xf32>
    %3 = tpu.matmul %1, %2, %cst {dimension_numbers = #tpu.dot_dimension_numbers<[1], [0], [0], [1], [0, 0, 1, 1], [], []>} : vector<8x32xf32>, vector<32x32xf32>, vector<8x32xf32> -> vector<8x32xf32>
    %c0_4 = arith.constant 0 : index
    %c0_5 = arith.constant 0 : index
    %4 = vector.load %arg4[%c0_4, %c0_5] : memref<1x32xf32, #tpu.memory_space<vmem>>, vector<1x32xf32>
    %5 = vector.broadcast %4 : vector<1x32xf32> to vector<8x32xf32>
    %6 = arith.addf %3, %5 : vector<8x32xf32>
    %cst_6 = arith.constant 0.353553385 : f32
    %7 = vector.broadcast %cst_6 : f32 to vector<8x32xf32>
    %8 = arith.mulf %6, %7 : vector<8x32xf32>
    %c0_7 = arith.constant 0 : index
    %c0_8 = arith.constant 0 : index
    %c0_9 = arith.constant 0 : index
    %9 = vector.load %arg5[%c0_7, %c0_8, %c0_9] : memref<1x16x64xf32, #tpu.memory_space<vmem>>, vector<1x16x64xf32>
    %10 = vector.shape_cast %9 : vector<1x16x64xf32> to vector<16x64xf32>
    %c0_10 = arith.constant 0 : index
    %c0_11 = arith.constant 0 : index
    %c0_12 = arith.constant 0 : index
    %11 = vector.load %arg6[%c0_10, %c0_11, %c0_12] : memref<1x1x16xi32, #tpu.memory_space<vmem>>, vector<1x1x16xi32>
    %12 = vector.shape_cast %11 : vector<1x1x16xi32> to vector<1x16xi32>
    %c0_i32 = arith.constant 0 : i32
    %13 = vector.broadcast %c0_i32 : i32 to vector<1x16xi32>
    %14 = arith.cmpi ne, %12, %13 : vector<1x16xi32>
    %15 = vector.extract_strided_slice %8 {offsets = [0, 0], sizes = [8, 8], strides = [1, 1]} : vector<8x32xf32> to vector<8x8xf32>
    %16 = vector.extract_strided_slice %10 {offsets = [0, 0], sizes = [16, 8], strides = [1, 1]} : vector<16x64xf32> to vector<16x8xf32>
    %17 = vector.extract_strided_slice %10 {offsets = [0, 32], sizes = [16, 8], strides = [1, 1]} : vector<16x64xf32> to vector<16x8xf32>
    %cst_13 = arith.constant dense<0.000000e+00> : vector<8x16xf32>
    %18 = tpu.matmul %15, %16, %cst_13 {dimension_numbers = #tpu.dot_dimension_numbers<[1], [1], [0], [0], [0, 0, 1, 0], [], []>} : vector<8x8xf32>, vector<16x8xf32>, vector<8x16xf32> -> vector<8x16xf32>
    %cst_14 = arith.constant -1.000000e+10 : f32
    %19 = vector.shape_cast %14 : vector<1x16xi1> to vector<1x16xi1>
    %20 = vector.broadcast %19 : vector<1x16xi1> to vector<8x16xi1>
    %21 = vector.broadcast %cst_14 : f32 to vector<8x16xf32>
    %22 = arith.select %20, %18, %21 : vector<8x16xi1>, vector<8x16xf32>
    %cst_15 = arith.constant dense<0xFF800000> : vector<8xf32>
    %23 = vector.multi_reduction <maximumf>, %22, %cst_15 [1] : vector<8x16xf32> to vector<8xf32>
    %24 = vector.shape_cast %23 : vector<8xf32> to vector<8x1xf32>
    %25 = vector.broadcast %24 : vector<8x1xf32> to vector<8x16xf32>
    %26 = arith.subf %22, %25 : vector<8x16xf32>
    %27 = math.exp %26 : vector<8x16xf32>
    %cst_16 = arith.constant dense<0.000000e+00> : vector<8xf32>
    %28 = vector.multi_reduction <add>, %27, %cst_16 [1] : vector<8x16xf32> to vector<8xf32>
    %29 = vector.shape_cast %28 : vector<8xf32> to vector<8x1xf32>
    %30 = tpu.reciprocal %29 : vector<8x1xf32> -> vector<8x1xf32>
    %31 = vector.broadcast %30 : vector<8x1xf32> to vector<8x16xf32>
    %32 = arith.mulf %27, %31 : vector<8x16xf32>
    %c0_17 = arith.constant 0 : index
    %c0_18 = arith.constant 0 : index
    %c0_19 = arith.constant 0 : index
    %c0_20 = arith.constant 0 : index
    %33 = vector.load %arg8[%c0_17, %c0_18, %c0_19, %c0_20] : memref<1x4x8x16xf32, #tpu.memory_space<vmem>>, vector<1x1x8x16xf32>
    %34 = vector.shape_cast %33 : vector<1x1x8x16xf32> to vector<8x16xf32>
    %35 = vector.shape_cast %32 : vector<8x16xf32> to vector<1x1x8x16xf32>
    tpu.vector_store %arg8[%c0_17, %c0_18, %c0_19, %c0_20], %35 {strides = array<i32>} : memref<1x4x8x16xf32, #tpu.memory_space<vmem>>, vector<1x1x8x16xf32>,
    %cst_21 = arith.constant dense<0.000000e+00> : vector<8x8xf32>
    %36 = tpu.matmul %32, %17, %cst_21 {dimension_numbers = #tpu.dot_dimension_numbers<[1], [0], [0], [1], [0, 0, 1, 1], [], []>} : vector<8x16xf32>, vector<16x8xf32>, vector<8x8xf32> -> vector<8x8xf32>
    %c0_22 = arith.constant 0 : index
    %c0_23 = arith.constant 0 : index
    %c0_24 = arith.constant 0 : index
    %37 = vector.load %arg7[%c0_22, %c0_23, %c0_24] : memref<1x8x32xf32, #tpu.memory_space<vmem>>, vector<1x8x8xf32>
    %38 = vector.shape_cast %37 : vector<1x8x8xf32> to vector<8x8xf32>
    %39 = vector.shape_cast %36 : vector<8x8xf32> to vector<1x8x8xf32>
    tpu.vector_store %arg7[%c0_22, %c0_23, %c0_24], %39 {strides = array<i32>} : memref<1x8x32xf32, #tpu.memory_space<vmem>>, vector<1x8x8xf32>,
    %40 = vector.extract_strided_slice %8 {offsets = [0, 8], sizes = [8, 8], strides = [1, 1]} : vector<8x32xf32> to vector<8x8xf32>
    %41 = vector.extract_strided_slice %10 {offsets = [0, 8], sizes = [16, 8], strides = [1, 1]} : vector<16x64xf32> to vector<16x8xf32>
    %42 = vector.extract_strided_slice %10 {offsets = [0, 40], sizes = [16, 8], strides = [1, 1]} : vector<16x64xf32> to vector<16x8xf32>
    %cst_25 = arith.constant dense<0.000000e+00> : vector<8x16xf32>
    %43 = tpu.matmul %40, %41, %cst_25 {dimension_numbers = #tpu.dot_dimension_numbers<[1], [1], [0], [0], [0, 0, 1, 0], [], []>} : vector<8x8xf32>, vector<16x8xf32>, vector<8x16xf32> -> vector<8x16xf32>
    %cst_26 = arith.constant -1.000000e+10 : f32
    %44 = vector.shape_cast %14 : vector<1x16xi1> to vector<1x16xi1>
    %45 = vector.broadcast %44 : vector<1x16xi1> to vector<8x16xi1>
    %46 = vector.broadcast %cst_26 : f32 to vector<8x16xf32>
    %47 = arith.select %45, %43, %46 : vector<8x16xi1>, vector<8x16xf32>
    %cst_27 = arith.constant dense<0xFF800000> : vector<8xf32>
    %48 = vector.multi_reduction <maximumf>, %47, %cst_27 [1] : vector<8x16xf32> to vector<8xf32>
    %49 = vector.shape_cast %48 : vector<8xf32> to vector<8x1xf32>
    %50 = vector.broadcast %49 : vector<8x1xf32> to vector<8x16xf32>
    %51 = arith.subf %47, %50 : vector<8x16xf32>
    %52 = math.exp %51 : vector<8x16xf32>
    %cst_28 = arith.constant dense<0.000000e+00> : vector<8xf32>
    %53 = vector.multi_reduction <add>, %52, %cst_28 [1] : vector<8x16xf32> to vector<8xf32>
    %54 = vector.shape_cast %53 : vector<8xf32> to vector<8x1xf32>
    %55 = tpu.reciprocal %54 : vector<8x1xf32> -> vector<8x1xf32>
    %56 = vector.broadcast %55 : vector<8x1xf32> to vector<8x16xf32>
    %57 = arith.mulf %52, %56 : vector<8x16xf32>
    %c0_29 = arith.constant 0 : index
    %c1 = arith.constant 1 : index
    %c0_30 = arith.constant 0 : index
    %c0_31 = arith.constant 0 : index
    %58 = vector.load %arg8[%c0_29, %c1, %c0_30, %c0_31] : memref<1x4x8x16xf32, #tpu.memory_space<vmem>>, vector<1x1x8x16xf32>
    %59 = vector.shape_cast %58 : vector<1x1x8x16xf32> to vector<8x16xf32>
    %60 = vector.shape_cast %57 : vector<8x16xf32> to vector<1x1x8x16xf32>
    tpu.vector_store %arg8[%c0_29, %c1, %c0_30, %c0_31], %60 {strides = array<i32>} : memref<1x4x8x16xf32, #tpu.memory_space<vmem>>, vector<1x1x8x16xf32>,
    %cst_32 = arith.constant dense<0.000000e+00> : vector<8x8xf32>
    %61 = tpu.matmul %57, %42, %cst_32 {dimension_numbers = #tpu.dot_dimension_numbers<[1], [0], [0], [1], [0, 0, 1, 1], [], []>} : vector<8x16xf32>, vector<16x8xf32>, vector<8x8xf32> -> vector<8x8xf32>
    %c0_33 = arith.constant 0 : index
    %c0_34 = arith.constant 0 : index
    %c8 = arith.constant 8 : index
    %62 = vector.load %arg7[%c0_33, %c0_34, %c8] : memref<1x8x32xf32, #tpu.memory_space<vmem>>, vector<1x8x8xf32>
    %63 = vector.shape_cast %62 : vector<1x8x8xf32> to vector<8x8xf32>
    %64 = vector.shape_cast %61 : vector<8x8xf32> to vector<1x8x8xf32>
    tpu.vector_store %arg7[%c0_33, %c0_34, %c8], %64 {strides = array<i32>} : memref<1x8x32xf32, #tpu.memory_space<vmem>>, vector<1x8x8xf32>,
    %65 = vector.extract_strided_slice %8 {offsets = [0, 16], sizes = [8, 8], strides = [1, 1]} : vector<8x32xf32> to vector<8x8xf32>
    %66 = vector.extract_strided_slice %10 {offsets = [0, 16], sizes = [16, 8], strides = [1, 1]} : vector<16x64xf32> to vector<16x8xf32>
    %67 = vector.extract_strided_slice %10 {offsets = [0, 48], sizes = [16, 8], strides = [1, 1]} : vector<16x64xf32> to vector<16x8xf32>
    %cst_35 = arith.constant dense<0.000000e+00> : vector<8x16xf32>
    %68 = tpu.matmul %65, %66, %cst_35 {dimension_numbers = #tpu.dot_dimension_numbers<[1], [1], [0], [0], [0, 0, 1, 0], [], []>} : vector<8x8xf32>, vector<16x8xf32>, vector<8x16xf32> -> vector<8x16xf32>
    %cst_36 = arith.constant -1.000000e+10 : f32
    %69 = vector.shape_cast %14 : vector<1x16xi1> to vector<1x16xi1>
    %70 = vector.broadcast %69 : vector<1x16xi1> to vector<8x16xi1>
    %71 = vector.broadcast %cst_36 : f32 to vector<8x16xf32>
    %72 = arith.select %70, %68, %71 : vector<8x16xi1>, vector<8x16xf32>
    %cst_37 = arith.constant dense<0xFF800000> : vector<8xf32>
    %73 = vector.multi_reduction <maximumf>, %72, %cst_37 [1] : vector<8x16xf32> to vector<8xf32>
    %74 = vector.shape_cast %73 : vector<8xf32> to vector<8x1xf32>
    %75 = vector.broadcast %74 : vector<8x1xf32> to vector<8x16xf32>
    %76 = arith.subf %72, %75 : vector<8x16xf32>
    %77 = math.exp %76 : vector<8x16xf32>
    %cst_38 = arith.constant dense<0.000000e+00> : vector<8xf32>
    %78 = vector.multi_reduction <add>, %77, %cst_38 [1] : vector<8x16xf32> to vector<8xf32>
    %79 = vector.shape_cast %78 : vector<8xf32> to vector<8x1xf32>
    %80 = tpu.reciprocal %79 : vector<8x1xf32> -> vector<8x1xf32>
    %81 = vector.broadcast %80 : vector<8x1xf32> to vector<8x16xf32>
    %82 = arith.mulf %77, %81 : vector<8x16xf32>
    %c0_39 = arith.constant 0 : index
    %c2 = arith.constant 2 : index
    %c0_40 = arith.constant 0 : index
    %c0_41 = arith.constant 0 : index
    %83 = vector.load %arg8[%c0_39, %c2, %c0_40, %c0_41] : memref<1x4x8x16xf32, #tpu.memory_space<vmem>>, vector<1x1x8x16xf32>
    %84 = vector.shape_cast %83 : vector<1x1x8x16xf32> to vector<8x16xf32>
    %85 = vector.shape_cast %82 : vector<8x16xf32> to vector<1x1x8x16xf32>
    tpu.vector_store %arg8[%c0_39, %c2, %c0_40, %c0_41], %85 {strides = array<i32>} : memref<1x4x8x16xf32, #tpu.memory_space<vmem>>, vector<1x1x8x16xf32>,
    %cst_42 = arith.constant dense<0.000000e+00> : vector<8x8xf32>
    %86 = tpu.matmul %82, %67, %cst_42 {dimension_numbers = #tpu.dot_dimension_numbers<[1], [0], [0], [1], [0, 0, 1, 1], [], []>} : vector<8x16xf32>, vector<16x8xf32>, vector<8x8xf32> -> vector<8x8xf32>
    %c0_43 = arith.constant 0 : index
    %c0_44 = arith.constant 0 : index
    %c16 = arith.constant 16 : index
    %87 = vector.load %arg7[%c0_43, %c0_44, %c16] : memref<1x8x32xf32, #tpu.memory_space<vmem>>, vector<1x8x8xf32>
    %88 = vector.shape_cast %87 : vector<1x8x8xf32> to vector<8x8xf32>
    %89 = vector.shape_cast %86 : vector<8x8xf32> to vector<1x8x8xf32>
    tpu.vector_store %arg7[%c0_43, %c0_44, %c16], %89 {strides = array<i32>} : memref<1x8x32xf32, #tpu.memory_space<vmem>>, vector<1x8x8xf32>,
    %90 = vector.extract_strided_slice %8 {offsets = [0, 24], sizes = [8, 8], strides = [1, 1]} : vector<8x32xf32> to vector<8x8xf32>
    %91 = vector.extract_strided_slice %10 {offsets = [0, 24], sizes = [16, 8], strides = [1, 1]} : vector<16x64xf32> to vector<16x8xf32>
    %92 = vector.extract_strided_slice %10 {offsets = [0, 56], sizes = [16, 8], strides = [1, 1]} : vector<16x64xf32> to vector<16x8xf32>
    %cst_45 = arith.constant dense<0.000000e+00> : vector<8x16xf32>
    %93 = tpu.matmul %90, %91, %cst_45 {dimension_numbers = #tpu.dot_dimension_numbers<[1], [1], [0], [0], [0, 0, 1, 0], [], []>} : vector<8x8xf32>, vector<16x8xf32>, vector<8x16xf32> -> vector<8x16xf32>
    %cst_46 = arith.constant -1.000000e+10 : f32
    %94 = vector.shape_cast %14 : vector<1x16xi1> to vector<1x16xi1>
    %95 = vector.broadcast %94 : vector<1x16xi1> to vector<8x16xi1>
    %96 = vector.broadcast %cst_46 : f32 to vector<8x16xf32>
    %97 = arith.select %95, %93, %96 : vector<8x16xi1>, vector<8x16xf32>
    %cst_47 = arith.constant dense<0xFF800000> : vector<8xf32>
    %98 = vector.multi_reduction <maximumf>, %97, %cst_47 [1] : vector<8x16xf32> to vector<8xf32>
    %99 = vector.shape_cast %98 : vector<8xf32> to vector<8x1xf32>
    %100 = vector.broadcast %99 : vector<8x1xf32> to vector<8x16xf32>
    %101 = arith.subf %97, %100 : vector<8x16xf32>
    %102 = math.exp %101 : vector<8x16xf32>
    %cst_48 = arith.constant dense<0.000000e+00> : vector<8xf32>
    %103 = vector.multi_reduction <add>, %102, %cst_48 [1] : vector<8x16xf32> to vector<8xf32>
    %104 = vector.shape_cast %103 : vector<8xf32> to vector<8x1xf32>
    %105 = tpu.reciprocal %104 : vector<8x1xf32> -> vector<8x1xf32>
    %106 = vector.broadcast %105 : vector<8x1xf32> to vector<8x16xf32>
    %107 = arith.mulf %102, %106 : vector<8x16xf32>
    %c0_49 = arith.constant 0 : index
    %c3 = arith.constant 3 : index
    %c0_50 = arith.constant 0 : index
    %c0_51 = arith.constant 0 : index
    %108 = vector.load %arg8[%c0_49, %c3, %c0_50, %c0_51] : memref<1x4x8x16xf32, #tpu.memory_space<vmem>>, vector<1x1x8x16xf32>
    %109 = vector.shape_cast %108 : vector<1x1x8x16xf32> to vector<8x16xf32>
    %110 = vector.shape_cast %107 : vector<8x16xf32> to vector<1x1x8x16xf32>
    tpu.vector_store %arg8[%c0_49, %c3, %c0_50, %c0_51], %110 {strides = array<i32>} : memref<1x4x8x16xf32, #tpu.memory_space<vmem>>, vector<1x1x8x16xf32>,
    %cst_52 = arith.constant dense<0.000000e+00> : vector<8x8xf32>
    %111 = tpu.matmul %107, %92, %cst_52 {dimension_numbers = #tpu.dot_dimension_numbers<[1], [0], [0], [1], [0, 0, 1, 1], [], []>} : vector<8x16xf32>, vector<16x8xf32>, vector<8x8xf32> -> vector<8x8xf32>
    %c0_53 = arith.constant 0 : index
    %c0_54 = arith.constant 0 : index
    %c24 = arith.constant 24 : index
    %112 = vector.load %arg7[%c0_53, %c0_54, %c24] : memref<1x8x32xf32, #tpu.memory_space<vmem>>, vector<1x8x8xf32>
    %113 = vector.shape_cast %112 : vector<1x8x8xf32> to vector<8x8xf32>
    %114 = vector.shape_cast %111 : vector<8x8xf32> to vector<1x8x8xf32>
    tpu.vector_store %arg7[%c0_53, %c0_54, %c24], %114 {strides = array<i32>} : memref<1x8x32xf32, #tpu.memory_space<vmem>>, vector<1x8x8xf32>,
    return
  }
  func.func @transform_0(%arg0: i32, %arg1: i32) -> (i32, i32, i32) {
    %c0_i32 = arith.constant 0 : i32
    %c0_i32_0 = arith.constant 0 : i32
    return %arg0, %arg1, %c0_i32 : i32, i32, i32
  }
  func.func @transform_1(%arg0: i32, %arg1: i32) -> (i32, i32) {
    %c0_i32 = arith.constant 0 : i32
    %c0_i32_0 = arith.constant 0 : i32
    %c0_i32_1 = arith.constant 0 : i32
    return %c0_i32, %c0_i32_0 : i32, i32
  }
  func.func @transform_2(%arg0: i32, %arg1: i32) -> (i32, i32) {
    %c0_i32 = arith.constant 0 : i32
    %c0_i32_0 = arith.constant 0 : i32
    %c0_i32_1 = arith.constant 0 : i32
    return %c0_i32, %c0_i32_0 : i32, i32
  }
  func.func @transform_3(%arg0: i32, %arg1: i32) -> (i32, i32, i32) {
    %c0_i32 = arith.constant 0 : i32
    %c0_i32_0 = arith.constant 0 : i32
    %c0_i32_1 = arith.constant 0 : i32
    return %arg0, %c0_i32, %c0_i32_0 : i32, i32, i32
  }
  func.func @transform_4(%arg0: i32, %arg1: i32) -> (i32, i32, i32) {
    %c0_i32 = arith.constant 0 : i32
    %c0_i32_0 = arith.constant 0 : i32
    %c0_i32_1 = arith.constant 0 : i32
    return %arg0, %c0_i32, %c0_i32_0 : i32, i32, i32
  }
  func.func @transform_5(%arg0: i32, %arg1: i32) -> (i32, i32, i32) {
    %c0_i32 = arith.constant 0 : i32
    %c0_i32_0 = arith.constant 0 : i32
    return %arg0, %arg1, %c0_i32 : i32, i32, i32
  }
  func.func @transform_6(%arg0: i32, %arg1: i32) -> (i32, i32, i32, i32) {
    %c0_i32 = arith.constant 0 : i32
    %c0_i32_0 = arith.constant 0 : i32
    %c0_i32_1 = arith.constant 0 : i32
    return %arg0, %c0_i32, %arg1, %c0_i32_0 : i32, i32, i32, i32
  }
}

</mosaic_0001>

<llo_original>
// kernel: decoder_layer.9
$region0: #{decoder_layer.9}
  #allocation0 [shape = 'u32[]', space=smem, size = 0x4, offset = 0x4, fixed_abs, tag = 'smem constant byte address 0x4 - core index']
  #allocation1 [shape = 'u32[72,128]{1,0:T(1,128)}', space=vmem, size = 0x9000, scoped, tag = 'internal scratch']
  %s0 = inlined_call_operand.vmem [shape: f32[16,32], index: 0, kind: input, shape index: {}]
  %s1 = inlined_call_operand.vmem [shape: f32[16,32], index: 1, kind: input, shape index: {}]
  %s2 = inlined_call_operand.hbm [shape: f32[32,32], index: 2, kind: input, shape index: {}]
  %s3 = inlined_call_operand.hbm [shape: f32[1,32], index: 3, kind: input, shape index: {}]
  %s4 = inlined_call_operand.hbm [shape: f32[1,32], index: 4, kind: input, shape index: {}]
  %s5 = inlined_call_operand.hbm [shape: f32[1,32], index: 5, kind: input, shape index: {}]
  %s6 = inlined_call_operand.vmem [shape: f32[16,32], index: 6, kind: output, shape index: {}]
  %s7 = sld [smem:[#allocation0]]
  $region50: #{decoder_layer.9} parent=0
    _
  %s9 = ssub.s32 1, %s7
  %s10 = scalar_select 0, %s9, %s7
  $region1: #{decoder_layer.9} parent=0
    #allocation2 [shape = 'u8[16384]{0}', space=vmem, size = 0x4000, scoped, tag = 'input window, operand 2, single buffered']
    #allocation3 [shape = 's32[1]{0}', space=sflag, size = 0x4, scoped, tag = 'scoped memory for decoder_layer.9']
    #allocation4 [shape = 'u8[512]{0}', space=vmem, size = 0x400, scoped, tag = 'input window, operand 3, single buffered']
    #allocation5 [shape = 's32[1]{0}', space=sflag, size = 0x4, scoped, tag = 'scoped memory for decoder_layer.9']
    #allocation6 [shape = 'u8[512]{0}', space=vmem, size = 0x400, scoped, tag = 'input window, operand 4, single buffered']
    #allocation7 [shape = 'u8[512]{0}', space=vmem, size = 0x400, scoped, tag = 'input window, operand 5, single buffered']
    #allocation8 [shape = 's32[1]{0}', space=sflag, size = 0x4, scoped, tag = 'scoped memory for decoder_layer.9']
    %11 = vsyncpa [#allocation3], 0
    %12 = vsyncpa [#allocation5], 0
    %13 = vsyncpa [#allocation8], 0
    // Predicated region
    $region2: #{decoder_layer.9} parent=1 // pred_check
      _
    $region3: #{decoder_layer.9} parent=1 // pred_check_branch
      %15 = sbr.rel (0) target = $region5
    $region4: #{decoder_layer.9} parent=1 // pred_region
      _
    $region5: #{decoder_layer.9} parent=1 // pred_fallthru
      _
    // Predicated region
    $region6: #{decoder_layer.9} parent=1 // pred_check
      _
    $region7: #{decoder_layer.9} parent=1 // pred_check_branch
      %17 = sbr.rel (0) target = $region9
    $region8: #{decoder_layer.9} parent=1 // pred_region
      _
    $region9: #{decoder_layer.9} parent=1 // pred_fallthru
      _
    // Predicated region
    $region10: #{decoder_layer.9} parent=1 // pred_check
      _
    $region11: #{decoder_layer.9} parent=1 // pred_check_branch
      %19 = sbr.rel (0) target = $region13
    $region12: #{decoder_layer.9} parent=1 // pred_region
      %21 = vsyncadd [#allocation3], 0
      %s22 = sshll.u32 %s2, 4
      %s23 = int_to_ptr.hbm [resolvable:$true] %s22
      %s24 = sshll.u32 [#allocation2], 4
      %s25 = int_to_ptr.vmem [resolvable:$true] %s24
      %30 = dma.hbm_to_vmem [thread:$0]  %s23, 512, %s25, [#allocation3], 128, 128, 8
    $region13: #{decoder_layer.9} parent=1 // pred_fallthru
      _
    // Predicated region
    $region14: #{decoder_layer.9} parent=1 // pred_check
      _
    $region15: #{decoder_layer.9} parent=1 // pred_check_branch
      %32 = sbr.rel (0) target = $region17
    $region16: #{decoder_layer.9} parent=1 // pred_region
      %34 = vsyncadd [#allocation5], 0
      %s36 = sshll.u32 %s3, 4
      %s37 = int_to_ptr.hbm [resolvable:$true] %s36
      %s38 = sshll.u32 [#allocation4], 4
      %s39 = int_to_ptr.vmem [resolvable:$true] %s38
      %41 = dma.hbm_to_vmem [thread:$0]  %s37, 16, %s39, [#allocation5]
    $region17: #{decoder_layer.9} parent=1 // pred_fallthru
      _
    // Predicated region
    $region18: #{decoder_layer.9} parent=1 // pred_check
      _
    $region19: #{decoder_layer.9} parent=1 // pred_check_branch
      %43 = sbr.rel (0) target = $region21
    $region20: #{decoder_layer.9} parent=1 // pred_region
      %45 = vsyncadd [#allocation5], 0
      %s47 = sshll.u32 %s4, 4
      %s48 = int_to_ptr.hbm [resolvable:$true] %s47
      %s49 = sshll.u32 [#allocation6], 4
      %s50 = int_to_ptr.vmem [resolvable:$true] %s49
      %52 = dma.hbm_to_vmem [thread:$0]  %s48, 16, %s50, [#allocation5]
    $region21: #{decoder_layer.9} parent=1 // pred_fallthru
      _
    // Predicated region
    $region22: #{decoder_layer.9} parent=1 // pred_check
      _
    $region23: #{decoder_layer.9} parent=1 // pred_check_branch
      %54 = sbr.rel (0) target = $region25
    $region24: #{decoder_layer.9} parent=1 // pred_region
      %56 = vsyncadd [#allocation8], 0
      %s58 = sshll.u32 %s5, 4
      %s59 = int_to_ptr.hbm [resolvable:$true] %s58
      %s60 = sshll.u32 [#allocation7], 4
      %s61 = int_to_ptr.vmem [resolvable:$true] %s60
      %63 = dma.hbm_to_vmem [thread:$0]  %s59, 16, %s61, [#allocation8]
    $region25: #{decoder_layer.9} parent=1 // pred_fallthru
      _
    // Predicated region
    $region26: #{decoder_layer.9} parent=1 // pred_check
      _
    $region27: #{decoder_layer.9} parent=1 // pred_check_branch
      %65 = sbr.rel (0) target = $region29
    $region28: #{decoder_layer.9} parent=1 // pred_region
      %67 = dma.done [#allocation3], 512
    $region29: #{decoder_layer.9} parent=1 // pred_fallthru
      _
    // Predicated region
    $region30: #{decoder_layer.9} parent=1 // pred_check
      _
    $region31: #{decoder_layer.9} parent=1 // pred_check_branch
      %69 = sbr.rel (0) target = $region33
    $region32: #{decoder_layer.9} parent=1 // pred_region
      %71 = dma.done [#allocation5], 16
    $region33: #{decoder_layer.9} parent=1 // pred_fallthru
      _
    // Predicated region
    $region34: #{decoder_layer.9} parent=1 // pred_check
      _
    $region35: #{decoder_layer.9} parent=1 // pred_check_branch
      %73 = sbr.rel (0) target = $region37
    $region36: #{decoder_layer.9} parent=1 // pred_region
      %75 = dma.done [#allocation5], 16
    $region37: #{decoder_layer.9} parent=1 // pred_fallthru
      _
    // Predicated region
    $region38: #{decoder_layer.9} parent=1 // pred_check
      _
    $region39: #{decoder_layer.9} parent=1 // pred_check_branch
      %77 = sbr.rel (0) target = $region41
    $region40: #{decoder_layer.9} parent=1 // pred_region
      %79 = dma.done [#allocation8], 16
    $region41: #{decoder_layer.9} parent=1 // pred_fallthru
      _
    %v80 = vld [vmem:[%s0] sm:$0xff]
    %v81 = vld [vmem:[%s0 + $0x8] sm:$0xff]
    %v82 = vld [vmem:[#allocation2] sm:$0xff]
    %v83 = vld [vmem:[#allocation2 + $0x8] sm:$0xff]
    %v84 = vld [vmem:[#allocation2 + $0x10] sm:$0xff]
    %v85 = vld [vmem:[#allocation2 + $0x18] sm:$0xff]
    %v86 = vld [vmem:[#allocation4] sm:$0x1]
    %v88 = vperm.slane %v86, 0
    %vm90 = vcmask 261120
    %v92 = vsel %vm90, %v80, 0
    %v95 = vsel %vm90, %v81, 0
    %97 = vmatpush.msra.mxu0 0.0
    %98 = vmatpush.msra.mxu0 0.0
    %99 = vmatpush.msra.mxu0 0.0
    %100 = vmatpush.msra.mxu0 0.0
    %101 = vmatpush.msra.mxu0 0.0
    %102 = vmatpush.msra.mxu0 0.0
    %103 = vmatpush.msra.mxu0 0.0
    %104 = vmatpush.msra.mxu0 0.0
    %105 = vmatpush.msra.mxu0 0.0
    %106 = vmatpush.msra.mxu0 0.0
    %107 = vmatpush.msra.mxu0 0.0
    %108 = vmatpush.msra.mxu0 0.0
    %109 = vmatpush.msra.mxu0 %v85
    %110 = vmatpush.msra.mxu0 %v84
    %111 = vmatpush.msra.mxu0 %v83
    %112 = vmatpush.msra.mxu0 %v82
    %113 = vmatmul.f32.gmra.mxu0 %v92
    %v114 = vpop.f32.mrf.mxu0
    %v115 = vadd.f32 %v88, %v114
    %116 = vmatmul.f32.gmra.mxu0 %v95
    %v117 = vpop.f32.mrf.mxu0
    %v118 = vadd.f32 %v88, %v117
    %119 = vdwg.mxu0
    %v120 = vld [vmem:[%s1] sm:$0xff]
    %v121 = vld [vmem:[%s1 + $0x8] sm:$0xff]
    %v122 = vadd.f32 %v120, %v115
    %v123 = vadd.f32 %v121, %v118
    %v124 = vsel %vm90, %v122, 0.0
    %125 = vadd.xlane.f32.xlu0 %v124
    %v126 = vpop.xlane.xlu0 %125
    %v127 = vsel %vm90, %v123, 0.0
    %128 = vadd.xlane.f32.xlu0 %v127
    %v129 = vpop.xlane.xlu0 %128
    %v130 = vrcp.pop 32.0
    %v131 = vmul.f32 32.0, %v130
    %v132 = vsub.f32 1.0, %v131
    %v133 = vmul.f32 %v130, %v132
    %v134 = vadd.f32 %v130, %v133
    %vm135 = vweird.f32 %v130
    %v136 = vsel %vm135, %v130, %v134
    %v137 = vmul.f32 %v126, %v136
    %v138 = vmul.f32 %v129, %v136
    %v139 = vsub.f32 %v122, %v137
    %v140 = vsub.f32 %v123, %v138
    %v141 = vmul.f32 %v139, %v139
    %v142 = vmul.f32 %v140, %v140
    %v143 = vsel %vm90, %v141, 0.0
    %144 = vadd.xlane.f32.xlu0 %v143
    %v145 = vpop.xlane.xlu0 %144
    %v146 = vsel %vm90, %v142, 0.0
    %147 = vadd.xlane.f32.xlu0 %v146
    %v148 = vpop.xlane.xlu0 %147
    %v149 = vmul.f32 %v145, %v136
    %v150 = vmul.f32 %v148, %v136
    %v151 = vadd.f32 %v149, 1e-05
    %v152 = vadd.f32 %v150, 1e-05
    %v153 = vrsqrt.pop %v151
    %v154 = vmul.f32 %v153, %v151
    %v155 = vmul.f32 %v154, %v153
    %v156 = vmul.f32 0.5, %v155
    %v157 = vsub.f32 1.5, %v156
    %v158 = vmul.f32 %v153, %v157
    %vm159 = vweird.f32 %v151
    %vm160 = vweird.f32 %v153
    %vm161 = vmor %vm159, %vm160
    %v162 = vsel %vm161, %v153, %v158
    %v163 = vrsqrt.pop %v152
    %v164 = vmul.f32 %v163, %v152
    %v165 = vmul.f32 %v164, %v163
    %v166 = vmul.f32 0.5, %v165
    %v167 = vsub.f32 1.5, %v166
    %v168 = vmul.f32 %v163, %v167
    %vm169 = vweird.f32 %v152
    %vm170 = vweird.f32 %v163
    %vm171 = vmor %vm169, %vm170
    %v172 = vsel %vm171, %v163, %v168
    %v173 = vmul.f32 %v139, %v162
    %v174 = vmul.f32 %v140, %v172
    %v175 = vld [vmem:[#allocation6] sm:$0x1]
    %v177 = vperm.slane %v175, 0
    %v179 = vmul.f32 %v173, %v177
    %v180 = vmul.f32 %v174, %v177
    %v181 = vld [vmem:[#allocation7] sm:$0x1]
    %v183 = vperm.slane %v181, 0
    %v185 = vadd.f32 %v179, %v183
    %v186 = vadd.f32 %v180, %v183
    %187 = vst.msk [vmem:[%s6] sm:$0xff] %vm90, %v185
    %188 = vst.msk [vmem:[%s6 + $0x8] sm:$0xff] %vm90, %v186
    // Predicated region
    $region42: #{decoder_layer.9} parent=1 // pred_check
      _
    $region43: #{decoder_layer.9} parent=1 // pred_check_branch
      %190 = sbr.rel (0) target = $region45
    $region44: #{decoder_layer.9} parent=1 // pred_region
      _
    $region45: #{decoder_layer.9} parent=1 // pred_fallthru
      _
    // Predicated region
    $region46: #{decoder_layer.9} parent=1 // pred_check
      _
    $region47: #{decoder_layer.9} parent=1 // pred_check_branch
      %192 = sbr.rel (0) target = $region49
    $region48: #{decoder_layer.9} parent=1 // pred_region
      _
    $region49: #{decoder_layer.9} parent=1 // pred_fallthru
      _
    %193 = vsyncpa [#allocation3], 1
    %194 = vsyncpa [#allocation5], 1
    %195 = vsyncpa [#allocation8], 1

// kernel: decoder_layer.7
$region0: #{decoder_layer.7}
  #allocation0 [shape = 'u32[]', space=smem, size = 0x4, offset = 0x4, fixed_abs, tag = 'smem constant byte address 0x4 - core index']
  #allocation1 [shape = 'u32[72,128]{1,0:T(1,128)}', space=vmem, size = 0x9000, scoped, tag = 'internal scratch']
  %s0 = inlined_call_operand.vmem [shape: f32[16,32], index: 0, kind: input, shape index: {}]
  %s1 = inlined_call_operand.hbm [shape: f32[32,64], index: 1, kind: input, shape index: {}]
  %s2 = inlined_call_operand.hbm [shape: f32[1,64], index: 2, kind: input, shape index: {}]
  %s3 = inlined_call_operand.vmem [shape: f32[16,64], index: 3, kind: output, shape index: {}]
  %s4 = sld [smem:[#allocation0]]
  $region30: #{decoder_layer.7} parent=0
    _
  %s6 = ssub.s32 1, %s4
  %s7 = scalar_select 0, %s6, %s4
  $region1: #{decoder_layer.7} parent=0
    #allocation2 [shape = 'u8[16384]{0}', space=vmem, size = 0x4000, scoped, tag = 'input window, operand 1, single buffered']
    #allocation3 [shape = 's32[1]{0}', space=sflag, size = 0x4, scoped, tag = 'scoped memory for decoder_layer.7']
    #allocation4 [shape = 'u8[512]{0}', space=vmem, size = 0x400, scoped, tag = 'input window, operand 2, single buffered']
    #allocation5 [shape = 's32[1]{0}', space=sflag, size = 0x4, scoped, tag = 'scoped memory for decoder_layer.7']
    %8 = vsyncpa [#allocation3], 0
    %9 = vsyncpa [#allocation5], 0
    // Predicated region
    $region2: #{decoder_layer.7} parent=1 // pred_check
      _
    $region3: #{decoder_layer.7} parent=1 // pred_check_branch
      %11 = sbr.rel (0) target = $region5
    $region4: #{decoder_layer.7} parent=1 // pred_region
      _
    $region5: #{decoder_layer.7} parent=1 // pred_fallthru
      _
    // Predicated region
    $region6: #{decoder_layer.7} parent=1 // pred_check
      _
    $region7: #{decoder_layer.7} parent=1 // pred_check_branch
      %13 = sbr.rel (0) target = $region9
    $region8: #{decoder_layer.7} parent=1 // pred_region
      %15 = vsyncadd [#allocation3], 0
      %s16 = sshll.u32 %s1, 4
      %s17 = int_to_ptr.hbm [resolvable:$true] %s16
      %s18 = sshll.u32 [#allocation2], 4
      %s19 = int_to_ptr.vmem [resolvable:$true] %s18
      %24 = dma.hbm_to_vmem [thread:$0]  %s17, 512, %s19, [#allocation3], 128, 128, 8
    $region9: #{decoder_layer.7} parent=1 // pred_fallthru
      _
    // Predicated region
    $region10: #{decoder_layer.7} parent=1 // pred_check
      _
    $region11: #{decoder_layer.7} parent=1 // pred_check_branch
      %26 = sbr.rel (0) target = $region13
    $region12: #{decoder_layer.7} parent=1 // pred_region
      %28 = vsyncadd [#allocation5], 0
      %s30 = sshll.u32 %s2, 4
      %s31 = int_to_ptr.hbm [resolvable:$true] %s30
      %s32 = sshll.u32 [#allocation4], 4
      %s33 = int_to_ptr.vmem [resolvable:$true] %s32
      %35 = dma.hbm_to_vmem [thread:$0]  %s31, 16, %s33, [#allocation5]
    $region13: #{decoder_layer.7} parent=1 // pred_fallthru
      _
    // Predicated region
    $region14: #{decoder_layer.7} parent=1 // pred_check
      _
    $region15: #{decoder_layer.7} parent=1 // pred_check_branch
      %37 = sbr.rel (0) target = $region17
    $region16: #{decoder_layer.7} parent=1 // pred_region
      %39 = dma.done [#allocation3], 512
    $region17: #{decoder_layer.7} parent=1 // pred_fallthru
      _
    // Predicated region
    $region18: #{decoder_layer.7} parent=1 // pred_check
      _
    $region19: #{decoder_layer.7} parent=1 // pred_check_branch
      %41 = sbr.rel (0) target = $region21
    $region20: #{decoder_layer.7} parent=1 // pred_region
      %43 = dma.done [#allocation5], 16
    $region21: #{decoder_layer.7} parent=1 // pred_fallthru
      _
    %v44 = vld [vmem:[%s0] sm:$0xff]
    %v45 = vld [vmem:[%s0 + $0x8] sm:$0xff]
    %v46 = vld [vmem:[#allocation2] sm:$0xff]
    %v47 = vld [vmem:[#allocation2 + $0x8] sm:$0xff]
    %v48 = vld [vmem:[#allocation2 + $0x10] sm:$0xff]
    %v49 = vld [vmem:[#allocation2 + $0x18] sm:$0xff]
    %v50 = vld [vmem:[#allocation4] sm:$0x1]
    %v52 = vperm.slane %v50, 0
    %vm54 = vcmask 261120
    %v56 = vsel %vm54, %v44, 0
    %v59 = vsel %vm54, %v45, 0
    %61 = vmatpush.msra.mxu0 0.0
    %62 = vmatpush.msra.mxu0 0.0
    %63 = vmatpush.msra.mxu0 0.0
    %64 = vmatpush.msra.mxu0 0.0
    %65 = vmatpush.msra.mxu0 0.0
    %66 = vmatpush.msra.mxu0 0.0
    %67 = vmatpush.msra.mxu0 0.0
    %68 = vmatpush.msra.mxu0 0.0
    %69 = vmatpush.msra.mxu0 0.0
    %70 = vmatpush.msra.mxu0 0.0
    %71 = vmatpush.msra.mxu0 0.0
    %72 = vmatpush.msra.mxu0 0.0
    %73 = vmatpush.msra.mxu0 %v49
    %74 = vmatpush.msra.mxu0 %v48
    %75 = vmatpush.msra.mxu0 %v47
    %76 = vmatpush.msra.mxu0 %v46
    %77 = vmatmul.f32.gmra.mxu0 %v56
    %v78 = vpop.f32.mrf.mxu0
    %v79 = vadd.f32 %v52, %v78
    %80 = vmatmul.f32.gmra.mxu0 %v59
    %v81 = vpop.f32.mrf.mxu0
    %v82 = vadd.f32 %v52, %v81
    %83 = vdwg.mxu0
    %vm84 = vcmask 523264
    %85 = vst.msk [vmem:[%s3] sm:$0xff] %vm84, %v79
    %86 = vst.msk [vmem:[%s3 + $0x8] sm:$0xff] %vm84, %v82
    // Predicated region
    $region22: #{decoder_layer.7} parent=1 // pred_check
      _
    $region23: #{decoder_layer.7} parent=1 // pred_check_branch
      %88 = sbr.rel (0) target = $region25
    $region24: #{decoder_layer.7} parent=1 // pred_region
      _
    $region25: #{decoder_layer.7} parent=1 // pred_fallthru
      _
    // Predicated region
    $region26: #{decoder_layer.7} parent=1 // pred_check
      _
    $region27: #{decoder_layer.7} parent=1 // pred_check_branch
      %90 = sbr.rel (0) target = $region29
    $region28: #{decoder_layer.7} parent=1 // pred_region
      _
    $region29: #{decoder_layer.7} parent=1 // pred_fallthru
      _
    %91 = vsyncpa [#allocation3], 1
    %92 = vsyncpa [#allocation5], 1

// kernel: decoder_layer.10
$region0: #{decoder_layer.10}
  #allocation0 [shape = 'u32[]', space=smem, size = 0x4, offset = 0x4, fixed_abs, tag = 'smem constant byte address 0x4 - core index']
  #allocation1 [shape = 'u32[72,128]{1,0:T(1,128)}', space=vmem, size = 0x9000, scoped, tag = 'internal scratch']
  %s0 = inlined_call_operand.hbm [shape: f32[32,32], index: 0, kind: input, shape index: {}]
  %s1 = inlined_call_operand.hbm [shape: f32[32,64], index: 1, kind: input, shape index: {}]
  %s2 = inlined_call_operand.hbm [shape: f32[1,64], index: 2, kind: input, shape index: {}]
  %s3 = inlined_call_operand.vmem [shape: f32[32,64], index: 3, kind: output, shape index: {}]
  %s4 = sld [smem:[#allocation0]]
  $region34: #{decoder_layer.10} parent=0
    _
  %s6 = ssub.s32 1, %s4
  %s7 = scalar_select 0, %s6, %s4
  $region1: #{decoder_layer.10} parent=0
    #allocation2 [shape = 'u8[16384]{0}', space=vmem, size = 0x4000, scoped, tag = 'input window, operand 0, single buffered']
    #allocation3 [shape = 's32[1]{0}', space=sflag, size = 0x4, scoped, tag = 'scoped memory for decoder_layer.10']
    #allocation4 [shape = 'u8[16384]{0}', space=vmem, size = 0x4000, scoped, tag = 'input window, operand 1, single buffered']
    #allocation5 [shape = 's32[1]{0}', space=sflag, size = 0x4, scoped, tag = 'scoped memory for decoder_layer.10']
    #allocation6 [shape = 'u8[512]{0}', space=vmem, size = 0x400, scoped, tag = 'input window, operand 2, single buffered']
    %8 = vsyncpa [#allocation3], 0
    %9 = vsyncpa [#allocation5], 0
    // Predicated region
    $region2: #{decoder_layer.10} parent=1 // pred_check
      _
    $region3: #{decoder_layer.10} parent=1 // pred_check_branch
      %11 = sbr.rel (0) target = $region5
    $region4: #{decoder_layer.10} parent=1 // pred_region
      %13 = vsyncadd [#allocation3], 0
      %s14 = sshll.u32 %s0, 4
      %s15 = int_to_ptr.hbm [resolvable:$true] %s14
      %s16 = sshll.u32 [#allocation2], 4
      %s17 = int_to_ptr.vmem [resolvable:$true] %s16
      %22 = dma.hbm_to_vmem [thread:$0]  %s15, 512, %s17, [#allocation3], 128, 128, 8
    $region5: #{decoder_layer.10} parent=1 // pred_fallthru
      _
    // Predicated region
    $region6: #{decoder_layer.10} parent=1 // pred_check
      _
    $region7: #{decoder_layer.10} parent=1 // pred_check_branch
      %24 = sbr.rel (0) target = $region9
    $region8: #{decoder_layer.10} parent=1 // pred_region
      %26 = vsyncadd [#allocation5], 0
      %s27 = sshll.u32 %s1, 4
      %s28 = int_to_ptr.hbm [resolvable:$true] %s27
      %s29 = sshll.u32 [#allocation4], 4
      %s30 = int_to_ptr.vmem [resolvable:$true] %s29
      %35 = dma.hbm_to_vmem [thread:$0]  %s28, 512, %s30, [#allocation5], 128, 128, 8
    $region9: #{decoder_layer.10} parent=1 // pred_fallthru
      _
    // Predicated region
    $region10: #{decoder_layer.10} parent=1 // pred_check
      _
    $region11: #{decoder_layer.10} parent=1 // pred_check_branch
      %37 = sbr.rel (0) target = $region13
    $region12: #{decoder_layer.10} parent=1 // pred_region
      %39 = vsyncadd [#allocation5], 0
      %s41 = sshll.u32 %s2, 4
      %s42 = int_to_ptr.hbm [resolvable:$true] %s41
      %s43 = sshll.u32 [#allocation6], 4
      %s44 = int_to_ptr.vmem [resolvable:$true] %s43
      %46 = dma.hbm_to_vmem [thread:$0]  %s42, 16, %s44, [#allocation5]
    $region13: #{decoder_layer.10} parent=1 // pred_fallthru
      _
    // Predicated region
    $region14: #{decoder_layer.10} parent=1 // pred_check
      _
    $region15: #{decoder_layer.10} parent=1 // pred_check_branch
      %48 = sbr.rel (0) target = $region17
    $region16: #{decoder_layer.10} parent=1 // pred_region
      %50 = dma.done [#allocation3], 512
    $region17: #{decoder_layer.10} parent=1 // pred_fallthru
      _
    // Predicated region
    $region18: #{decoder_layer.10} parent=1 // pred_check
      _
    $region19: #{decoder_layer.10} parent=1 // pred_check_branch
      %52 = sbr.rel (0) target = $region21
    $region20: #{decoder_layer.10} parent=1 // pred_region
      %54 = dma.done [#allocation5], 512
    $region21: #{decoder_layer.10} parent=1 // pred_fallthru
      _
    // Predicated region
    $region22: #{decoder_layer.10} parent=1 // pred_check
      _
    $region23: #{decoder_layer.10} parent=1 // pred_check_branch
      %56 = sbr.rel (0) target = $region25
    $region24: #{decoder_layer.10} parent=1 // pred_region
      %58 = dma.done [#allocation5], 16
    $region25: #{decoder_layer.10} parent=1 // pred_fallthru
      _
    %v59 = vld [vmem:[#allocation2] sm:$0xff]
    %v60 = vld [vmem:[#allocation2 + $0x8] sm:$0xff]
    %v61 = vld [vmem:[#allocation2 + $0x10] sm:$0xff]
    %v62 = vld [vmem:[#allocation2 + $0x18] sm:$0xff]
    %v63 = vld [vmem:[#allocation4] sm:$0xff]
    %v64 = vld [vmem:[#allocation4 + $0x8] sm:$0xff]
    %v65 = vld [vmem:[#allocation4 + $0x10] sm:$0xff]
    %v66 = vld [vmem:[#allocation4 + $0x18] sm:$0xff]
    %v67 = vld [vmem:[#allocation6] sm:$0x1]
    %v69 = vperm.slane %v67, 0
    %vm71 = vcmask 261120
    %v73 = vsel %vm71, %v59, 0
    %v76 = vsel %vm71, %v60, 0
    %v79 = vsel %vm71, %v61, 0
    %v82 = vsel %vm71, %v62, 0
    %84 = vmatpush.msra.mxu0 0.0
    %85 = vmatpush.msra.mxu0 0.0
    %86 = vmatpush.msra.mxu0 0.0
    %87 = vmatpush.msra.mxu0 0.0
    %88 = vmatpush.msra.mxu0 0.0
    %89 = vmatpush.msra.mxu0 0.0
    %90 = vmatpush.msra.mxu0 0.0
    %91 = vmatpush.msra.mxu0 0.0
    %92 = vmatpush.msra.mxu0 0.0
    %93 = vmatpush.msra.mxu0 0.0
    %94 = vmatpush.msra.mxu0 0.0
    %95 = vmatpush.msra.mxu0 0.0
    %96 = vmatpush.msra.mxu0 %v66
    %97 = vmatpush.msra.mxu0 %v65
    %98 = vmatpush.msra.mxu0 %v64
    %99 = vmatpush.msra.mxu0 %v63
    %100 = vmatmul.f32.gmra.mxu0 %v73
    %v101 = vpop.f32.mrf.mxu0
    %v102 = vadd.f32 %v69, %v101
    %103 = vmatmul.f32.gmra.mxu0 %v76
    %v104 = vpop.f32.mrf.mxu0
    %v105 = vadd.f32 %v69, %v104
    %106 = vmatmul.f32.gmra.mxu0 %v79
    %v107 = vpop.f32.mrf.mxu0
    %v108 = vadd.f32 %v69, %v107
    %109 = vmatmul.f32.gmra.mxu0 %v82
    %v110 = vpop.f32.mrf.mxu0
    %v111 = vadd.f32 %v69, %v110
    %112 = vdwg.mxu0
    %vm113 = vcmask 523264
    %114 = vst.msk [vmem:[%s3] sm:$0xff] %vm113, %v102
    %115 = vst.msk [vmem:[%s3 + $0x8] sm:$0xff] %vm113, %v105
    %116 = vst.msk [vmem:[%s3 + $0x10] sm:$0xff] %vm113, %v108
    %117 = vst.msk [vmem:[%s3 + $0x18] sm:$0xff] %vm113, %v111
    // Predicated region
    $region26: #{decoder_layer.10} parent=1 // pred_check
      _
    $region27: #{decoder_layer.10} parent=1 // pred_check_branch
      %119 = sbr.rel (0) target = $region29
    $region28: #{decoder_layer.10} parent=1 // pred_region
      _
    $region29: #{decoder_layer.10} parent=1 // pred_fallthru
      _
    // Predicated region
    $region30: #{decoder_layer.10} parent=1 // pred_check
      _
    $region31: #{decoder_layer.10} parent=1 // pred_check_branch
      %121 = sbr.rel (0) target = $region33
    $region32: #{decoder_layer.10} parent=1 // pred_region
      _
    $region33: #{decoder_layer.10} parent=1 // pred_fallthru
      _
    %122 = vsyncpa [#allocation3], 1
    %123 = vsyncpa [#allocation5], 1

// kernel: decoder_layer.8
$region0: #{decoder_layer.8}
  #allocation0 [shape = 'u32[]', space=smem, size = 0x4, offset = 0x4, fixed_abs, tag = 'smem constant byte address 0x4 - core index']
  #allocation1 [shape = 'u32[72,128]{1,0:T(1,128)}', space=vmem, size = 0x9000, scoped, tag = 'internal scratch']
  %s0 = inlined_call_operand.vmem [shape: f32[2,8,32], index: 0, kind: input, shape index: {}]
  %s1 = inlined_call_operand.hbm [shape: f32[32,32], index: 1, kind: input, shape index: {}]
  %s2 = inlined_call_operand.vmem [shape: f32[1,32], index: 2, kind: input, shape index: {}]
  %s3 = inlined_call_operand.vmem [shape: f32[2,8,64], index: 3, kind: input, shape index: {}]
  %s4 = inlined_call_operand.hbm [shape: s32[2,8,8], index: 4, kind: input, shape index: {}]
  %s5 = inlined_call_operand.vmem [shape: f32[2,8,32], index: 5, kind: output, shape index: {}]
  %s6 = sld [smem:[#allocation0]]
  $region61: #{decoder_layer.8} parent=0
    _
  %s8 = ssub.s32 1, %s6
  %s9 = scalar_select 0, %s8, %s6
  $region1: #{decoder_layer.8} parent=0
    #allocation2 [shape = 'u8[16384]{0}', space=vmem, size = 0x4000, scoped, tag = 'input window, operand 1, single buffered']
    #allocation3 [shape = 's32[2]{0}', space=sflag, size = 0x8, scoped, tag = 'scoped memory for decoder_layer.8']
    #allocation4 [shape = 'u8[8192]{0}', space=vmem, size = 0x2000, scoped, tag = 'input window, operand 4']
    #allocation5 [shape = 's32[2]{0}', space=sflag, size = 0x8, scoped, tag = 'scoped memory for decoder_layer.8']
    %10 = vsyncpa [#allocation3], 0
    %11 = vsyncpa [#allocation5], 0
    %s12 = scalar_lea.sflag [#allocation5], 1
    %13 = vsyncpa %s12, 0
    loop: start=0, step=1, limit=4
    $region2: #{decoder_layer.8} parent=1 // loop_pre_header
      _
    $region3: #{decoder_layer.8} parent=1 // loop_header
      %s15 = sphi 0, %s19
      %p16 = scmp.ge.s32.totalorder %s15, 4
      %s22 = sphi 0, %s34
      %s23 = sphi 0, %s30
      %s24 = sphi 0, %s22
      %s25 = sphi 0, %s23
      %s26 = sphi 0, %s24
      %s27 = sphi 0, %s25
      %s39 = sphi 0, %s41
      %s42 = sphi 0, %s39
      %s43 = sphi 0, %s42
      %s59 = sphi 0, %s43
      %s63 = sphi 0, %s63
      %s65 = sphi 0, %s63
      %s66 = sphi 0, %s65
      %s80 = sphi 0, %s66
      %s84 = sphi 0, %s84
      %s86 = sphi 0, %s84
      %s87 = sphi 0, %s86
      %s101 = sphi 0, %s87
      %s107 = sphi 0, %s109
      %s110 = sphi 0, %s107
      %s111 = sphi 0, %s110
      %s127 = sphi 0, %s111
      %s135 = sphi 0, %s137
      %s138 = sphi 0, %s135
      %s139 = sphi 0, %s138
      %s155 = sphi 0, %s139
      %s163 = sphi 0, %s165
      %s166 = sphi 0, %s163
      %s167 = sphi 0, %s166
      %s183 = sphi 0, %s167
    $region4: #{decoder_layer.8} parent=1 // loop_header_branch
      %18 = sbr.rel (%p16) target = $region8
    $region5: #{decoder_layer.8} parent=1 // loop_body
      %s20 = ssub.s32 %s15, 1
      %s21 = ssub.s32 %s15, 2
      %s28 = sadd.s32 1, %s23
      %p29 = scmp.ge.s32.totalorder %s28, 1
      %s30 = scalar_select %p29, 0, %s28
      %s31 = sadd.s32 1, %s22
      %s32 = scalar_select %p29, %s31, %s22
      %p33 = scmp.ge.s32.totalorder %s32, 2
      %s34 = scalar_select %p33, 0, %s32
      %s35 = ssub.s32 %s22, %s34
      %s36 = ssub.s32 %s23, %s30
      %s37 = sor.u32 %s35, %s36
      %p38 = scmp.eq.s32.totalorder %s37, 0
      %s40 = sadd.s32 %s39, 1
      %s41 = scalar_select %p38, %s39, %s40
      %p44 = pneg %p38
      %p45 = scmp.eq.s32.totalorder %s15, 1
      %p46 = por %p44, %p45
      %p47 = scmp.ne.s32.totalorder %s39, %s42
      %p48 = scmp.eq.s32.totalorder %s15, 0
      %p49 = por %p47, %p48
      %p50 = scmp.ne.s32.totalorder %s39, %s42
      %p51 = scmp.eq.s32.totalorder %s20, 1
      %p52 = por %p50, %p51
      %p53 = scmp.ne.s32.totalorder %s42, %s43
      %p54 = scmp.eq.s32.totalorder %s20, 0
      %p55 = por %p53, %p54
      %p56 = scmp.ne.s32.totalorder %s42, %s43
      %p57 = scmp.eq.s32.totalorder %s21, 1
      %p58 = por %p56, %p57
      %p60 = scmp.ne.s32.totalorder %s43, %s59
      %p61 = scmp.eq.s32.totalorder %s21, 0
      %p62 = por %p60, %p61
      %s64 = sadd.s32 %s63, 1
      %p67 = scmp.eq.s32.totalorder %s15, 1
      %p68 = scmp.ne.s32.totalorder %s63, %s65
      %p69 = scmp.eq.s32.totalorder %s15, 0
      %p70 = por %p68, %p69
      %p71 = scmp.ne.s32.totalorder %s63, %s65
      %p72 = scmp.eq.s32.totalorder %s20, 1
      %p73 = por %p71, %p72
      %p74 = scmp.ne.s32.totalorder %s65, %s66
      %p75 = scmp.eq.s32.totalorder %s20, 0
      %p76 = por %p74, %p75
      %p77 = scmp.ne.s32.totalorder %s65, %s66
      %p78 = scmp.eq.s32.totalorder %s21, 1
      %p79 = por %p77, %p78
      %p81 = scmp.ne.s32.totalorder %s66, %s80
      %p82 = scmp.eq.s32.totalorder %s21, 0
      %p83 = por %p81, %p82
      %s85 = sadd.s32 %s84, 1
      %p88 = scmp.eq.s32.totalorder %s15, 1
      %p89 = scmp.ne.s32.totalorder %s84, %s86
      %p90 = scmp.eq.s32.totalorder %s15, 0
      %p91 = por %p89, %p90
      %p92 = scmp.ne.s32.totalorder %s84, %s86
      %p93 = scmp.eq.s32.totalorder %s20, 1
      %p94 = por %p92, %p93
      %p95 = scmp.ne.s32.totalorder %s86, %s87
      %p96 = scmp.eq.s32.totalorder %s20, 0
      %p97 = por %p95, %p96
      %p98 = scmp.ne.s32.totalorder %s86, %s87
      %p99 = scmp.eq.s32.totalorder %s21, 1
      %p100 = por %p98, %p99
      %p102 = scmp.ne.s32.totalorder %s87, %s101
      %p103 = scmp.eq.s32.totalorder %s21, 0
      %p104 = por %p102, %p103
      %s105 = ssub.s32 %s22, %s34
      %p106 = scmp.eq.s32.totalorder %s105, 0
      %s108 = sadd.s32 %s107, 1
      %s109 = scalar_select %p106, %s107, %s108
      %p112 = pneg %p106
      %p113 = scmp.eq.s32.totalorder %s15, 1
      %p114 = por %p112, %p113
      %p115 = scmp.ne.s32.totalorder %s107, %s110
      %p116 = scmp.eq.s32.totalorder %s15, 0
      %p117 = por %p115, %p116
      %p118 = scmp.ne.s32.totalorder %s107, %s110
      %p119 = scmp.eq.s32.totalorder %s20, 1
      %p120 = por %p118, %p119
      %p121 = scmp.ne.s32.totalorder %s110, %s111
      %p122 = scmp.eq.s32.totalorder %s20, 0
      %p123 = por %p121, %p122
      %p124 = scmp.ne.s32.totalorder %s110, %s111
      %p125 = scmp.eq.s32.totalorder %s21, 1
      %p126 = por %p124, %p125
      %p128 = scmp.ne.s32.totalorder %s111, %s127
      %p129 = scmp.eq.s32.totalorder %s21, 0
      %p130 = por %p128, %p129
      %s131 = ssub.s32 %s22, %s34
      %s132 = ssub.s32 %s23, %s30
      %s133 = sor.u32 %s131, %s132
      %p134 = scmp.eq.s32.totalorder %s133, 0
      %s136 = sadd.s32 %s135, 1
      %s137 = scalar_select %p134, %s135, %s136
      %p140 = pneg %p134
      %p141 = scmp.eq.s32.totalorder %s15, 1
      %p142 = por %p140, %p141
      %p143 = scmp.ne.s32.totalorder %s135, %s138
      %p144 = scmp.eq.s32.totalorder %s15, 0
      %p145 = por %p143, %p144
      %p146 = scmp.ne.s32.totalorder %s135, %s138
      %p147 = scmp.eq.s32.totalorder %s20, 1
      %p148 = por %p146, %p147
      %p149 = scmp.ne.s32.totalorder %s138, %s139
      %p150 = scmp.eq.s32.totalorder %s20, 0
      %p151 = por %p149, %p150
      %p152 = scmp.ne.s32.totalorder %s138, %s139
      %p153 = scmp.eq.s32.totalorder %s21, 1
      %p154 = por %p152, %p153
      %p156 = scmp.ne.s32.totalorder %s139, %s155
      %p157 = scmp.eq.s32.totalorder %s21, 0
      %p158 = por %p156, %p157
      %s159 = ssub.s32 %s22, %s34
      %s160 = ssub.s32 %s23, %s30
      %s161 = sor.u32 %s159, %s160
      %p162 = scmp.eq.s32.totalorder %s161, 0
      %s164 = sadd.s32 %s163, 1
      %s165 = scalar_select %p162, %s163, %s164
      %p168 = pneg %p162
      %p169 = scmp.eq.s32.totalorder %s15, 1
      %p170 = por %p168, %p169
      %p171 = scmp.ne.s32.totalorder %s163, %s166
      %p172 = scmp.eq.s32.totalorder %s15, 0
      %p173 = por %p171, %p172
      %p174 = scmp.ne.s32.totalorder %s163, %s166
      %p175 = scmp.eq.s32.totalorder %s20, 1
      %p176 = por %p174, %p175
      %p177 = scmp.ne.s32.totalorder %s166, %s167
      %p178 = scmp.eq.s32.totalorder %s20, 0
      %p179 = por %p177, %p178
      %p180 = scmp.ne.s32.totalorder %s166, %s167
      %p181 = scmp.eq.s32.totalorder %s21, 1
      %p182 = por %p180, %p181
      %p184 = scmp.ne.s32.totalorder %s167, %s183
      %p185 = scmp.eq.s32.totalorder %s21, 0
      %p186 = por %p184, %p185
      %p187 = scmp.le.s32.totalorder 1, %s15
      %p188 = scmp.lt.s32.totalorder %s15, 3
      %p189 = pnand %p187, %p188
      %p190 = pneg %p189
      // Predicated region
      $region9: #{decoder_layer.8} parent=5 // pred_check
        _
      $region10: #{decoder_layer.8} parent=5 // pred_check_branch
        %192 = sbr.rel (%p189) target = $region12
      $region11: #{decoder_layer.8} parent=5 // pred_region
        %s193 = ssub.s32 %s15, 1
        // Predicated region
        $region13: #{decoder_layer.8} parent=11 // pred_check
          %p194 = pneg %p76
        $region14: #{decoder_layer.8} parent=11 // pred_check_branch
          %196 = sbr.rel (%p194) target = $region16
        $region15: #{decoder_layer.8} parent=11 // pred_region
          %198 = vsyncadd [#allocation3], 0
          %s199 = sshll.u32 %s1, 4
          %s200 = int_to_ptr.hbm [resolvable:$true] %s199
          %s201 = sshll.u32 [#allocation2], 4
          %s202 = int_to_ptr.vmem [resolvable:$true] %s201
          %207 = dma.hbm_to_vmem [thread:$0]  %s200, 512, %s202, [#allocation3], 128, 128, 8
        $region16: #{decoder_layer.8} parent=11 // pred_fallthru
          _
        // Predicated region
        $region17: #{decoder_layer.8} parent=11 // pred_check
          %p208 = pneg %p97
        $region18: #{decoder_layer.8} parent=11 // pred_check_branch
          %210 = sbr.rel (%p208) target = $region20
        $region19: #{decoder_layer.8} parent=11 // pred_region
          _
        $region20: #{decoder_layer.8} parent=11 // pred_fallthru
          _
      $region12: #{decoder_layer.8} parent=5 // pred_fallthru
        _
      %p211 = scmp.lt.s32.totalorder %s15, 2
      // Predicated region
      $region21: #{decoder_layer.8} parent=5 // pred_check
        %p212 = pneg %p211
      $region22: #{decoder_layer.8} parent=5 // pred_check_branch
        %214 = sbr.rel (%p212) target = $region24
      $region23: #{decoder_layer.8} parent=5 // pred_region
        // Predicated region
        $region25: #{decoder_layer.8} parent=23 // pred_check
          %p215 = pneg %p49
        $region26: #{decoder_layer.8} parent=23 // pred_check_branch
          %217 = sbr.rel (%p215) target = $region28
        $region27: #{decoder_layer.8} parent=23 // pred_region
          %p218 = scmp.lt.s32.totalorder %s22, 1
          %s219 = scalar_select %p218, %s22, 1
          %p220 = scmp.lt.s32.totalorder %s23, 0
          %s221 = scalar_select %p220, %s23, 0
          %s222 = sadd.s32 %s221, %s219
          %s223 = smul.addr %s222, 8
          %s224 = scalar_lea.vmem %s0, %s223
        $region28: #{decoder_layer.8} parent=23 // pred_fallthru
          _
        // Predicated region
        $region29: #{decoder_layer.8} parent=23 // pred_check
          %p225 = pneg %p117
        $region30: #{decoder_layer.8} parent=23 // pred_check_branch
          %227 = sbr.rel (%p225) target = $region32
        $region31: #{decoder_layer.8} parent=23 // pred_region
          %p228 = scmp.lt.s32.totalorder %s22, 1
          %s229 = scalar_select %p228, %s22, 1
          %s230 = smul.addr %s229, 8
          %s231 = scalar_lea.vmem %s3, %s230
        $region32: #{decoder_layer.8} parent=23 // pred_fallthru
          _
        // Predicated region
        $region33: #{decoder_layer.8} parent=23 // pred_check
          %p232 = pneg %p145
        $region34: #{decoder_layer.8} parent=23 // pred_check_branch
          %234 = sbr.rel (%p232) target = $region36
        $region35: #{decoder_layer.8} parent=23 // pred_region
          %s235 = sand.u32 %s135, 1
          %s236 = scalar_lea.sflag [#allocation5], %s235
          %s237 = sand.u32 %s135, 1
          %s238 = smul.addr %s237, 8
          %s239 = scalar_lea.vmem [#allocation4], %s238
          %241 = vsyncadd %s236, 0
          %s242 = sadd.s32 %s23, %s22
          %s243 = smul.addr %s242, 8
          %s244 = scalar_lea.hbm %s4, %s243
          %s246 = sshll.u32 %s244, 4
          %s247 = int_to_ptr.hbm [resolvable:$true] %s246
          %s248 = sshll.u32 %s239, 4
          %s249 = int_to_ptr.vmem [resolvable:$true] %s248
          %251 = dma.hbm_to_vmem [thread:$0]  %s247, 128, %s249, %s236
        $region36: #{decoder_layer.8} parent=23 // pred_fallthru
          _
      $region24: #{decoder_layer.8} parent=5 // pred_fallthru
        _
      %p252 = scmp.le.s32.totalorder 1, %s15
      %p253 = scmp.lt.s32.totalorder %s15, 3
      %p254 = pnand %p252, %p253
      %p255 = pneg %p254
      // Predicated region
      $region37: #{decoder_layer.8} parent=5 // pred_check
        _
      $region38: #{decoder_layer.8} parent=5 // pred_check_branch
        %257 = sbr.rel (%p254) target = $region40
      $region39: #{decoder_layer.8} parent=5 // pred_region
        %s258 = ssub.s32 %s15, 1
        // Predicated region
        $region41: #{decoder_layer.8} parent=39 // pred_check
          %p259 = pneg %p76
        $region42: #{decoder_layer.8} parent=39 // pred_check_branch
          %261 = sbr.rel (%p259) target = $region44
        $region43: #{decoder_layer.8} parent=39 // pred_region
          %263 = dma.done [#allocation3], 512
        $region44: #{decoder_layer.8} parent=39 // pred_fallthru
          _
        %s264 = sand.u32 %s138, 1
        %s265 = scalar_lea.sflag [#allocation5], %s264
        %s266 = sand.u32 %s138, 1
        %s267 = smul.addr %s266, 8
        %s268 = scalar_lea.vmem [#allocation4], %s267
        // Predicated region
        $region45: #{decoder_layer.8} parent=39 // pred_check
          %p269 = pneg %p151
        $region46: #{decoder_layer.8} parent=39 // pred_check_branch
          %271 = sbr.rel (%p269) target = $region48
        $region47: #{decoder_layer.8} parent=39 // pred_region
          %273 = dma.done %s265, 128
        $region48: #{decoder_layer.8} parent=39 // pred_fallthru
          _
        %p274 = scmp.lt.s32.totalorder %s24, 1
        %s275 = scalar_select %p274, %s24, 1
        %p276 = scmp.lt.s32.totalorder %s25, 0
        %s277 = scalar_select %p276, %s25, 0
        %s278 = sadd.s32 %s277, %s275
        %s279 = smul.addr %s278, 8
        %s280 = scalar_lea.vmem %s0, %s279
        %p281 = pneg %p55
        %p282 = pneg %p52
        %p283 = pneg %p76
        %p284 = pneg %p73
        %p285 = pneg %p97
        %p286 = pneg %p94
        %p287 = scmp.lt.s32.totalorder %s24, 1
        %s288 = scalar_select %p287, %s24, 1
        %s289 = smul.addr %s288, 8
        %s290 = scalar_lea.vmem %s3, %s289
        %p291 = pneg %p123
        %p292 = pneg %p120
        %s293 = sand.u32 %s138, 1
        %s294 = scalar_lea.sflag [#allocation5], %s293
        %s295 = sand.u32 %s138, 1
        %s296 = smul.addr %s295, 8
        %s297 = scalar_lea.vmem [#allocation4], %s296
        %p298 = pneg %p151
        %p299 = pneg %p148
        %p300 = pneg %p179
        %p301 = pneg %p176
        %p302 = scmp.lt.s32.totalorder %s24, 1
        %s303 = scalar_select %p302, %s24, 1
        %p304 = scmp.lt.s32.totalorder %s25, 0
        %s305 = scalar_select %p304, %s25, 0
        %s306 = sadd.s32 %s305, %s303
        %s307 = smul.addr %s306, 8
        %s308 = scalar_lea.vmem %s5, %s307
        %p309 = scmp.lt.s32.totalorder %s24, 1
        %s310 = scalar_select %p309, %s24, 1
        %p311 = scmp.lt.s32.totalorder %s25, 0
        %s312 = scalar_select %p311, %s25, 0
        %s313 = sadd.s32 %s312, %s310
        %s314 = smul.addr %s313, 8
        %s315 = scalar_lea.vmem %s0, %s314
        %p316 = scmp.lt.s32.totalorder %s24, 1
        %s317 = scalar_select %p316, %s24, 1
        %s318 = smul.addr %s317, 8
        %s319 = scalar_lea.vmem %s3, %s318
        %p320 = scmp.lt.s32.totalorder %s24, 1
        %s321 = scalar_select %p320, %s24, 1
        %p322 = scmp.lt.s32.totalorder %s25, 0
        %s323 = scalar_select %p322, %s25, 0
        %s324 = sadd.s32 %s323, %s321
        %s325 = smul.addr %s324, 8
        %s326 = scalar_lea.vmem %s5, %s325
        %v327 = vld [vmem:[%s315] sm:$0xff]
        %v328 = vld [vmem:[#allocation2] sm:$0xff]
        %v329 = vld [vmem:[#allocation2 + $0x8] sm:$0xff]
        %v330 = vld [vmem:[#allocation2 + $0x10] sm:$0xff]
        %v331 = vld [vmem:[#allocation2 + $0x18] sm:$0xff]
        %v332 = vld [vmem:[%s2] sm:$0x1]
        %v334 = vperm.slane %v332, 0
        %vm336 = vcmask 261120
        %v338 = vsel %vm336, %v327, 0
        %340 = vmatpush.msra.mxu0 0.0
        %341 = vmatpush.msra.mxu0 0.0
        %342 = vmatpush.msra.mxu0 0.0
        %343 = vmatpush.msra.mxu0 0.0
        %344 = vmatpush.msra.mxu0 0.0
        %345 = vmatpush.msra.mxu0 0.0
        %346 = vmatpush.msra.mxu0 0.0
        %347 = vmatpush.msra.mxu0 0.0
        %348 = vmatpush.msra.mxu0 0.0
        %349 = vmatpush.msra.mxu0 0.0
        %350 = vmatpush.msra.mxu0 0.0
        %351 = vmatpush.msra.mxu0 0.0
        %352 = vmatpush.msra.mxu0 %v331
        %353 = vmatpush.msra.mxu0 %v330
        %354 = vmatpush.msra.mxu0 %v329
        %355 = vmatpush.msra.mxu0 %v328
        %356 = vmatmul.f32.gmra.mxu0 %v338
        %v357 = vpop.f32.mrf.mxu0
        %v358 = vadd.f32 %v334, %v357
        %359 = vdwg.mxu0
        %v360 = vmul.f32 %v358, 0.35355338
        %v361 = vld [vmem:[%s319] sm:$0xff]
        %v362 = vld [vmem:[%s268] sm:$0xff]
        %vm363 = vcmp.ne.s32.totalorder %v362, 0
        %vm364 = vcmask 64512
        %v366 = vsel %vm364, %v360, 0
        %v369 = vsel %vm364, %v361, 0
        %371 = vmatpush.xpose.msra.mxu0 0.0
        %372 = vmatpush.xpose.msra.mxu0 0.0
        %373 = vmatpush.xpose.msra.mxu0 0.0
        %374 = vmatpush.xpose.msra.mxu0 0.0
        %375 = vmatpush.xpose.msra.mxu0 0.0
        %376 = vmatpush.xpose.msra.mxu0 0.0
        %377 = vmatpush.xpose.msra.mxu0 0.0
        %378 = vmatpush.xpose.msra.mxu0 0.0
        %379 = vmatpush.xpose.msra.mxu0 0.0
        %380 = vmatpush.xpose.msra.mxu0 0.0
        %381 = vmatpush.xpose.msra.mxu0 0.0
        %382 = vmatpush.xpose.msra.mxu0 0.0
        %383 = vmatpush.xpose.msra.mxu0 0.0
        %384 = vmatpush.xpose.msra.mxu0 0.0
        %385 = vmatpush.xpose.msra.mxu0 0.0
        %386 = vmatpush.xpose.msra.mxu0 %v369
        %387 = vmatmul.f32.gmra.mxu0 %v366
        %v388 = vpop.f32.mrf.mxu0
        %v389 = vadd.f32 0.0, %v388
        %390 = vdwg.mxu0
        %v391 = vsel %vm363, %v389, -1e+10
        %v392 = vsel %vm364, %v391, -inf
        %393 = vmax.xlane.f32.xlu0 %v392
        %v394 = vpop.xlane.xlu0 %393
        %v395 = vsub.f32 %v391, %v394
        %v396 = vmul.f32 %v395, 1.442695
        %v397 = vpow.pop %v396
        %v398 = vsel %vm364, %v397, 0.0
        %399 = vadd.xlane.f32.xlu0 %v398
        %v400 = vpop.xlane.xlu0 %399
        %v401 = vrcp.pop %v400
        %v402 = vmul.f32 %v397, %v401
        %403 = vrot.lane.b32.xlu0 %v361, 96
        %v404 = vpop.permute.xlu0 %403
        %v407 = vsel %vm364, %v402, 0
        %409 = vmatpush.msra.mxu0 0.0
        %410 = vmatpush.msra.mxu0 0.0
        %411 = vmatpush.msra.mxu0 0.0
        %412 = vmatpush.msra.mxu0 0.0
        %413 = vmatpush.msra.mxu0 0.0
        %414 = vmatpush.msra.mxu0 0.0
        %415 = vmatpush.msra.mxu0 0.0
        %416 = vmatpush.msra.mxu0 0.0
        %417 = vmatpush.msra.mxu0 0.0
        %418 = vmatpush.msra.mxu0 0.0
        %419 = vmatpush.msra.mxu0 0.0
        %420 = vmatpush.msra.mxu0 0.0
        %421 = vmatpush.msra.mxu0 0.0
        %422 = vmatpush.msra.mxu0 0.0
        %423 = vmatpush.msra.mxu0 0.0
        %424 = vmatpush.msra.mxu0 %v404
        %425 = vmatmul.f32.gmra.mxu0 %v407
        %v426 = vpop.f32.mrf.mxu0
        %v427 = vadd.f32 0.0, %v426
        %428 = vdwg.mxu0
        %429 = vst.msk [vmem:[%s326] sm:$0xff] %vm364, %v427
        %430 = vrot.lane.b32.xlu0 %v360, 120
        %v431 = vpop.permute.xlu0 %430
        %432 = vrot.lane.b32.xlu0 %v361, 120
        %v433 = vpop.permute.xlu0 %432
        %v434 = vsel %vm364, %v431, 0
        %v436 = vsel %vm364, %v433, 0
        %438 = vmatpush.xpose.msra.mxu0 0.0
        %439 = vmatpush.xpose.msra.mxu0 0.0
        %440 = vmatpush.xpose.msra.mxu0 0.0
        %441 = vmatpush.xpose.msra.mxu0 0.0
        %442 = vmatpush.xpose.msra.mxu0 0.0
        %443 = vmatpush.xpose.msra.mxu0 0.0
        %444 = vmatpush.xpose.msra.mxu0 0.0
        %445 = vmatpush.xpose.msra.mxu0 0.0
        %446 = vmatpush.xpose.msra.mxu0 0.0
        %447 = vmatpush.xpose.msra.mxu0 0.0
        %448 = vmatpush.xpose.msra.mxu0 0.0
        %449 = vmatpush.xpose.msra.mxu0 0.0
        %450 = vmatpush.xpose.msra.mxu0 0.0
        %451 = vmatpush.xpose.msra.mxu0 0.0
        %452 = vmatpush.xpose.msra.mxu0 0.0
        %453 = vmatpush.xpose.msra.mxu0 %v436
        %454 = vmatmul.f32.gmra.mxu0 %v434
        %v455 = vpop.f32.mrf.mxu0
        %v456 = vadd.f32 0.0, %v455
        %457 = vdwg.mxu0
        %v458 = vsel %vm363, %v456, -1e+10
        %v459 = vsel %vm364, %v458, -inf
        %460 = vmax.xlane.f32.xlu0 %v459
        %v461 = vpop.xlane.xlu0 %460
        %v462 = vsub.f32 %v458, %v461
        %v463 = vmul.f32 %v462, 1.442695
        %v464 = vpow.pop %v463
        %v465 = vsel %vm364, %v464, 0.0
        %466 = vadd.xlane.f32.xlu0 %v465
        %v467 = vpop.xlane.xlu0 %466
        %v468 = vrcp.pop %v467
        %v469 = vmul.f32 %v464, %v468
        %470 = vrot.lane.b32.xlu0 %v361, 88
        %v471 = vpop.permute.xlu0 %470
        %v474 = vsel %vm364, %v469, 0
        %476 = vmatpush.msra.mxu0 0.0
        %477 = vmatpush.msra.mxu0 0.0
        %478 = vmatpush.msra.mxu0 0.0
        %479 = vmatpush.msra.mxu0 0.0
        %480 = vmatpush.msra.mxu0 0.0
        %481 = vmatpush.msra.mxu0 0.0
        %482 = vmatpush.msra.mxu0 0.0
        %483 = vmatpush.msra.mxu0 0.0
        %484 = vmatpush.msra.mxu0 0.0
        %485 = vmatpush.msra.mxu0 0.0
        %486 = vmatpush.msra.mxu0 0.0
        %487 = vmatpush.msra.mxu0 0.0
        %488 = vmatpush.msra.mxu0 0.0
        %489 = vmatpush.msra.mxu0 0.0
        %490 = vmatpush.msra.mxu0 0.0
        %491 = vmatpush.msra.mxu0 %v471
        %492 = vmatmul.f32.gmra.mxu0 %v474
        %v493 = vpop.f32.mrf.mxu0
        %v494 = vadd.f32 0.0, %v493
        %495 = vdwg.mxu0
        %497 = vrot.lane.b32.xlu0 %v494, 8
        %v498 = vpop.permute.xlu0 %497
        %vm500 = vcmask 130112
        %501 = vst.msk [vmem:[%s326] sm:$0xff] %vm500, %v498
        %502 = vrot.lane.b32.xlu0 %v360, 112
        %v503 = vpop.permute.xlu0 %502
        %504 = vrot.lane.b32.xlu0 %v361, 112
        %v505 = vpop.permute.xlu0 %504
        %v506 = vsel %vm364, %v503, 0
        %v508 = vsel %vm364, %v505, 0
        %510 = vmatpush.xpose.msra.mxu0 0.0
        %511 = vmatpush.xpose.msra.mxu0 0.0
        %512 = vmatpush.xpose.msra.mxu0 0.0
        %513 = vmatpush.xpose.msra.mxu0 0.0
        %514 = vmatpush.xpose.msra.mxu0 0.0
        %515 = vmatpush.xpose.msra.mxu0 0.0
        %516 = vmatpush.xpose.msra.mxu0 0.0
        %517 = vmatpush.xpose.msra.mxu0 0.0
        %518 = vmatpush.xpose.msra.mxu0 0.0
        %519 = vmatpush.xpose.msra.mxu0 0.0
        %520 = vmatpush.xpose.msra.mxu0 0.0
        %521 = vmatpush.xpose.msra.mxu0 0.0
        %522 = vmatpush.xpose.msra.mxu0 0.0
        %523 = vmatpush.xpose.msra.mxu0 0.0
        %524 = vmatpush.xpose.msra.mxu0 0.0
        %525 = vmatpush.xpose.msra.mxu0 %v508
        %526 = vmatmul.f32.gmra.mxu0 %v506
        %v527 = vpop.f32.mrf.mxu0
        %v528 = vadd.f32 0.0, %v527
        %529 = vdwg.mxu0
        %v530 = vsel %vm363, %v528, -1e+10
        %v531 = vsel %vm364, %v530, -inf
        %532 = vmax.xlane.f32.xlu0 %v531
        %v533 = vpop.xlane.xlu0 %532
        %v534 = vsub.f32 %v530, %v533
        %v535 = vmul.f32 %v534, 1.442695
        %v536 = vpow.pop %v535
        %v537 = vsel %vm364, %v536, 0.0
        %538 = vadd.xlane.f32.xlu0 %v537
        %v539 = vpop.xlane.xlu0 %538
        %v540 = vrcp.pop %v539
        %v541 = vmul.f32 %v536, %v540
        %542 = vrot.lane.b32.xlu0 %v361, 80
        %v543 = vpop.permute.xlu0 %542
        %v546 = vsel %vm364, %v541, 0
        %548 = vmatpush.msra.mxu0 0.0
        %549 = vmatpush.msra.mxu0 0.0
        %550 = vmatpush.msra.mxu0 0.0
        %551 = vmatpush.msra.mxu0 0.0
        %552 = vmatpush.msra.mxu0 0.0
        %553 = vmatpush.msra.mxu0 0.0
        %554 = vmatpush.msra.mxu0 0.0
        %555 = vmatpush.msra.mxu0 0.0
        %556 = vmatpush.msra.mxu0 0.0
        %557 = vmatpush.msra.mxu0 0.0
        %558 = vmatpush.msra.mxu0 0.0
        %559 = vmatpush.msra.mxu0 0.0
        %560 = vmatpush.msra.mxu0 0.0
        %561 = vmatpush.msra.mxu0 0.0
        %562 = vmatpush.msra.mxu0 0.0
        %563 = vmatpush.msra.mxu0 %v543
        %564 = vmatmul.f32.gmra.mxu0 %v546
        %v565 = vpop.f32.mrf.mxu0
        %v566 = vadd.f32 0.0, %v565
        %567 = vdwg.mxu0
        %569 = vrot.lane.b32.xlu0 %v566, 16
        %v570 = vpop.permute.xlu0 %569
        %vm572 = vcmask 195712
        %573 = vst.msk [vmem:[%s326] sm:$0xff] %vm572, %v570
        %574 = vrot.lane.b32.xlu0 %v360, 104
        %v575 = vpop.permute.xlu0 %574
        %576 = vrot.lane.b32.xlu0 %v361, 104
        %v577 = vpop.permute.xlu0 %576
        %v578 = vsel %vm364, %v575, 0
        %v580 = vsel %vm364, %v577, 0
        %582 = vmatpush.xpose.msra.mxu0 0.0
        %583 = vmatpush.xpose.msra.mxu0 0.0
        %584 = vmatpush.xpose.msra.mxu0 0.0
        %585 = vmatpush.xpose.msra.mxu0 0.0
        %586 = vmatpush.xpose.msra.mxu0 0.0
        %587 = vmatpush.xpose.msra.mxu0 0.0
        %588 = vmatpush.xpose.msra.mxu0 0.0
        %589 = vmatpush.xpose.msra.mxu0 0.0
        %590 = vmatpush.xpose.msra.mxu0 0.0
        %591 = vmatpush.xpose.msra.mxu0 0.0
        %592 = vmatpush.xpose.msra.mxu0 0.0
        %593 = vmatpush.xpose.msra.mxu0 0.0
        %594 = vmatpush.xpose.msra.mxu0 0.0
        %595 = vmatpush.xpose.msra.mxu0 0.0
        %596 = vmatpush.xpose.msra.mxu0 0.0
        %597 = vmatpush.xpose.msra.mxu0 %v580
        %598 = vmatmul.f32.gmra.mxu0 %v578
        %v599 = vpop.f32.mrf.mxu0
        %v600 = vadd.f32 0.0, %v599
        %601 = vdwg.mxu0
        %v602 = vsel %vm363, %v600, -1e+10
        %v603 = vsel %vm364, %v602, -inf
        %604 = vmax.xlane.f32.xlu0 %v603
        %v605 = vpop.xlane.xlu0 %604
        %v606 = vsub.f32 %v602, %v605
        %v607 = vmul.f32 %v606, 1.442695
        %v608 = vpow.pop %v607
        %v609 = vsel %vm364, %v608, 0.0
        %610 = vadd.xlane.f32.xlu0 %v609
        %v611 = vpop.xlane.xlu0 %610
        %v612 = vrcp.pop %v611
        %v613 = vmul.f32 %v608, %v612
        %614 = vrot.lane.b32.xlu0 %v361, 72
        %v615 = vpop.permute.xlu0 %614
        %v618 = vsel %vm364, %v613, 0
        %620 = vmatpush.msra.mxu0 0.0
        %621 = vmatpush.msra.mxu0 0.0
        %622 = vmatpush.msra.mxu0 0.0
        %623 = vmatpush.msra.mxu0 0.0
        %624 = vmatpush.msra.mxu0 0.0
        %625 = vmatpush.msra.mxu0 0.0
        %626 = vmatpush.msra.mxu0 0.0
        %627 = vmatpush.msra.mxu0 0.0
        %628 = vmatpush.msra.mxu0 0.0
        %629 = vmatpush.msra.mxu0 0.0
        %630 = vmatpush.msra.mxu0 0.0
        %631 = vmatpush.msra.mxu0 0.0
        %632 = vmatpush.msra.mxu0 0.0
        %633 = vmatpush.msra.mxu0 0.0
        %634 = vmatpush.msra.mxu0 0.0
        %635 = vmatpush.msra.mxu0 %v615
        %636 = vmatmul.f32.gmra.mxu0 %v618
        %v637 = vpop.f32.mrf.mxu0
        %v638 = vadd.f32 0.0, %v637
        %639 = vdwg.mxu0
        %641 = vrot.lane.b32.xlu0 %v638, 24
        %v642 = vpop.permute.xlu0 %641
        %vm644 = vcmask 261312
        %645 = vst.msk [vmem:[%s326] sm:$0xff] %vm644, %v642
        %p646 = scmp.lt.s32.totalorder %s24, 1
        %s647 = scalar_select %p646, %s24, 1
        %p648 = scmp.lt.s32.totalorder %s25, 0
        %s649 = scalar_select %p648, %s25, 0
        %s650 = sadd.s32 %s649, %s647
        %s651 = smul.addr %s650, 8
        %s652 = scalar_lea.vmem %s5, %s651
        // Predicated region
        $region49: #{decoder_layer.8} parent=39 // pred_check
          %p653 = pneg %p176
        $region50: #{decoder_layer.8} parent=39 // pred_check_branch
          %655 = sbr.rel (%p653) target = $region52
        $region51: #{decoder_layer.8} parent=39 // pred_region
          _
        $region52: #{decoder_layer.8} parent=39 // pred_fallthru
          _
      $region40: #{decoder_layer.8} parent=5 // pred_fallthru
        _
      %p656 = scmp.le.s32.totalorder 2, %s15
      // Predicated region
      $region53: #{decoder_layer.8} parent=5 // pred_check
        %p657 = pneg %p656
      $region54: #{decoder_layer.8} parent=5 // pred_check_branch
        %659 = sbr.rel (%p657) target = $region56
      $region55: #{decoder_layer.8} parent=5 // pred_region
        %s660 = ssub.s32 %s15, 2
        // Predicated region
        $region57: #{decoder_layer.8} parent=55 // pred_check
          %p661 = pneg %p182
        $region58: #{decoder_layer.8} parent=55 // pred_check_branch
          %663 = sbr.rel (%p661) target = $region60
        $region59: #{decoder_layer.8} parent=55 // pred_region
          %p664 = scmp.lt.s32.totalorder %s26, 1
          %s665 = scalar_select %p664, %s26, 1
          %p666 = scmp.lt.s32.totalorder %s27, 0
          %s667 = scalar_select %p666, %s27, 0
          %s668 = sadd.s32 %s667, %s665
          %s669 = smul.addr %s668, 8
          %s670 = scalar_lea.vmem %s5, %s669
        $region60: #{decoder_layer.8} parent=55 // pred_fallthru
          _
      $region56: #{decoder_layer.8} parent=5 // pred_fallthru
        _
    $region6: #{decoder_layer.8} parent=1 // loop_footer
      %s19 = sadd.s32 1, %s15
    $region7: #{decoder_layer.8} parent=1 // loop_footer_branch
      %14 = sbr.rel target = $region3
    $region8: #{decoder_layer.8} parent=1 // loop_exit
      _
    %671 = vsyncpa [#allocation3], 1
    %s672 = scalar_lea.sflag [#allocation3], 1
    %673 = vsyncpa %s672, 1
    %674 = vsyncpa [#allocation5], 1
    %s675 = scalar_lea.sflag [#allocation5], 1
    %676 = vsyncpa %s675, 1

// kernel: decoder_layer.13
$region0: #{decoder_layer.13}
  #allocation0 [shape = 'u32[]', space=smem, size = 0x4, offset = 0x4, fixed_abs, tag = 'smem constant byte address 0x4 - core index']
  #allocation1 [shape = 'u32[72,128]{1,0:T(1,128)}', space=vmem, size = 0x9000, scoped, tag = 'internal scratch']
  %s0 = inlined_call_operand.vmem [shape: f32[16,32], index: 0, kind: input, shape index: {}]
  %s1 = inlined_call_operand.vmem [shape: f32[32,64], index: 1, kind: input, shape index: {}]
  %s2 = inlined_call_operand.vmem [shape: f32[1,64], index: 2, kind: input, shape index: {}]
  %s3 = inlined_call_operand.vmem [shape: f32[64,32], index: 3, kind: input, shape index: {}]
  %s4 = inlined_call_operand.vmem [shape: f32[1,32], index: 4, kind: input, shape index: {}]
  %s5 = inlined_call_operand.vmem [shape: f32[1,32], index: 5, kind: input, shape index: {}]
  %s6 = inlined_call_operand.vmem [shape: f32[1,32], index: 6, kind: input, shape index: {}]
  %s7 = inlined_call_operand.hbm [shape: f32[16,32], index: 7, kind: output, shape index: {}]
  %s8 = sld [smem:[#allocation0]]
  $region38: #{decoder_layer.13} parent=0
    _
  %s10 = ssub.s32 1, %s8
  %s11 = scalar_select 0, %s10, %s8
  $region1: #{decoder_layer.13} parent=0
    #allocation2 [shape = 'u8[8192]{0}', space=vmem, size = 0x2000, scoped, tag = 'output window, operand 0, single buffered']
    #allocation3 [shape = 's32[1]{0}', space=sflag, size = 0x4, scoped, tag = 'scoped memory for decoder_layer.13']
    %12 = vsyncpa [#allocation3], 0
    // Predicated region
    $region2: #{decoder_layer.13} parent=1 // pred_check
      _
    $region3: #{decoder_layer.13} parent=1 // pred_check_branch
      %14 = sbr.rel (0) target = $region5
    $region4: #{decoder_layer.13} parent=1 // pred_region
      _
    $region5: #{decoder_layer.13} parent=1 // pred_fallthru
      _
    // Predicated region
    $region6: #{decoder_layer.13} parent=1 // pred_check
      _
    $region7: #{decoder_layer.13} parent=1 // pred_check_branch
      %16 = sbr.rel (0) target = $region9
    $region8: #{decoder_layer.13} parent=1 // pred_region
      _
    $region9: #{decoder_layer.13} parent=1 // pred_fallthru
      _
    // Predicated region
    $region10: #{decoder_layer.13} parent=1 // pred_check
      _
    $region11: #{decoder_layer.13} parent=1 // pred_check_branch
      %18 = sbr.rel (0) target = $region13
    $region12: #{decoder_layer.13} parent=1 // pred_region
      _
    $region13: #{decoder_layer.13} parent=1 // pred_fallthru
      _
    // Predicated region
    $region14: #{decoder_layer.13} parent=1 // pred_check
      _
    $region15: #{decoder_layer.13} parent=1 // pred_check_branch
      %20 = sbr.rel (0) target = $region17
    $region16: #{decoder_layer.13} parent=1 // pred_region
      _
    $region17: #{decoder_layer.13} parent=1 // pred_fallthru
      _
    // Predicated region
    $region18: #{decoder_layer.13} parent=1 // pred_check
      _
    $region19: #{decoder_layer.13} parent=1 // pred_check_branch
      %22 = sbr.rel (0) target = $region21
    $region20: #{decoder_layer.13} parent=1 // pred_region
      _
    $region21: #{decoder_layer.13} parent=1 // pred_fallthru
      _
    // Predicated region
    $region22: #{decoder_layer.13} parent=1 // pred_check
      _
    $region23: #{decoder_layer.13} parent=1 // pred_check_branch
      %24 = sbr.rel (0) target = $region25
    $region24: #{decoder_layer.13} parent=1 // pred_region
      _
    $region25: #{decoder_layer.13} parent=1 // pred_fallthru
      _
    // Predicated region
    $region26: #{decoder_layer.13} parent=1 // pred_check
      _
    $region27: #{decoder_layer.13} parent=1 // pred_check_branch
      %26 = sbr.rel (0) target = $region29
    $region28: #{decoder_layer.13} parent=1 // pred_region
      _
    $region29: #{decoder_layer.13} parent=1 // pred_fallthru
      _
    %v27 = vld [vmem:[%s0] sm:$0xff]
    %v28 = vld [vmem:[%s0 + $0x8] sm:$0xff]
    %v29 = vld [vmem:[%s1] sm:$0xff]
    %v30 = vld [vmem:[%s1 + $0x8] sm:$0xff]
    %v31 = vld [vmem:[%s1 + $0x10] sm:$0xff]
    %v32 = vld [vmem:[%s1 + $0x18] sm:$0xff]
    %v33 = vld [vmem:[%s2] sm:$0x1]
    %v35 = vperm.slane %v33, 0
    %vm37 = vcmask 261120
    %v39 = vsel %vm37, %v27, 0
    %v42 = vsel %vm37, %v28, 0
    %44 = vmatpush.msra.mxu0 0.0
    %45 = vmatpush.msra.mxu0 0.0
    %46 = vmatpush.msra.mxu0 0.0
    %47 = vmatpush.msra.mxu0 0.0
    %48 = vmatpush.msra.mxu0 0.0
    %49 = vmatpush.msra.mxu0 0.0
    %50 = vmatpush.msra.mxu0 0.0
    %51 = vmatpush.msra.mxu0 0.0
    %52 = vmatpush.msra.mxu0 0.0
    %53 = vmatpush.msra.mxu0 0.0
    %54 = vmatpush.msra.mxu0 0.0
    %55 = vmatpush.msra.mxu0 0.0
    %56 = vmatpush.msra.mxu0 %v32
    %57 = vmatpush.msra.mxu0 %v31
    %58 = vmatpush.msra.mxu0 %v30
    %59 = vmatpush.msra.mxu0 %v29
    %60 = vmatmul.f32.gmra.mxu0 %v39
    %v61 = vpop.f32.mrf.mxu0
    %v62 = vadd.f32 %v35, %v61
    %63 = vmatmul.f32.gmra.mxu0 %v42
    %v64 = vpop.f32.mrf.mxu0
    %v65 = vadd.f32 %v35, %v64
    %66 = vdwg.mxu0
    %v67 = vmax.f32 %v62, 0.0
    %v68 = vmax.f32 %v65, 0.0
    %v69 = vld [vmem:[%s3] sm:$0xff]
    %v70 = vld [vmem:[%s3 + $0x8] sm:$0xff]
    %v71 = vld [vmem:[%s3 + $0x10] sm:$0xff]
    %v72 = vld [vmem:[%s3 + $0x18] sm:$0xff]
    %v73 = vld [vmem:[%s3 + $0x20] sm:$0xff]
    %v74 = vld [vmem:[%s3 + $0x28] sm:$0xff]
    %v75 = vld [vmem:[%s3 + $0x30] sm:$0xff]
    %v76 = vld [vmem:[%s3 + $0x38] sm:$0xff]
    %v77 = vld [vmem:[%s4] sm:$0x1]
    %v79 = vperm.slane %v77, 0
    %vm81 = vcmask 523264
    %v83 = vsel %vm81, %v67, 0
    %v86 = vsel %vm81, %v68, 0
    %88 = vmatpush.msra.mxu0 0.0
    %89 = vmatpush.msra.mxu0 0.0
    %90 = vmatpush.msra.mxu0 0.0
    %91 = vmatpush.msra.mxu0 0.0
    %92 = vmatpush.msra.mxu0 0.0
    %93 = vmatpush.msra.mxu0 0.0
    %94 = vmatpush.msra.mxu0 0.0
    %95 = vmatpush.msra.mxu0 0.0
    %96 = vmatpush.msra.mxu0 %v76
    %97 = vmatpush.msra.mxu0 %v75
    %98 = vmatpush.msra.mxu0 %v74
    %99 = vmatpush.msra.mxu0 %v73
    %100 = vmatpush.msra.mxu0 %v72
    %101 = vmatpush.msra.mxu0 %v71
    %102 = vmatpush.msra.mxu0 %v70
    %103 = vmatpush.msra.mxu0 %v69
    %104 = vmatmul.f32.gmra.mxu0 %v83
    %v105 = vpop.f32.mrf.mxu0
    %v106 = vadd.f32 %v79, %v105
    %107 = vmatmul.f32.gmra.mxu0 %v86
    %v108 = vpop.f32.mrf.mxu0
    %v109 = vadd.f32 %v79, %v108
    %110 = vdwg.mxu0
    %v111 = vadd.f32 %v27, %v106
    %v112 = vadd.f32 %v28, %v109
    %v113 = vsel %vm37, %v111, 0.0
    %114 = vadd.xlane.f32.xlu0 %v113
    %v115 = vpop.xlane.xlu0 %114
    %v116 = vsel %vm37, %v112, 0.0
    %117 = vadd.xlane.f32.xlu0 %v116
    %v118 = vpop.xlane.xlu0 %117
    %v119 = vrcp.pop 32.0
    %v120 = vmul.f32 32.0, %v119
    %v121 = vsub.f32 1.0, %v120
    %v122 = vmul.f32 %v119, %v121
    %v123 = vadd.f32 %v119, %v122
    %vm124 = vweird.f32 %v119
    %v125 = vsel %vm124, %v119, %v123
    %v126 = vmul.f32 %v115, %v125
    %v127 = vmul.f32 %v118, %v125
    %v128 = vsub.f32 %v111, %v126
    %v129 = vsub.f32 %v112, %v127
    %v130 = vmul.f32 %v128, %v128
    %v131 = vmul.f32 %v129, %v129
    %v132 = vsel %vm37, %v130, 0.0
    %133 = vadd.xlane.f32.xlu0 %v132
    %v134 = vpop.xlane.xlu0 %133
    %v135 = vsel %vm37, %v131, 0.0
    %136 = vadd.xlane.f32.xlu0 %v135
    %v137 = vpop.xlane.xlu0 %136
    %v138 = vmul.f32 %v134, %v125
    %v139 = vmul.f32 %v137, %v125
    %v140 = vadd.f32 %v138, 1e-05
    %v141 = vadd.f32 %v139, 1e-05
    %v142 = vrsqrt.pop %v140
    %v143 = vmul.f32 %v142, %v140
    %v144 = vmul.f32 %v143, %v142
    %v145 = vmul.f32 0.5, %v144
    %v146 = vsub.f32 1.5, %v145
    %v147 = vmul.f32 %v142, %v146
    %vm148 = vweird.f32 %v140
    %vm149 = vweird.f32 %v142
    %vm150 = vmor %vm148, %vm149
    %v151 = vsel %vm150, %v142, %v147
    %v152 = vrsqrt.pop %v141
    %v153 = vmul.f32 %v152, %v141
    %v154 = vmul.f32 %v153, %v152
    %v155 = vmul.f32 0.5, %v154
    %v156 = vsub.f32 1.5, %v155
    %v157 = vmul.f32 %v152, %v156
    %vm158 = vweird.f32 %v141
    %vm159 = vweird.f32 %v152
    %vm160 = vmor %vm158, %vm159
    %v161 = vsel %vm160, %v152, %v157
    %v162 = vmul.f32 %v128, %v151
    %v163 = vmul.f32 %v129, %v161
    %v164 = vld [vmem:[%s5] sm:$0x1]
    %v166 = vperm.slane %v164, 0
    %v168 = vmul.f32 %v162, %v166
    %v169 = vmul.f32 %v163, %v166
    %v170 = vld [vmem:[%s6] sm:$0x1]
    %v172 = vperm.slane %v170, 0
    %v174 = vadd.f32 %v168, %v172
    %v175 = vadd.f32 %v169, %v172
    %176 = vst.msk [vmem:[#allocation2] sm:$0xff] %vm37, %v174
    %177 = vst.msk [vmem:[#allocation2 + $0x8] sm:$0xff] %vm37, %v175
    // Predicated region
    $region30: #{decoder_layer.13} parent=1 // pred_check
      _
    $region31: #{decoder_layer.13} parent=1 // pred_check_branch
      %179 = sbr.rel (0) target = $region33
    $region32: #{decoder_layer.13} parent=1 // pred_region
      %181 = vsyncadd [#allocation3], 0
      %s182 = sshll.u32 [#allocation2], 4
      %s183 = int_to_ptr.vmem [resolvable:$true] %s182
      %s184 = sshll.u32 %s7, 4
      %s185 = int_to_ptr.hbm [resolvable:$true] %s184
      %190 = dma.vmem_to_hbm [thread:$0]  %s183, 256, %s185, [#allocation3], 128, 128, 8
    $region33: #{decoder_layer.13} parent=1 // pred_fallthru
      _
    // Predicated region
    $region34: #{decoder_layer.13} parent=1 // pred_check
      _
    $region35: #{decoder_layer.13} parent=1 // pred_check_branch
      %192 = sbr.rel (0) target = $region37
    $region36: #{decoder_layer.13} parent=1 // pred_region
      %194 = dma.done [#allocation3], 256
    $region37: #{decoder_layer.13} parent=1 // pred_fallthru
      _
    %195 = vsyncpa [#allocation3], 1

// kernel: decoder_layer.11
$region0: #{decoder_layer.11}
  #allocation0 [shape = 'u32[]', space=smem, size = 0x4, offset = 0x4, fixed_abs, tag = 'smem constant byte address 0x4 - core index']
  #allocation1 [shape = 'u32[72,128]{1,0:T(1,128)}', space=vmem, size = 0x9000, scoped, tag = 'internal scratch']
  %s0 = inlined_call_operand.vmem [shape: f32[2,8,32], index: 0, kind: input, shape index: {}]
  %s1 = inlined_call_operand.hbm [shape: f32[32,32], index: 1, kind: input, shape index: {}]
  %s2 = inlined_call_operand.hbm [shape: f32[1,32], index: 2, kind: input, shape index: {}]
  %s3 = inlined_call_operand.vmem [shape: f32[2,16,64], index: 3, kind: input, shape index: {}]
  %s4 = inlined_call_operand.hbm [shape: s32[2,1,16], index: 4, kind: input, shape index: {}]
  %s5 = inlined_call_operand.vmem [shape: f32[2,8,32], index: 5, kind: output, shape index: {0}]
  %s6 = inlined_call_operand.hbm [shape: f32[2,4,8,16], index: 6, kind: output, shape index: {1}]
  %7 = xla_tuple %s5, %s6
  %s8 = sld [smem:[#allocation0]]
  $region73: #{decoder_layer.11} parent=0
    _
  %s10 = ssub.s32 1, %s8
  %s11 = scalar_select 0, %s10, %s8
  $region1: #{decoder_layer.11} parent=0
    #allocation2 [shape = 'u8[16384]{0}', space=vmem, size = 0x4000, scoped, tag = 'input window, operand 1, single buffered']
    #allocation3 [shape = 's32[2]{0}', space=sflag, size = 0x8, scoped, tag = 'scoped memory for decoder_layer.11']
    #allocation4 [shape = 's32[2]{0}', space=sflag, size = 0x8, scoped, tag = 'scoped memory for decoder_layer.11']
    #allocation5 [shape = 'u8[512]{0}', space=vmem, size = 0x400, scoped, tag = 'input window, operand 2, single buffered']
    #allocation6 [shape = 's32[1]{0}', space=sflag, size = 0x4, scoped, tag = 'scoped memory for decoder_layer.11']
    #allocation7 [shape = 'u8[1024]{0}', space=vmem, size = 0x400, scoped, tag = 'input window, operand 4']
    #allocation8 [shape = 'u8[32768]{0}', space=vmem, size = 0x8000, scoped, tag = 'output window, operand 1']
    %12 = vsyncpa [#allocation3], 0
    %13 = vsyncpa [#allocation6], 0
    %14 = vsyncpa [#allocation4], 0
    %s15 = scalar_lea.sflag [#allocation4], 1
    %16 = vsyncpa %s15, 0
    loop: start=0, step=1, limit=4
    $region2: #{decoder_layer.11} parent=1 // loop_pre_header
      _
    $region3: #{decoder_layer.11} parent=1 // loop_header
      %s18 = sphi 0, %s22
      %p19 = scmp.ge.s32.totalorder %s18, 4
      %s25 = sphi 0, %s37
      %s26 = sphi 0, %s33
      %s27 = sphi 0, %s25
      %s28 = sphi 0, %s26
      %s29 = sphi 0, %s27
      %s30 = sphi 0, %s28
      %s42 = sphi 0, %s44
      %s45 = sphi 0, %s42
      %s46 = sphi 0, %s45
      %s62 = sphi 0, %s46
      %s66 = sphi 0, %s66
      %s68 = sphi 0, %s66
      %s69 = sphi 0, %s68
      %s83 = sphi 0, %s69
      %s87 = sphi 0, %s87
      %s89 = sphi 0, %s87
      %s90 = sphi 0, %s89
      %s104 = sphi 0, %s90
      %s110 = sphi 0, %s112
      %s113 = sphi 0, %s110
      %s114 = sphi 0, %s113
      %s130 = sphi 0, %s114
      %s136 = sphi 0, %s138
      %s139 = sphi 0, %s136
      %s140 = sphi 0, %s139
      %s156 = sphi 0, %s140
      %s164 = sphi 0, %s166
      %s167 = sphi 0, %s164
      %s168 = sphi 0, %s167
      %s184 = sphi 0, %s168
      %s192 = sphi 0, %s194
      %s195 = sphi 0, %s192
      %s196 = sphi 0, %s195
      %s212 = sphi 0, %s196
    $region4: #{decoder_layer.11} parent=1 // loop_header_branch
      %21 = sbr.rel (%p19) target = $region8
    $region5: #{decoder_layer.11} parent=1 // loop_body
      %s23 = ssub.s32 %s18, 1
      %s24 = ssub.s32 %s18, 2
      %s31 = sadd.s32 1, %s26
      %p32 = scmp.ge.s32.totalorder %s31, 1
      %s33 = scalar_select %p32, 0, %s31
      %s34 = sadd.s32 1, %s25
      %s35 = scalar_select %p32, %s34, %s25
      %p36 = scmp.ge.s32.totalorder %s35, 2
      %s37 = scalar_select %p36, 0, %s35
      %s38 = ssub.s32 %s25, %s37
      %s39 = ssub.s32 %s26, %s33
      %s40 = sor.u32 %s38, %s39
      %p41 = scmp.eq.s32.totalorder %s40, 0
      %s43 = sadd.s32 %s42, 1
      %s44 = scalar_select %p41, %s42, %s43
      %p47 = pneg %p41
      %p48 = scmp.eq.s32.totalorder %s18, 1
      %p49 = por %p47, %p48
      %p50 = scmp.ne.s32.totalorder %s42, %s45
      %p51 = scmp.eq.s32.totalorder %s18, 0
      %p52 = por %p50, %p51
      %p53 = scmp.ne.s32.totalorder %s42, %s45
      %p54 = scmp.eq.s32.totalorder %s23, 1
      %p55 = por %p53, %p54
      %p56 = scmp.ne.s32.totalorder %s45, %s46
      %p57 = scmp.eq.s32.totalorder %s23, 0
      %p58 = por %p56, %p57
      %p59 = scmp.ne.s32.totalorder %s45, %s46
      %p60 = scmp.eq.s32.totalorder %s24, 1
      %p61 = por %p59, %p60
      %p63 = scmp.ne.s32.totalorder %s46, %s62
      %p64 = scmp.eq.s32.totalorder %s24, 0
      %p65 = por %p63, %p64
      %s67 = sadd.s32 %s66, 1
      %p70 = scmp.eq.s32.totalorder %s18, 1
      %p71 = scmp.ne.s32.totalorder %s66, %s68
      %p72 = scmp.eq.s32.totalorder %s18, 0
      %p73 = por %p71, %p72
      %p74 = scmp.ne.s32.totalorder %s66, %s68
      %p75 = scmp.eq.s32.totalorder %s23, 1
      %p76 = por %p74, %p75
      %p77 = scmp.ne.s32.totalorder %s68, %s69
      %p78 = scmp.eq.s32.totalorder %s23, 0
      %p79 = por %p77, %p78
      %p80 = scmp.ne.s32.totalorder %s68, %s69
      %p81 = scmp.eq.s32.totalorder %s24, 1
      %p82 = por %p80, %p81
      %p84 = scmp.ne.s32.totalorder %s69, %s83
      %p85 = scmp.eq.s32.totalorder %s24, 0
      %p86 = por %p84, %p85
      %s88 = sadd.s32 %s87, 1
      %p91 = scmp.eq.s32.totalorder %s18, 1
      %p92 = scmp.ne.s32.totalorder %s87, %s89
      %p93 = scmp.eq.s32.totalorder %s18, 0
      %p94 = por %p92, %p93
      %p95 = scmp.ne.s32.totalorder %s87, %s89
      %p96 = scmp.eq.s32.totalorder %s23, 1
      %p97 = por %p95, %p96
      %p98 = scmp.ne.s32.totalorder %s89, %s90
      %p99 = scmp.eq.s32.totalorder %s23, 0
      %p100 = por %p98, %p99
      %p101 = scmp.ne.s32.totalorder %s89, %s90
      %p102 = scmp.eq.s32.totalorder %s24, 1
      %p103 = por %p101, %p102
      %p105 = scmp.ne.s32.totalorder %s90, %s104
      %p106 = scmp.eq.s32.totalorder %s24, 0
      %p107 = por %p105, %p106
      %s108 = ssub.s32 %s25, %s37
      %p109 = scmp.eq.s32.totalorder %s108, 0
      %s111 = sadd.s32 %s110, 1
      %s112 = scalar_select %p109, %s110, %s111
      %p115 = pneg %p109
      %p116 = scmp.eq.s32.totalorder %s18, 1
      %p117 = por %p115, %p116
      %p118 = scmp.ne.s32.totalorder %s110, %s113
      %p119 = scmp.eq.s32.totalorder %s18, 0
      %p120 = por %p118, %p119
      %p121 = scmp.ne.s32.totalorder %s110, %s113
      %p122 = scmp.eq.s32.totalorder %s23, 1
      %p123 = por %p121, %p122
      %p124 = scmp.ne.s32.totalorder %s113, %s114
      %p125 = scmp.eq.s32.totalorder %s23, 0
      %p126 = por %p124, %p125
      %p127 = scmp.ne.s32.totalorder %s113, %s114
      %p128 = scmp.eq.s32.totalorder %s24, 1
      %p129 = por %p127, %p128
      %p131 = scmp.ne.s32.totalorder %s114, %s130
      %p132 = scmp.eq.s32.totalorder %s24, 0
      %p133 = por %p131, %p132
      %s134 = ssub.s32 %s25, %s37
      %p135 = scmp.eq.s32.totalorder %s134, 0
      %s137 = sadd.s32 %s136, 1
      %s138 = scalar_select %p135, %s136, %s137
      %p141 = pneg %p135
      %p142 = scmp.eq.s32.totalorder %s18, 1
      %p143 = por %p141, %p142
      %p144 = scmp.ne.s32.totalorder %s136, %s139
      %p145 = scmp.eq.s32.totalorder %s18, 0
      %p146 = por %p144, %p145
      %p147 = scmp.ne.s32.totalorder %s136, %s139
      %p148 = scmp.eq.s32.totalorder %s23, 1
      %p149 = por %p147, %p148
      %p150 = scmp.ne.s32.totalorder %s139, %s140
      %p151 = scmp.eq.s32.totalorder %s23, 0
      %p152 = por %p150, %p151
      %p153 = scmp.ne.s32.totalorder %s139, %s140
      %p154 = scmp.eq.s32.totalorder %s24, 1
      %p155 = por %p153, %p154
      %p157 = scmp.ne.s32.totalorder %s140, %s156
      %p158 = scmp.eq.s32.totalorder %s24, 0
      %p159 = por %p157, %p158
      %s160 = ssub.s32 %s25, %s37
      %s161 = ssub.s32 %s26, %s33
      %s162 = sor.u32 %s160, %s161
      %p163 = scmp.eq.s32.totalorder %s162, 0
      %s165 = sadd.s32 %s164, 1
      %s166 = scalar_select %p163, %s164, %s165
      %p169 = pneg %p163
      %p170 = scmp.eq.s32.totalorder %s18, 1
      %p171 = por %p169, %p170
      %p172 = scmp.ne.s32.totalorder %s164, %s167
      %p173 = scmp.eq.s32.totalorder %s18, 0
      %p174 = por %p172, %p173
      %p175 = scmp.ne.s32.totalorder %s164, %s167
      %p176 = scmp.eq.s32.totalorder %s23, 1
      %p177 = por %p175, %p176
      %p178 = scmp.ne.s32.totalorder %s167, %s168
      %p179 = scmp.eq.s32.totalorder %s23, 0
      %p180 = por %p178, %p179
      %p181 = scmp.ne.s32.totalorder %s167, %s168
      %p182 = scmp.eq.s32.totalorder %s24, 1
      %p183 = por %p181, %p182
      %p185 = scmp.ne.s32.totalorder %s168, %s184
      %p186 = scmp.eq.s32.totalorder %s24, 0
      %p187 = por %p185, %p186
      %s188 = ssub.s32 %s25, %s37
      %s189 = ssub.s32 %s26, %s33
      %s190 = sor.u32 %s188, %s189
      %p191 = scmp.eq.s32.totalorder %s190, 0
      %s193 = sadd.s32 %s192, 1
      %s194 = scalar_select %p191, %s192, %s193
      %p197 = pneg %p191
      %p198 = scmp.eq.s32.totalorder %s18, 1
      %p199 = por %p197, %p198
      %p200 = scmp.ne.s32.totalorder %s192, %s195
      %p201 = scmp.eq.s32.totalorder %s18, 0
      %p202 = por %p200, %p201
      %p203 = scmp.ne.s32.totalorder %s192, %s195
      %p204 = scmp.eq.s32.totalorder %s23, 1
      %p205 = por %p203, %p204
      %p206 = scmp.ne.s32.totalorder %s195, %s196
      %p207 = scmp.eq.s32.totalorder %s23, 0
      %p208 = por %p206, %p207
      %p209 = scmp.ne.s32.totalorder %s195, %s196
      %p210 = scmp.eq.s32.totalorder %s24, 1
      %p211 = por %p209, %p210
      %p213 = scmp.ne.s32.totalorder %s196, %s212
      %p214 = scmp.eq.s32.totalorder %s24, 0
      %p215 = por %p213, %p214
      %p216 = scmp.le.s32.totalorder 1, %s18
      %p217 = scmp.lt.s32.totalorder %s18, 3
      %p218 = pnand %p216, %p217
      %p219 = pneg %p218
      // Predicated region
      $region9: #{decoder_layer.11} parent=5 // pred_check
        _
      $region10: #{decoder_layer.11} parent=5 // pred_check_branch
        %221 = sbr.rel (%p218) target = $region12
      $region11: #{decoder_layer.11} parent=5 // pred_region
        %s222 = ssub.s32 %s18, 1
        // Predicated region
        $region13: #{decoder_layer.11} parent=11 // pred_check
          %p223 = pneg %p79
        $region14: #{decoder_layer.11} parent=11 // pred_check_branch
          %225 = sbr.rel (%p223) target = $region16
        $region15: #{decoder_layer.11} parent=11 // pred_region
          %227 = vsyncadd [#allocation3], 0
          %s228 = sshll.u32 %s1, 4
          %s229 = int_to_ptr.hbm [resolvable:$true] %s228
          %s230 = sshll.u32 [#allocation2], 4
          %s231 = int_to_ptr.vmem [resolvable:$true] %s230
          %236 = dma.hbm_to_vmem [thread:$0]  %s229, 512, %s231, [#allocation3], 128, 128, 8
        $region16: #{decoder_layer.11} parent=11 // pred_fallthru
          _
        // Predicated region
        $region17: #{decoder_layer.11} parent=11 // pred_check
          %p237 = pneg %p100
        $region18: #{decoder_layer.11} parent=11 // pred_check_branch
          %239 = sbr.rel (%p237) target = $region20
        $region19: #{decoder_layer.11} parent=11 // pred_region
          %241 = vsyncadd [#allocation6], 0
          %s243 = sshll.u32 %s2, 4
          %s244 = int_to_ptr.hbm [resolvable:$true] %s243
          %s245 = sshll.u32 [#allocation5], 4
          %s246 = int_to_ptr.vmem [resolvable:$true] %s245
          %248 = dma.hbm_to_vmem [thread:$0]  %s244, 16, %s246, [#allocation6]
        $region20: #{decoder_layer.11} parent=11 // pred_fallthru
          _
      $region12: #{decoder_layer.11} parent=5 // pred_fallthru
        _
      %p249 = scmp.lt.s32.totalorder %s18, 2
      // Predicated region
      $region21: #{decoder_layer.11} parent=5 // pred_check
        %p250 = pneg %p249
      $region22: #{decoder_layer.11} parent=5 // pred_check_branch
        %252 = sbr.rel (%p250) target = $region24
      $region23: #{decoder_layer.11} parent=5 // pred_region
        // Predicated region
        $region25: #{decoder_layer.11} parent=23 // pred_check
          %p253 = pneg %p52
        $region26: #{decoder_layer.11} parent=23 // pred_check_branch
          %255 = sbr.rel (%p253) target = $region28
        $region27: #{decoder_layer.11} parent=23 // pred_region
          %p256 = scmp.lt.s32.totalorder %s25, 1
          %s257 = scalar_select %p256, %s25, 1
          %p258 = scmp.lt.s32.totalorder %s26, 0
          %s259 = scalar_select %p258, %s26, 0
          %s260 = sadd.s32 %s259, %s257
          %s261 = smul.addr %s260, 8
          %s262 = scalar_lea.vmem %s0, %s261
        $region28: #{decoder_layer.11} parent=23 // pred_fallthru
          _
        // Predicated region
        $region29: #{decoder_layer.11} parent=23 // pred_check
          %p263 = pneg %p120
        $region30: #{decoder_layer.11} parent=23 // pred_check_branch
          %265 = sbr.rel (%p263) target = $region32
        $region31: #{decoder_layer.11} parent=23 // pred_region
          %p266 = scmp.lt.s32.totalorder %s25, 1
          %s267 = scalar_select %p266, %s25, 1
          %s268 = smul.addr %s267, 2
          %s269 = smul.addr %s268, 8
          %s270 = scalar_lea.vmem %s3, %s269
        $region32: #{decoder_layer.11} parent=23 // pred_fallthru
          _
        // Predicated region
        $region33: #{decoder_layer.11} parent=23 // pred_check
          %p271 = pneg %p146
        $region34: #{decoder_layer.11} parent=23 // pred_check_branch
          %273 = sbr.rel (%p271) target = $region36
        $region35: #{decoder_layer.11} parent=23 // pred_region
          %s274 = sand.u32 %s18, 1
          %s275 = scalar_lea.sflag [#allocation3], %s274
          %s276 = sand.u32 %s136, 1
          %s277 = scalar_lea.vmem [#allocation7], %s276
          %279 = vsyncadd %s275, 0
          %s280 = scalar_lea.hbm %s4, %s25
          %s282 = sshll.u32 %s280, 4
          %s283 = int_to_ptr.hbm [resolvable:$true] %s282
          %s284 = sshll.u32 %s277, 4
          %s285 = int_to_ptr.vmem [resolvable:$true] %s284
          %287 = dma.hbm_to_vmem [thread:$0]  %s283, 16, %s285, %s275
        $region36: #{decoder_layer.11} parent=23 // pred_fallthru
          _
      $region24: #{decoder_layer.11} parent=5 // pred_fallthru
        _
      %p288 = scmp.le.s32.totalorder 1, %s18
      %p289 = scmp.lt.s32.totalorder %s18, 3
      %p290 = pnand %p288, %p289
      %p291 = pneg %p290
      // Predicated region
      $region37: #{decoder_layer.11} parent=5 // pred_check
        _
      $region38: #{decoder_layer.11} parent=5 // pred_check_branch
        %293 = sbr.rel (%p290) target = $region40
      $region39: #{decoder_layer.11} parent=5 // pred_region
        %s294 = ssub.s32 %s18, 1
        // Predicated region
        $region41: #{decoder_layer.11} parent=39 // pred_check
          %p295 = pneg %p79
        $region42: #{decoder_layer.11} parent=39 // pred_check_branch
          %297 = sbr.rel (%p295) target = $region44
        $region43: #{decoder_layer.11} parent=39 // pred_region
          %299 = dma.done [#allocation3], 512
        $region44: #{decoder_layer.11} parent=39 // pred_fallthru
          _
        // Predicated region
        $region45: #{decoder_layer.11} parent=39 // pred_check
          %p300 = pneg %p100
        $region46: #{decoder_layer.11} parent=39 // pred_check_branch
          %302 = sbr.rel (%p300) target = $region48
        $region47: #{decoder_layer.11} parent=39 // pred_region
          %304 = dma.done [#allocation6], 16
        $region48: #{decoder_layer.11} parent=39 // pred_fallthru
          _
        %s305 = sand.u32 %s23, 1
        %s306 = scalar_lea.sflag [#allocation3], %s305
        %s307 = sand.u32 %s139, 1
        %s308 = scalar_lea.vmem [#allocation7], %s307
        // Predicated region
        $region49: #{decoder_layer.11} parent=39 // pred_check
          %p309 = pneg %p152
        $region50: #{decoder_layer.11} parent=39 // pred_check_branch
          %311 = sbr.rel (%p309) target = $region52
        $region51: #{decoder_layer.11} parent=39 // pred_region
          %313 = dma.done %s306, 16
        $region52: #{decoder_layer.11} parent=39 // pred_fallthru
          _
        %p314 = scmp.lt.s32.totalorder %s27, 1
        %s315 = scalar_select %p314, %s27, 1
        %p316 = scmp.lt.s32.totalorder %s28, 0
        %s317 = scalar_select %p316, %s28, 0
        %s318 = sadd.s32 %s317, %s315
        %s319 = smul.addr %s318, 8
        %s320 = scalar_lea.vmem %s0, %s319
        %p321 = pneg %p58
        %p322 = pneg %p55
        %p323 = pneg %p79
        %p324 = pneg %p76
        %p325 = pneg %p100
        %p326 = pneg %p97
        %p327 = scmp.lt.s32.totalorder %s27, 1
        %s328 = scalar_select %p327, %s27, 1
        %s329 = smul.addr %s328, 2
        %s330 = smul.addr %s329, 8
        %s331 = scalar_lea.vmem %s3, %s330
        %p332 = pneg %p126
        %p333 = pneg %p123
        %s334 = sand.u32 %s23, 1
        %s335 = scalar_lea.sflag [#allocation3], %s334
        %s336 = sand.u32 %s139, 1
        %s337 = scalar_lea.vmem [#allocation7], %s336
        %p338 = pneg %p152
        %p339 = pneg %p149
        %p340 = pneg %p180
        %p341 = pneg %p177
        %p342 = scmp.lt.s32.totalorder %s27, 1
        %s343 = scalar_select %p342, %s27, 1
        %p344 = scmp.lt.s32.totalorder %s28, 0
        %s345 = scalar_select %p344, %s28, 0
        %s346 = sadd.s32 %s345, %s343
        %s347 = smul.addr %s346, 8
        %s348 = scalar_lea.vmem %s5, %s347
        %p349 = pneg %p208
        %p350 = pneg %p205
        %s351 = sand.u32 %s195, 1
        %s352 = scalar_lea.sflag [#allocation4], %s351
        %s353 = sand.u32 %s195, 1
        %s354 = smul.addr %s353, 32
        %s355 = scalar_lea.vmem [#allocation8], %s354
        %p356 = scmp.lt.s32.totalorder %s27, 1
        %s357 = scalar_select %p356, %s27, 1
        %p358 = scmp.lt.s32.totalorder %s28, 0
        %s359 = scalar_select %p358, %s28, 0
        %s360 = sadd.s32 %s359, %s357
        %s361 = smul.addr %s360, 8
        %s362 = scalar_lea.vmem %s0, %s361
        %p363 = scmp.lt.s32.totalorder %s27, 1
        %s364 = scalar_select %p363, %s27, 1
        %s365 = smul.addr %s364, 2
        %s366 = smul.addr %s365, 8
        %s367 = scalar_lea.vmem %s3, %s366
        %p368 = scmp.lt.s32.totalorder %s27, 1
        %s369 = scalar_select %p368, %s27, 1
        %p370 = scmp.lt.s32.totalorder %s28, 0
        %s371 = scalar_select %p370, %s28, 0
        %s372 = sadd.s32 %s371, %s369
        %s373 = smul.addr %s372, 8
        %s374 = scalar_lea.vmem %s5, %s373
        %v375 = vld [vmem:[%s362] sm:$0xff]
        %v376 = vld [vmem:[#allocation2] sm:$0xff]
        %v377 = vld [vmem:[#allocation2 + $0x8] sm:$0xff]
        %v378 = vld [vmem:[#allocation2 + $0x10] sm:$0xff]
        %v379 = vld [vmem:[#allocation2 + $0x18] sm:$0xff]
        %v380 = vld [vmem:[#allocation5] sm:$0x1]
        %v382 = vperm.slane %v380, 0
        %vm384 = vcmask 261120
        %v386 = vsel %vm384, %v375, 0
        %388 = vmatpush.msra.mxu0 0.0
        %389 = vmatpush.msra.mxu0 0.0
        %390 = vmatpush.msra.mxu0 0.0
        %391 = vmatpush.msra.mxu0 0.0
        %392 = vmatpush.msra.mxu0 0.0
        %393 = vmatpush.msra.mxu0 0.0
        %394 = vmatpush.msra.mxu0 0.0
        %395 = vmatpush.msra.mxu0 0.0
        %396 = vmatpush.msra.mxu0 0.0
        %397 = vmatpush.msra.mxu0 0.0
        %398 = vmatpush.msra.mxu0 0.0
        %399 = vmatpush.msra.mxu0 0.0
        %400 = vmatpush.msra.mxu0 %v379
        %401 = vmatpush.msra.mxu0 %v378
        %402 = vmatpush.msra.mxu0 %v377
        %403 = vmatpush.msra.mxu0 %v376
        %404 = vmatmul.f32.gmra.mxu0 %v386
        %v405 = vpop.f32.mrf.mxu0
        %v406 = vadd.f32 %v382, %v405
        %407 = vdwg.mxu0
        %v408 = vmul.f32 %v406, 0.35355338
        %v409 = vld [vmem:[%s367] sm:$0xff]
        %v410 = vld [vmem:[%s367 + $0x8] sm:$0xff]
        %v411 = vld [vmem:[%s308] sm:$0x1]
        %vm412 = vcmp.ne.s32.totalorder %v411, 0
        %vm413 = vcmask 64512
        %v415 = vsel %vm413, %v408, 0
        %v418 = vsel %vm413, %v409, 0
        %v421 = vsel %vm413, %v410, 0
        %423 = vmatpush.xpose.msra.mxu0 0.0
        %424 = vmatpush.xpose.msra.mxu0 0.0
        %425 = vmatpush.xpose.msra.mxu0 0.0
        %426 = vmatpush.xpose.msra.mxu0 0.0
        %427 = vmatpush.xpose.msra.mxu0 0.0
        %428 = vmatpush.xpose.msra.mxu0 0.0
        %429 = vmatpush.xpose.msra.mxu0 0.0
        %430 = vmatpush.xpose.msra.mxu0 0.0
        %431 = vmatpush.xpose.msra.mxu0 0.0
        %432 = vmatpush.xpose.msra.mxu0 0.0
        %433 = vmatpush.xpose.msra.mxu0 0.0
        %434 = vmatpush.xpose.msra.mxu0 0.0
        %435 = vmatpush.xpose.msra.mxu0 0.0
        %436 = vmatpush.xpose.msra.mxu0 0.0
        %437 = vmatpush.xpose.msra.mxu0 %v421
        %438 = vmatpush.xpose.msra.mxu0 %v418
        %439 = vmatmul.f32.gmra.mxu0 %v415
        %v440 = vpop.f32.mrf.mxu0
        %v441 = vadd.f32 0.0, %v440
        %442 = vdwg.mxu0
        %v443 = vsel %vm412, 1, 0
        %v444 = vperm.slane %v443, 0
        %vm445 = vcmp.eq.s32.totalorder %v444, 1
        %v446 = vsel %vm445, %v441, -1e+10
        %vm447 = vcmask 130048
        %v448 = vsel %vm447, %v446, -inf
        %449 = vmax.xlane.f32.xlu0 %v448
        %v450 = vpop.xlane.xlu0 %449
        %v451 = vsub.f32 %v446, %v450
        %v452 = vmul.f32 %v451, 1.442695
        %v453 = vpow.pop %v452
        %v454 = vsel %vm447, %v453, 0.0
        %455 = vadd.xlane.f32.xlu0 %v454
        %v456 = vpop.xlane.xlu0 %455
        %v457 = vrcp.pop %v456
        %v458 = vmul.f32 %v456, %v457
        %v459 = vsub.f32 1.0, %v458
        %v460 = vmul.f32 %v457, %v459
        %v461 = vadd.f32 %v457, %v460
        %vm462 = vweird.f32 %v456
        %vm463 = vweird.f32 %v457
        %vm464 = vmor %vm462, %vm463
        %v465 = vsel %vm464, %v457, %v461
        %v466 = vand.u32 2147483647, %v456
        %vm467 = vcmp.eq.f32.partialorder %v466, 8.507059e+37
        %v468 = vand.u32 %v456, 2147483648
        %v469 = vor.u32 1.1754944e-38, %v468
        %v470 = vsel %vm467, %v469, %v465
        %v471 = vmul.f32 %v453, %v470
        %472 = vst.msk [vmem:[%s355] sm:$0xff] %vm447, %v471
        %473 = vrot.lane.b32.xlu0 %v409, 96
        %v474 = vpop.permute.xlu0 %473
        %475 = vrot.lane.b32.xlu0 %v410, 96
        %v476 = vpop.permute.xlu0 %475
        %v480 = vsel %vm447, %v471, 0
        %482 = vmatpush.msra.mxu0 0.0
        %483 = vmatpush.msra.mxu0 0.0
        %484 = vmatpush.msra.mxu0 0.0
        %485 = vmatpush.msra.mxu0 0.0
        %486 = vmatpush.msra.mxu0 0.0
        %487 = vmatpush.msra.mxu0 0.0
        %488 = vmatpush.msra.mxu0 0.0
        %489 = vmatpush.msra.mxu0 0.0
        %490 = vmatpush.msra.mxu0 0.0
        %491 = vmatpush.msra.mxu0 0.0
        %492 = vmatpush.msra.mxu0 0.0
        %493 = vmatpush.msra.mxu0 0.0
        %494 = vmatpush.msra.mxu0 0.0
        %495 = vmatpush.msra.mxu0 0.0
        %496 = vmatpush.msra.mxu0 %v476
        %497 = vmatpush.msra.mxu0 %v474
        %498 = vmatmul.f32.gmra.mxu0 %v480
        %v499 = vpop.f32.mrf.mxu0
        %v500 = vadd.f32 0.0, %v499
        %501 = vdwg.mxu0
        %502 = vst.msk [vmem:[%s374] sm:$0xff] %vm413, %v500
        %503 = vrot.lane.b32.xlu0 %v408, 120
        %v504 = vpop.permute.xlu0 %503
        %505 = vrot.lane.b32.xlu0 %v409, 120
        %v506 = vpop.permute.xlu0 %505
        %507 = vrot.lane.b32.xlu0 %v410, 120
        %v508 = vpop.permute.xlu0 %507
        %v509 = vsel %vm413, %v504, 0
        %v511 = vsel %vm413, %v506, 0
        %v513 = vsel %vm413, %v508, 0
        %515 = vmatpush.xpose.msra.mxu0 0.0
        %516 = vmatpush.xpose.msra.mxu0 0.0
        %517 = vmatpush.xpose.msra.mxu0 0.0
        %518 = vmatpush.xpose.msra.mxu0 0.0
        %519 = vmatpush.xpose.msra.mxu0 0.0
        %520 = vmatpush.xpose.msra.mxu0 0.0
        %521 = vmatpush.xpose.msra.mxu0 0.0
        %522 = vmatpush.xpose.msra.mxu0 0.0
        %523 = vmatpush.xpose.msra.mxu0 0.0
        %524 = vmatpush.xpose.msra.mxu0 0.0
        %525 = vmatpush.xpose.msra.mxu0 0.0
        %526 = vmatpush.xpose.msra.mxu0 0.0
        %527 = vmatpush.xpose.msra.mxu0 0.0
        %528 = vmatpush.xpose.msra.mxu0 0.0
        %529 = vmatpush.xpose.msra.mxu0 %v513
        %530 = vmatpush.xpose.msra.mxu0 %v511
        %531 = vmatmul.f32.gmra.mxu0 %v509
        %v532 = vpop.f32.mrf.mxu0
        %v533 = vadd.f32 0.0, %v532
        %534 = vdwg.mxu0
        %v535 = vsel %vm445, %v533, -1e+10
        %v536 = vsel %vm447, %v535, -inf
        %537 = vmax.xlane.f32.xlu0 %v536
        %v538 = vpop.xlane.xlu0 %537
        %v539 = vsub.f32 %v535, %v538
        %v540 = vmul.f32 %v539, 1.442695
        %v541 = vpow.pop %v540
        %v542 = vsel %vm447, %v541, 0.0
        %543 = vadd.xlane.f32.xlu0 %v542
        %v544 = vpop.xlane.xlu0 %543
        %v545 = vrcp.pop %v544
        %v546 = vmul.f32 %v544, %v545
        %v547 = vsub.f32 1.0, %v546
        %v548 = vmul.f32 %v545, %v547
        %v549 = vadd.f32 %v545, %v548
        %vm550 = vweird.f32 %v544
        %vm551 = vweird.f32 %v545
        %vm552 = vmor %vm550, %vm551
        %v553 = vsel %vm552, %v545, %v549
        %v554 = vand.u32 2147483647, %v544
        %vm555 = vcmp.eq.f32.partialorder %v554, 8.507059e+37
        %v556 = vand.u32 %v544, 2147483648
        %v557 = vor.u32 1.1754944e-38, %v556
        %v558 = vsel %vm555, %v557, %v553
        %v559 = vmul.f32 %v541, %v558
        %s560 = scalar_lea.vmem %s355, 8 [#allocation8]
        %561 = vst.msk [vmem:[%s560] sm:$0xff] %vm447, %v559
        %562 = vrot.lane.b32.xlu0 %v409, 88
        %v563 = vpop.permute.xlu0 %562
        %564 = vrot.lane.b32.xlu0 %v410, 88
        %v565 = vpop.permute.xlu0 %564
        %v569 = vsel %vm447, %v559, 0
        %571 = vmatpush.msra.mxu0 0.0
        %572 = vmatpush.msra.mxu0 0.0
        %573 = vmatpush.msra.mxu0 0.0
        %574 = vmatpush.msra.mxu0 0.0
        %575 = vmatpush.msra.mxu0 0.0
        %576 = vmatpush.msra.mxu0 0.0
        %577 = vmatpush.msra.mxu0 0.0
        %578 = vmatpush.msra.mxu0 0.0
        %579 = vmatpush.msra.mxu0 0.0
        %580 = vmatpush.msra.mxu0 0.0
        %581 = vmatpush.msra.mxu0 0.0
        %582 = vmatpush.msra.mxu0 0.0
        %583 = vmatpush.msra.mxu0 0.0
        %584 = vmatpush.msra.mxu0 0.0
        %585 = vmatpush.msra.mxu0 %v565
        %586 = vmatpush.msra.mxu0 %v563
        %587 = vmatmul.f32.gmra.mxu0 %v569
        %v588 = vpop.f32.mrf.mxu0
        %v589 = vadd.f32 0.0, %v588
        %590 = vdwg.mxu0
        %592 = vrot.lane.b32.xlu0 %v589, 8
        %v593 = vpop.permute.xlu0 %592
        %vm595 = vcmask 130112
        %596 = vst.msk [vmem:[%s374] sm:$0xff] %vm595, %v593
        %597 = vrot.lane.b32.xlu0 %v408, 112
        %v598 = vpop.permute.xlu0 %597
        %599 = vrot.lane.b32.xlu0 %v409, 112
        %v600 = vpop.permute.xlu0 %599
        %601 = vrot.lane.b32.xlu0 %v410, 112
        %v602 = vpop.permute.xlu0 %601
        %v603 = vsel %vm413, %v598, 0
        %v605 = vsel %vm413, %v600, 0
        %v607 = vsel %vm413, %v602, 0
        %609 = vmatpush.xpose.msra.mxu0 0.0
        %610 = vmatpush.xpose.msra.mxu0 0.0
        %611 = vmatpush.xpose.msra.mxu0 0.0
        %612 = vmatpush.xpose.msra.mxu0 0.0
        %613 = vmatpush.xpose.msra.mxu0 0.0
        %614 = vmatpush.xpose.msra.mxu0 0.0
        %615 = vmatpush.xpose.msra.mxu0 0.0
        %616 = vmatpush.xpose.msra.mxu0 0.0
        %617 = vmatpush.xpose.msra.mxu0 0.0
        %618 = vmatpush.xpose.msra.mxu0 0.0
        %619 = vmatpush.xpose.msra.mxu0 0.0
        %620 = vmatpush.xpose.msra.mxu0 0.0
        %621 = vmatpush.xpose.msra.mxu0 0.0
        %622 = vmatpush.xpose.msra.mxu0 0.0
        %623 = vmatpush.xpose.msra.mxu0 %v607
        %624 = vmatpush.xpose.msra.mxu0 %v605
        %625 = vmatmul.f32.gmra.mxu0 %v603
        %v626 = vpop.f32.mrf.mxu0
        %v627 = vadd.f32 0.0, %v626
        %628 = vdwg.mxu0
        %v629 = vsel %vm445, %v627, -1e+10
        %v630 = vsel %vm447, %v629, -inf
        %631 = vmax.xlane.f32.xlu0 %v630
        %v632 = vpop.xlane.xlu0 %631
        %v633 = vsub.f32 %v629, %v632
        %v634 = vmul.f32 %v633, 1.442695
        %v635 = vpow.pop %v634
        %v636 = vsel %vm447, %v635, 0.0
        %637 = vadd.xlane.f32.xlu0 %v636
        %v638 = vpop.xlane.xlu0 %637
        %v639 = vrcp.pop %v638
        %v640 = vmul.f32 %v638, %v639
        %v641 = vsub.f32 1.0, %v640
        %v642 = vmul.f32 %v639, %v641
        %v643 = vadd.f32 %v639, %v642
        %vm644 = vweird.f32 %v638
        %vm645 = vweird.f32 %v639
        %vm646 = vmor %vm644, %vm645
        %v647 = vsel %vm646, %v639, %v643
        %v648 = vand.u32 2147483647, %v638
        %vm649 = vcmp.eq.f32.partialorder %v648, 8.507059e+37
        %v650 = vand.u32 %v638, 2147483648
        %v651 = vor.u32 1.1754944e-38, %v650
        %v652 = vsel %vm649, %v651, %v647
        %v653 = vmul.f32 %v635, %v652
        %s654 = scalar_lea.vmem %s355, 16 [#allocation8]
        %655 = vst.msk [vmem:[%s654] sm:$0xff] %vm447, %v653
        %656 = vrot.lane.b32.xlu0 %v409, 80
        %v657 = vpop.permute.xlu0 %656
        %658 = vrot.lane.b32.xlu0 %v410, 80
        %v659 = vpop.permute.xlu0 %658
        %v663 = vsel %vm447, %v653, 0
        %665 = vmatpush.msra.mxu0 0.0
        %666 = vmatpush.msra.mxu0 0.0
        %667 = vmatpush.msra.mxu0 0.0
        %668 = vmatpush.msra.mxu0 0.0
        %669 = vmatpush.msra.mxu0 0.0
        %670 = vmatpush.msra.mxu0 0.0
        %671 = vmatpush.msra.mxu0 0.0
        %672 = vmatpush.msra.mxu0 0.0
        %673 = vmatpush.msra.mxu0 0.0
        %674 = vmatpush.msra.mxu0 0.0
        %675 = vmatpush.msra.mxu0 0.0
        %676 = vmatpush.msra.mxu0 0.0
        %677 = vmatpush.msra.mxu0 0.0
        %678 = vmatpush.msra.mxu0 0.0
        %679 = vmatpush.msra.mxu0 %v659
        %680 = vmatpush.msra.mxu0 %v657
        %681 = vmatmul.f32.gmra.mxu0 %v663
        %v682 = vpop.f32.mrf.mxu0
        %v683 = vadd.f32 0.0, %v682
        %684 = vdwg.mxu0
        %686 = vrot.lane.b32.xlu0 %v683, 16
        %v687 = vpop.permute.xlu0 %686
        %vm689 = vcmask 195712
        %690 = vst.msk [vmem:[%s374] sm:$0xff] %vm689, %v687
        %691 = vrot.lane.b32.xlu0 %v408, 104
        %v692 = vpop.permute.xlu0 %691
        %693 = vrot.lane.b32.xlu0 %v409, 104
        %v694 = vpop.permute.xlu0 %693
        %695 = vrot.lane.b32.xlu0 %v410, 104
        %v696 = vpop.permute.xlu0 %695
        %v697 = vsel %vm413, %v692, 0
        %v699 = vsel %vm413, %v694, 0
        %v701 = vsel %vm413, %v696, 0
        %703 = vmatpush.xpose.msra.mxu0 0.0
        %704 = vmatpush.xpose.msra.mxu0 0.0
        %705 = vmatpush.xpose.msra.mxu0 0.0
        %706 = vmatpush.xpose.msra.mxu0 0.0
        %707 = vmatpush.xpose.msra.mxu0 0.0
        %708 = vmatpush.xpose.msra.mxu0 0.0
        %709 = vmatpush.xpose.msra.mxu0 0.0
        %710 = vmatpush.xpose.msra.mxu0 0.0
        %711 = vmatpush.xpose.msra.mxu0 0.0
        %712 = vmatpush.xpose.msra.mxu0 0.0
        %713 = vmatpush.xpose.msra.mxu0 0.0
        %714 = vmatpush.xpose.msra.mxu0 0.0
        %715 = vmatpush.xpose.msra.mxu0 0.0
        %716 = vmatpush.xpose.msra.mxu0 0.0
        %717 = vmatpush.xpose.msra.mxu0 %v701
        %718 = vmatpush.xpose.msra.mxu0 %v699
        %719 = vmatmul.f32.gmra.mxu0 %v697
        %v720 = vpop.f32.mrf.mxu0
        %v721 = vadd.f32 0.0, %v720
        %722 = vdwg.mxu0
        %v723 = vsel %vm445, %v721, -1e+10
        %v724 = vsel %vm447, %v723, -inf
        %725 = vmax.xlane.f32.xlu0 %v724
        %v726 = vpop.xlane.xlu0 %725
        %v727 = vsub.f32 %v723, %v726
        %v728 = vmul.f32 %v727, 1.442695
        %v729 = vpow.pop %v728
        %v730 = vsel %vm447, %v729, 0.0
        %731 = vadd.xlane.f32.xlu0 %v730
        %v732 = vpop.xlane.xlu0 %731
        %v733 = vrcp.pop %v732
        %v734 = vmul.f32 %v732, %v733
        %v735 = vsub.f32 1.0, %v734
        %v736 = vmul.f32 %v733, %v735
        %v737 = vadd.f32 %v733, %v736
        %vm738 = vweird.f32 %v732
        %vm739 = vweird.f32 %v733
        %vm740 = vmor %vm738, %vm739
        %v741 = vsel %vm740, %v733, %v737
        %v742 = vand.u32 2147483647, %v732
        %vm743 = vcmp.eq.f32.partialorder %v742, 8.507059e+37
        %v744 = vand.u32 %v732, 2147483648
        %v745 = vor.u32 1.1754944e-38, %v744
        %v746 = vsel %vm743, %v745, %v741
        %v747 = vmul.f32 %v729, %v746
        %s748 = scalar_lea.vmem %s355, 24 [#allocation8]
        %749 = vst.msk [vmem:[%s748] sm:$0xff] %vm447, %v747
        %750 = vrot.lane.b32.xlu0 %v409, 72
        %v751 = vpop.permute.xlu0 %750
        %752 = vrot.lane.b32.xlu0 %v410, 72
        %v753 = vpop.permute.xlu0 %752
        %v757 = vsel %vm447, %v747, 0
        %759 = vmatpush.msra.mxu0 0.0
        %760 = vmatpush.msra.mxu0 0.0
        %761 = vmatpush.msra.mxu0 0.0
        %762 = vmatpush.msra.mxu0 0.0
        %763 = vmatpush.msra.mxu0 0.0
        %764 = vmatpush.msra.mxu0 0.0
        %765 = vmatpush.msra.mxu0 0.0
        %766 = vmatpush.msra.mxu0 0.0
        %767 = vmatpush.msra.mxu0 0.0
        %768 = vmatpush.msra.mxu0 0.0
        %769 = vmatpush.msra.mxu0 0.0
        %770 = vmatpush.msra.mxu0 0.0
        %771 = vmatpush.msra.mxu0 0.0
        %772 = vmatpush.msra.mxu0 0.0
        %773 = vmatpush.msra.mxu0 %v753
        %774 = vmatpush.msra.mxu0 %v751
        %775 = vmatmul.f32.gmra.mxu0 %v757
        %v776 = vpop.f32.mrf.mxu0
        %v777 = vadd.f32 0.0, %v776
        %778 = vdwg.mxu0
        %780 = vrot.lane.b32.xlu0 %v777, 24
        %v781 = vpop.permute.xlu0 %780
        %vm783 = vcmask 261312
        %784 = vst.msk [vmem:[%s374] sm:$0xff] %vm783, %v781
        %p785 = scmp.lt.s32.totalorder %s27, 1
        %s786 = scalar_select %p785, %s27, 1
        %p787 = scmp.lt.s32.totalorder %s28, 0
        %s788 = scalar_select %p787, %s28, 0
        %s789 = sadd.s32 %s788, %s786
        %s790 = smul.addr %s789, 8
        %s791 = scalar_lea.vmem %s5, %s790
        %s792 = sand.u32 %s195, 1
        %s793 = scalar_lea.sflag [#allocation4], %s792
        %s794 = sand.u32 %s195, 1
        %s795 = smul.addr %s794, 32
        %s796 = scalar_lea.vmem [#allocation8], %s795
        // Predicated region
        $region53: #{decoder_layer.11} parent=39 // pred_check
          %p797 = pneg %p177
        $region54: #{decoder_layer.11} parent=39 // pred_check_branch
          %799 = sbr.rel (%p797) target = $region56
        $region55: #{decoder_layer.11} parent=39 // pred_region
          _
        $region56: #{decoder_layer.11} parent=39 // pred_fallthru
          _
        // Predicated region
        $region57: #{decoder_layer.11} parent=39 // pred_check
          %p800 = pneg %p205
        $region58: #{decoder_layer.11} parent=39 // pred_check_branch
          %802 = sbr.rel (%p800) target = $region60
        $region59: #{decoder_layer.11} parent=39 // pred_region
          %804 = vsyncadd %s793, 0
          %s805 = smul.addr %s27, 4
          %s806 = sadd.s32 %s28, %s805
          %s807 = smul.addr %s806, 8
          %s808 = scalar_lea.hbm %s6, %s807
          %s809 = sshll.u32 %s796, 4
          %s810 = int_to_ptr.vmem [resolvable:$true] %s809
          %s811 = sshll.u32 %s808, 4
          %s812 = int_to_ptr.hbm [resolvable:$true] %s811
          %817 = dma.vmem_to_hbm [thread:$0]  %s810, 512, %s812, %s793, 128, 128, 8
        $region60: #{decoder_layer.11} parent=39 // pred_fallthru
          _
      $region40: #{decoder_layer.11} parent=5 // pred_fallthru
        _
      %p818 = scmp.le.s32.totalorder 2, %s18
      // Predicated region
      $region61: #{decoder_layer.11} parent=5 // pred_check
        %p819 = pneg %p818
      $region62: #{decoder_layer.11} parent=5 // pred_check_branch
        %821 = sbr.rel (%p819) target = $region64
      $region63: #{decoder_layer.11} parent=5 // pred_region
        %s822 = ssub.s32 %s18, 2
        // Predicated region
        $region65: #{decoder_layer.11} parent=63 // pred_check
          %p823 = pneg %p183
        $region66: #{decoder_layer.11} parent=63 // pred_check_branch
          %825 = sbr.rel (%p823) target = $region68
        $region67: #{decoder_layer.11} parent=63 // pred_region
          %p826 = scmp.lt.s32.totalorder %s29, 1
          %s827 = scalar_select %p826, %s29, 1
          %p828 = scmp.lt.s32.totalorder %s30, 0
          %s829 = scalar_select %p828, %s30, 0
          %s830 = sadd.s32 %s829, %s827
          %s831 = smul.addr %s830, 8
          %s832 = scalar_lea.vmem %s5, %s831
        $region68: #{decoder_layer.11} parent=63 // pred_fallthru
          _
        // Predicated region
        $region69: #{decoder_layer.11} parent=63 // pred_check
          %p833 = pneg %p211
        $region70: #{decoder_layer.11} parent=63 // pred_check_branch
          %835 = sbr.rel (%p833) target = $region72
        $region71: #{decoder_layer.11} parent=63 // pred_region
          %s836 = sand.u32 %s196, 1
          %s837 = scalar_lea.sflag [#allocation4], %s836
          %s838 = sand.u32 %s196, 1
          %s839 = smul.addr %s838, 32
          %s840 = scalar_lea.vmem [#allocation8], %s839
          %842 = dma.done %s837, 512
        $region72: #{decoder_layer.11} parent=63 // pred_fallthru
          _
      $region64: #{decoder_layer.11} parent=5 // pred_fallthru
        _
    $region6: #{decoder_layer.11} parent=1 // loop_footer
      %s22 = sadd.s32 1, %s18
    $region7: #{decoder_layer.11} parent=1 // loop_footer_branch
      %17 = sbr.rel target = $region3
    $region8: #{decoder_layer.11} parent=1 // loop_exit
      _
    %843 = vsyncpa [#allocation3], 1
    %s844 = scalar_lea.sflag [#allocation3], 1
    %845 = vsyncpa %s844, 1
    %846 = vsyncpa [#allocation6], 1
    %847 = vsyncpa [#allocation4], 1
    %s848 = scalar_lea.sflag [#allocation4], 1
    %849 = vsyncpa %s848, 1

</llo_original>
